<compile_context>
chip_gen: v7x
topology: tpu7x:2x2x1
jax: 0.10.0
libtpu: 0.0.40
codegen_flags: <defaults>
</compile_context>

<pallas_src>
import functools

import jax
import jax.numpy as jnp
from jax.experimental import pallas as pl
from jax.experimental.pallas import tpu as pltpu


def _round_up(x, m):
    return (x + m - 1) // m * m


# --------------------------------------------------------------------------
# Kernel: one grid step == one GRU layer (all node rows at once).
# --------------------------------------------------------------------------
def _graph_gru_kernel(
    a_ref,       # [N, N]               bf16 adjacency (resident, single-buffered)
    x_ref,       # [N, Dpad]            bf16 padded external input (layer 0 only)
    h_ref,       # [N, Hpad]            f32  this layer's hidden state
    wall_ref,    # [Dpad+Hpad, 3*Hpad]  bf16 [[Wxz|Wxr|Wxh];[Whz|Whr|0]]
    ball_ref,    # [1, 3*Hpad]          f32  [bxz+bhz | bxr+bhr | bxh+bhh]
    whh_ref,     # [Hpad, Hpad]         bf16
    hout_ref,    # [N, Hpad]            f32
    xh_ref,      # VMEM scratch [N, Dpad+Hpad] bf16: fused [x | h] operand + carry
    *, hpad, dpad,
):
    layer = pl.program_id(0)
    n = a_ref.shape[0]

    # Stage this layer's h into the lane-concatenated [x | h] operand.
    xh_ref[:, dpad:] = h_ref[...].astype(xh_ref.dtype)

    # Layer 0: stage the (padded, bf16) external input into the x half.
    @pl.when(layer == 0)
    def _():
        xh_ref[:, :dpad] = x_ref[...]

    a = a_ref[...]                       # bf16 [N, N]
    xh = xh_ref[...]                     # bf16 [N, Dpad+Hpad]
    h = h_ref[...]                       # f32  [N, Hpad]

    # ---- one fused GIN propagation for x and h: [x|h] + A @ [x|h] ----------
    prop_xh = xh.astype(jnp.float32) + jnp.dot(
        a, xh, preferred_element_type=jnp.float32)           # f32 [N, Dpad+Hpad]

    # ---- one fused gate matmul (K = Dpad+Hpad): [z | r | x-side of h~] -----
    pre_all = jnp.dot(prop_xh.astype(jnp.bfloat16), wall_ref[...],
                      preferred_element_type=jnp.float32) + ball_ref[...]

    z = jax.nn.sigmoid(pre_all[:, :hpad])
    r = jax.nn.sigmoid(pre_all[:, hpad:2 * hpad])

    # ---- candidate state: the only path needing a fresh propagation --------
    rh = r * h                                                # f32 [N, Hpad]
    prop_rh = rh + jnp.dot(a, rh.astype(jnp.bfloat16),
                           preferred_element_type=jnp.float32)
    pre_hh = jnp.dot(prop_rh.astype(jnp.bfloat16), whh_ref[...],
                     preferred_element_type=jnp.float32)      # bhh folded into ball
    h_tilde = jnp.tanh(pre_all[:, 2 * hpad:] + pre_hh)

    h_new = z * h + (1.0 - z) * h_tilde                       # f32 [N, Hpad]
    hout_ref[...] = h_new

    # Carry this layer's output as the next layer's x half (stays in VMEM).
    if dpad > hpad:
        @pl.when(layer == 0)
        def _():
            # Tail only needs clearing once (input_size > hidden case).
            xh_ref[:, hpad:dpad] = jnp.zeros((n, dpad - hpad), xh_ref.dtype)
    xh_ref[:, :hpad] = h_new.astype(xh_ref.dtype)


# --------------------------------------------------------------------------
# Host-side glue
# --------------------------------------------------------------------------
def build_adjacency(edge_index, n_nodes):
    """Dense adjacency A[i, j] = #edges j -> i (source_to_target flow)."""
    src = edge_index[0]
    dst = edge_index[1]
    a = jnp.zeros((n_nodes, n_nodes), jnp.float32)
    return a.at[dst, src].add(1.0)


def _pack_params(params, input_size, hidden, n_layer, hpad, dpad):
    """Pack per-gate weights into one wide [[x-side];[h-side]] block per layer.

    W_all[l]: [dpad+hpad, 3*hpad] bf16 with columns [z | r | h~(x-side)];
    b_all[l]: [1, 3*hpad] f32 with all biases pre-summed (bhh folded into h~).
    Whh[l]:   [hpad, hpad] bf16 (applied to prop(r*h), no bias).
    """
    wall_l, ball_l, whh_l = [], [], []
    for i in range(n_layer):
        (wxz, bxz, whz, bhz, wxr, bxr, whr, bhr, wxh, bxh, whh, bhh) = params[i]
        f_in = input_size if i == 0 else hidden

        w = jnp.zeros((dpad + hpad, 3 * hpad), jnp.float32)
        # x-side rows
        w = w.at[:f_in, 0:hidden].set(wxz)
        w = w.at[:f_in, hpad:hpad + hidden].set(wxr)
        w = w.at[:f_in, 2 * hpad:2 * hpad + hidden].set(wxh)
        # h-side rows (z and r only; candidate h-side uses Whh on prop(r*h))
        w = w.at[dpad:dpad + hidden, 0:hidden].set(whz)
        w = w.at[dpad:dpad + hidden, hpad:hpad + hidden].set(whr)

        b = jnp.zeros((1, 3 * hpad), jnp.float32)
        b = b.at[:, 0:hidden].set(bxz + bhz)
        b = b.at[:, hpad:hpad + hidden].set(bxr + bhr)
        b = b.at[:, 2 * hpad:2 * hpad + hidden].set(bxh + bhh)

        whh_p = jnp.zeros((hpad, hpad), jnp.float32).at[:hidden, :hidden].set(whh)

        wall_l.append(w.astype(jnp.bfloat16))
        ball_l.append(b)
        whh_l.append(whh_p.astype(jnp.bfloat16))

    return jnp.stack(wall_l), jnp.stack(ball_l), jnp.stack(whh_l)


def graph_gru_forward(inp, edge_index, h, params):
    """Matches Graph_GRU.forward: returns (out, h_out), out is h_out."""
    n_layer, n_nodes, hidden = h.shape
    f_in = inp.shape[1]
    hpad = _round_up(hidden, 128)
    dpad = _round_up(max(f_in, hidden), 128)
    kpad = dpad + hpad

    a = build_adjacency(edge_index, n_nodes).astype(jnp.bfloat16)     # exact (ints)
    x_pad = (jnp.zeros((n_nodes, dpad), jnp.float32).at[:, :f_in].set(inp)
             .astype(jnp.bfloat16))
    h_pad = jnp.zeros((n_layer, n_nodes, hpad), jnp.float32).at[:, :, :hidden].set(h)

    wall_s, ball_s, whh_s = _pack_params(params, f_in, hidden, n_layer, hpad, dpad)

    const2 = lambda l: (0, 0)          # A / padded input: resident across layers
    per_layer3 = lambda l: (l, 0, 0)

    # Generation-aware VMEM budget (~20% headroom below physical capacity).
    try:
        vmem_cap = pltpu.get_tpu_info().vmem_capacity_bytes
    except Exception:
        vmem_cap = 64 * 2 ** 20
    vmem_limit = int(vmem_cap * 0.8)

    flops = n_layer * (
        2 * n_nodes * n_nodes * kpad          # A @ [x|h]
        + 2 * n_nodes * kpad * 3 * hpad       # fused z|r|h~ gate matmul
        + 2 * n_nodes * n_nodes * hpad        # A @ (r*h)
        + 2 * n_nodes * hpad * hpad)          # prop(r*h) @ Whh
    bytes_accessed = int(a.nbytes + x_pad.nbytes + h_pad.nbytes + wall_s.nbytes
                         + ball_s.nbytes + whh_s.nbytes
                         + n_layer * n_nodes * hpad * 4)
    cost = pl.CostEstimate(flops=flops,
                           transcendentals=3 * n_layer * n_nodes * hpad,
                           bytes_accessed=bytes_accessed)

    kernel = functools.partial(_graph_gru_kernel, hpad=hpad, dpad=dpad)

    out_pad = pl.pallas_call(
        kernel,
        out_shape=jax.ShapeDtypeStruct((n_layer, n_nodes, hpad), jnp.float32),
        grid_spec=pltpu.PrefetchScalarGridSpec(
            num_scalar_prefetch=0,
            grid=(n_layer,),
            in_specs=[
                # Constant blocks: fetched once, single-buffered.
                pl.BlockSpec((n_nodes, n_nodes), const2,
                             pipeline_mode=pl.Buffered(1)),            # A (bf16)
                pl.BlockSpec((n_nodes, dpad), const2,
                             pipeline_mode=pl.Buffered(1)),            # x (bf16)
                # Per-layer blocks (leading layer dim squeezed away).
                pl.BlockSpec((pl.Squeezed(), n_nodes, hpad), per_layer3),   # h[i]
                pl.BlockSpec((pl.Squeezed(), kpad, 3 * hpad), per_layer3),  # W_all
                pl.BlockSpec((pl.Squeezed(), 1, 3 * hpad), per_layer3),     # b_all
                pl.BlockSpec((pl.Squeezed(), hpad, hpad), per_layer3),      # Whh
            ],
            out_specs=pl.BlockSpec((pl.Squeezed(), n_nodes, hpad), per_layer3),
            scratch_shapes=[pltpu.VMEM((n_nodes, kpad), jnp.bfloat16)],
        ),
        compiler_params=pltpu.CompilerParams(
            dimension_semantics=("arbitrary",),   # layers are sequential (carry)
            vmem_limit_bytes=vmem_limit,
        ),
        cost_estimate=cost,
    )(a, x_pad, h_pad, wall_s, ball_s, whh_s)

    h_out = out_pad[:, :, :hidden]
    return h_out, h_out


def init_params(key, input_size, hidden_size, n_layer):
    """Weights are [in, hidden] (pre-transposed vs. torch Linear); bias [1, hidden]."""
    params = []
    for i in range(n_layer):
        in_sz = input_size if i == 0 else hidden_size
        layer = []
        for name, fan_in in (("xz", in_sz), ("hz", hidden_size),
                             ("xr", in_sz), ("hr", hidden_size),
                             ("xh", in_sz), ("hh", hidden_size)):
            key, kw, kb = jax.random.split(key, 3)
            bound = 1.0 / jnp.sqrt(jnp.float32(fan_in))
            w = jax.random.uniform(kw, (fan_in, hidden_size), jnp.float32,
                                   -bound, bound)
            b = jax.random.uniform(kb, (1, hidden_size), jnp.float32,
                                   -bound, bound)
            layer.extend([w, b])
        params.append(tuple(layer))
    return params


if __name__ == "__main__":
    key = jax.random.PRNGKey(0)

    N_NODES = 256
    INPUT_SIZE = 16
    HIDDEN_SIZE = 32
    N_LAYER = 2
    N_EDGES = 1024

    key, k_inp, k_h, k_src, k_dst, k_param = jax.random.split(key, 6)

    inp = jax.random.normal(k_inp, (N_NODES, INPUT_SIZE), jnp.float32)
    h = jax.random.normal(k_h, (N_LAYER, N_NODES, HIDDEN_SIZE), jnp.float32)
    src = jax.random.randint(k_src, (N_EDGES,), 0, N_NODES, jnp.int32)
    dst = jax.random.randint(k_dst, (N_EDGES,), 0, N_NODES, jnp.int32)
    edge_index = jnp.stack([src, dst], axis=0)   # [2, E]

    params = init_params(k_param, INPUT_SIZE, HIDDEN_SIZE, N_LAYER)

    out, h_out = graph_gru_forward(inp, edge_index, h, params)
    jax.block_until_ready((out, h_out))

    # Plain-JAX reference with the same per-gate math as the PyTorch module,
    # evaluated at bf16 matmul-operand precision (f32 accumulation) to match
    # the kernel's MXU dtype choice.
    def bf(v):
        return v.astype(jnp.bfloat16).astype(jnp.float32)

    def gin_ref(a, v, w, b):
        vb = bf(v)
        prop = vb + a @ vb
        return bf(prop) @ bf(w) + b

    a_ref = bf(build_adjacency(edge_index, N_NODES))
    h_ref_layers = []
    for i in range(N_LAYER):
        (wxz, bxz, whz, bhz, wxr, bxr, whr, bhr, wxh, bxh, whh, bhh) = params[i]
        x_i = inp if i == 0 else h_ref_layers[i - 1]
        z = jax.nn.sigmoid(gin_ref(a_ref, x_i, wxz, bxz) + gin_ref(a_ref, h[i], whz, bhz))
        r = jax.nn.sigmoid(gin_ref(a_ref, x_i, wxr, bxr) + gin_ref(a_ref, h[i], whr, bhr))
        ht = jnp.tanh(gin_ref(a_ref, x_i, wxh, bxh) + gin_ref(a_ref, r * h[i], whh, bhh))
        h_ref_layers.append(z * h[i] + (1.0 - z) * ht)
    h_ref_full = jnp.stack(h_ref_layers, axis=0)

    assert out.shape == (N_LAYER, N_NODES, HIDDEN_SIZE)
    assert jnp.allclose(out, h_ref_full, atol=2e-2, rtol=2e-2)

    print("KERNEL_OK")
</pallas_src>

<mosaic_0001>
module attributes {stable_mosaic.version = 11 : i64} {
  func.func @_graph_gru_kernel(%arg0: i32, %arg1: memref<256x256xbf16, #tpu.memory_space<vmem>>, %arg2: memref<256x128xbf16, #tpu.memory_space<vmem>>, %arg3: memref<1x256x128xf32, #tpu.memory_space<vmem>>, %arg4: memref<1x256x384xbf16, #tpu.memory_space<vmem>>, %arg5: memref<1x1x384xf32, #tpu.memory_space<vmem>>, %arg6: memref<1x128x128xbf16, #tpu.memory_space<vmem>>, %arg7: memref<1x256x128xf32, #tpu.memory_space<vmem>>, %arg8: memref<256x256xbf16, #tpu.memory_space<vmem>>) attributes {dimension_semantics = [#tpu.dimension_semantics<arbitrary>], iteration_bounds = array<i64: 2>, scalar_prefetch = 0 : i64, scratch_operands = 1 : i64, tpu.core_type = #tpu.core_type<tc>, window_params = [{pipeline_mode = #tpu.pipeline_mode<synchronous>, transform_indices = @transform_0, window_bounds = array<i64: 256, 256>}, {pipeline_mode = #tpu.pipeline_mode<synchronous>, transform_indices = @transform_1, window_bounds = array<i64: 256, 128>}, {transform_indices = @transform_2, window_bounds = array<i64: 1, 256, 128>}, {transform_indices = @transform_3, window_bounds = array<i64: 1, 256, 384>}, {transform_indices = @transform_4, window_bounds = array<i64: 1, 1, 384>}, {transform_indices = @transform_5, window_bounds = array<i64: 1, 128, 128>}, {transform_indices = @transform_6, window_bounds = array<i64: 1, 256, 128>}]} {
    %c0 = arith.constant 0 : index
    %c0_0 = arith.constant 0 : index
    %c0_1 = arith.constant 0 : index
    %0 = vector.load %arg3[%c0, %c0_0, %c0_1] : memref<1x256x128xf32, #tpu.memory_space<vmem>>, vector<1x256x128xf32>
    %1 = vector.shape_cast %0 : vector<1x256x128xf32> to vector<256x128xf32>
    %2 = arith.truncf %1 : vector<256x128xf32> to vector<256x128xbf16>
    %c0_2 = arith.constant 0 : index
    %c128 = arith.constant 128 : index
    %3 = vector.load %arg8[%c0_2, %c128] : memref<256x256xbf16, #tpu.memory_space<vmem>>, vector<256x128xbf16>
    tpu.vector_store %arg8[%c0_2, %c128], %2 {strides = array<i32>} : memref<256x256xbf16, #tpu.memory_space<vmem>>, vector<256x128xbf16>,
    %c0_i32 = arith.constant 0 : i32
    %4 = arith.cmpi eq, %arg0, %c0_i32 : i32
    %5 = arith.extui %4 : i1 to i32
    %c0_i32_3 = arith.constant 0 : i32
    %6 = arith.cmpi ne, %5, %c0_i32_3 : i32
    scf.if %6 {
      %c0_31 = arith.constant 0 : index
      %c0_32 = arith.constant 0 : index
      %55 = vector.load %arg2[%c0_31, %c0_32] : memref<256x128xbf16, #tpu.memory_space<vmem>>, vector<256x128xbf16>
      %c0_33 = arith.constant 0 : index
      %c0_34 = arith.constant 0 : index
      %56 = vector.load %arg8[%c0_33, %c0_34] : memref<256x256xbf16, #tpu.memory_space<vmem>>, vector<256x128xbf16>
      tpu.vector_store %arg8[%c0_33, %c0_34], %55 {strides = array<i32>} : memref<256x256xbf16, #tpu.memory_space<vmem>>, vector<256x128xbf16>,
    } else {
    }
    %c0_4 = arith.constant 0 : index
    %c0_5 = arith.constant 0 : index
    %7 = vector.load %arg1[%c0_4, %c0_5] : memref<256x256xbf16, #tpu.memory_space<vmem>>, vector<256x256xbf16>
    %c0_6 = arith.constant 0 : index
    %c0_7 = arith.constant 0 : index
    %8 = vector.load %arg8[%c0_6, %c0_7] : memref<256x256xbf16, #tpu.memory_space<vmem>>, vector<256x256xbf16>
    %c0_8 = arith.constant 0 : index
    %c0_9 = arith.constant 0 : index
    %c0_10 = arith.constant 0 : index
    %9 = vector.load %arg3[%c0_8, %c0_9, %c0_10] : memref<1x256x128xf32, #tpu.memory_space<vmem>>, vector<1x256x128xf32>
    %10 = vector.shape_cast %9 : vector<1x256x128xf32> to vector<256x128xf32>
    %11 = arith.extf %8 : vector<256x256xbf16> to vector<256x256xf32>
    %cst = arith.constant dense<0.000000e+00> : vector<256x256xf32>
    %12 = tpu.matmul %7, %8, %cst {dimension_numbers = #tpu.dot_dimension_numbers<[1], [0], [0], [1], [0, 0, 1, 1], [], []>} : vector<256x256xbf16>, vector<256x256xbf16>, vector<256x256xf32> -> vector<256x256xf32>
    %13 = arith.addf %11, %12 : vector<256x256xf32>
    %14 = arith.truncf %13 : vector<256x256xf32> to vector<256x256xbf16>
    %c0_11 = arith.constant 0 : index
    %c0_12 = arith.constant 0 : index
    %c0_13 = arith.constant 0 : index
    %15 = vector.load %arg4[%c0_11, %c0_12, %c0_13] : memref<1x256x384xbf16, #tpu.memory_space<vmem>>, vector<1x256x384xbf16>
    %16 = vector.shape_cast %15 : vector<1x256x384xbf16> to vector<256x384xbf16>
    %cst_14 = arith.constant dense<0.000000e+00> : vector<256x384xf32>
    %17 = tpu.matmul %14, %16, %cst_14 {dimension_numbers = #tpu.dot_dimension_numbers<[1], [0], [0], [1], [0, 0, 1, 1], [], []>} : vector<256x256xbf16>, vector<256x384xbf16>, vector<256x384xf32> -> vector<256x384xf32>
    %c0_15 = arith.constant 0 : index
    %c0_16 = arith.constant 0 : index
    %c0_17 = arith.constant 0 : index
    %18 = vector.load %arg5[%c0_15, %c0_16, %c0_17] : memref<1x1x384xf32, #tpu.memory_space<vmem>>, vector<1x1x384xf32>
    %19 = vector.shape_cast %18 : vector<1x1x384xf32> to vector<1x384xf32>
    %20 = vector.broadcast %19 : vector<1x384xf32> to vector<256x384xf32>
    %21 = arith.addf %17, %20 : vector<256x384xf32>
    %22 = vector.extract_strided_slice %21 {offsets = [0, 0], sizes = [256, 128], strides = [1, 1]} : vector<256x384xf32> to vector<256x128xf32>
    %23 = arith.negf %22 : vector<256x128xf32>
    %24 = math.exp %23 : vector<256x128xf32>
    %cst_18 = arith.constant 1.000000e+00 : f32
    %25 = vector.broadcast %cst_18 : f32 to vector<256x128xf32>
    %26 = arith.addf %25, %24 : vector<256x128xf32>
    %27 = arith.divf %25, %26 : vector<256x128xf32>
    %28 = vector.extract_strided_slice %21 {offsets = [0, 128], sizes = [256, 128], strides = [1, 1]} : vector<256x384xf32> to vector<256x128xf32>
    %29 = arith.negf %28 : vector<256x128xf32>
    %30 = math.exp %29 : vector<256x128xf32>
    %cst_19 = arith.constant 1.000000e+00 : f32
    %31 = vector.broadcast %cst_19 : f32 to vector<256x128xf32>
    %32 = arith.addf %31, %30 : vector<256x128xf32>
    %33 = arith.divf %31, %32 : vector<256x128xf32>
    %34 = arith.mulf %33, %10 : vector<256x128xf32>
    %35 = arith.truncf %34 : vector<256x128xf32> to vector<256x128xbf16>
    %cst_20 = arith.constant dense<0.000000e+00> : vector<256x128xf32>
    %36 = tpu.matmul %7, %35, %cst_20 {dimension_numbers = #tpu.dot_dimension_numbers<[1], [0], [0], [1], [0, 0, 1, 1], [], []>} : vector<256x256xbf16>, vector<256x128xbf16>, vector<256x128xf32> -> vector<256x128xf32>
    %37 = arith.addf %34, %36 : vector<256x128xf32>
    %38 = arith.truncf %37 : vector<256x128xf32> to vector<256x128xbf16>
    %c0_21 = arith.constant 0 : index
    %c0_22 = arith.constant 0 : index
    %c0_23 = arith.constant 0 : index
    %39 = vector.load %arg6[%c0_21, %c0_22, %c0_23] : memref<1x128x128xbf16, #tpu.memory_space<vmem>>, vector<1x128x128xbf16>
    %40 = vector.shape_cast %39 : vector<1x128x128xbf16> to vector<128x128xbf16>
    %cst_24 = arith.constant dense<0.000000e+00> : vector<256x128xf32>
    %41 = tpu.matmul %38, %40, %cst_24 {dimension_numbers = #tpu.dot_dimension_numbers<[1], [0], [0], [1], [0, 0, 1, 1], [], []>} : vector<256x128xbf16>, vector<128x128xbf16>, vector<256x128xf32> -> vector<256x128xf32>
    %42 = vector.extract_strided_slice %21 {offsets = [0, 256], sizes = [256, 128], strides = [1, 1]} : vector<256x384xf32> to vector<256x128xf32>
    %43 = arith.addf %42, %41 : vector<256x128xf32>
    %44 = math.tanh %43 : vector<256x128xf32>
    %45 = arith.mulf %27, %10 : vector<256x128xf32>
    %cst_25 = arith.constant 1.000000e+00 : f32
    %46 = vector.broadcast %cst_25 : f32 to vector<256x128xf32>
    %47 = arith.subf %46, %27 : vector<256x128xf32>
    %48 = arith.mulf %47, %44 : vector<256x128xf32>
    %49 = arith.addf %45, %48 : vector<256x128xf32>
    %c0_26 = arith.constant 0 : index
    %c0_27 = arith.constant 0 : index
    %c0_28 = arith.constant 0 : index
    %50 = vector.load %arg7[%c0_26, %c0_27, %c0_28] : memref<1x256x128xf32, #tpu.memory_space<vmem>>, vector<1x256x128xf32>
    %51 = vector.shape_cast %50 : vector<1x256x128xf32> to vector<256x128xf32>
    %52 = vector.shape_cast %49 : vector<256x128xf32> to vector<1x256x128xf32>
    tpu.vector_store %arg7[%c0_26, %c0_27, %c0_28], %52 {strides = array<i32>} : memref<1x256x128xf32, #tpu.memory_space<vmem>>, vector<1x256x128xf32>,
    %53 = arith.truncf %49 : vector<256x128xf32> to vector<256x128xbf16>
    %c0_29 = arith.constant 0 : index
    %c0_30 = arith.constant 0 : index
    %54 = vector.load %arg8[%c0_29, %c0_30] : memref<256x256xbf16, #tpu.memory_space<vmem>>, vector<256x128xbf16>
    tpu.vector_store %arg8[%c0_29, %c0_30], %53 {strides = array<i32>} : memref<256x256xbf16, #tpu.memory_space<vmem>>, vector<256x128xbf16>,
    return
  }
  func.func @transform_0(%arg0: i32) -> (i32, i32) {
    %c0_i32 = arith.constant 0 : i32
    %c0_i32_0 = arith.constant 0 : i32
    %c0_i32_1 = arith.constant 0 : i32
    return %c0_i32, %c0_i32_0 : i32, i32
  }
  func.func @transform_1(%arg0: i32) -> (i32, i32) {
    %c0_i32 = arith.constant 0 : i32
    %c0_i32_0 = arith.constant 0 : i32
    %c0_i32_1 = arith.constant 0 : i32
    return %c0_i32, %c0_i32_0 : i32, i32
  }
  func.func @transform_2(%arg0: i32) -> (i32, i32, i32) {
    %c0_i32 = arith.constant 0 : i32
    %c0_i32_0 = arith.constant 0 : i32
    %c0_i32_1 = arith.constant 0 : i32
    return %arg0, %c0_i32, %c0_i32_0 : i32, i32, i32
  }
  func.func @transform_3(%arg0: i32) -> (i32, i32, i32) {
    %c0_i32 = arith.constant 0 : i32
    %c0_i32_0 = arith.constant 0 : i32
    %c0_i32_1 = arith.constant 0 : i32
    return %arg0, %c0_i32, %c0_i32_0 : i32, i32, i32
  }
  func.func @transform_4(%arg0: i32) -> (i32, i32, i32) {
    %c0_i32 = arith.constant 0 : i32
    %c0_i32_0 = arith.constant 0 : i32
    %c0_i32_1 = arith.constant 0 : i32
    return %arg0, %c0_i32, %c0_i32_0 : i32, i32, i32
  }
  func.func @transform_5(%arg0: i32) -> (i32, i32, i32) {
    %c0_i32 = arith.constant 0 : i32
    %c0_i32_0 = arith.constant 0 : i32
    %c0_i32_1 = arith.constant 0 : i32
    return %arg0, %c0_i32, %c0_i32_0 : i32, i32, i32
  }
  func.func @transform_6(%arg0: i32) -> (i32, i32, i32) {
    %c0_i32 = arith.constant 0 : i32
    %c0_i32_0 = arith.constant 0 : i32
    %c0_i32_1 = arith.constant 0 : i32
    return %arg0, %c0_i32, %c0_i32_0 : i32, i32, i32
  }
}

</mosaic_0001>

<llo_original>
// kernel: tpu_custom_call.1
$region0: #{tpu_custom_call.1}
  #allocation0 [shape = 'u32[]', space=smem, size = 0x4, offset = 0x4, fixed_abs, tag = 'smem constant byte address 0x4 - core index']
  #allocation1 [shape = 'u32[144,128]{1,0:T(1,128)}', space=vmem, size = 0x12000, scoped, tag = 'internal scratch']
  #allocation2 [shape = 'bf16[256,256]{1,0:T(16,128)(2,1)}', space=vmem, size = 0x20000, scoped, tag = 'scratch operand']
  %s0 = inlined_call_operand.hbm [shape: bf16[256,256], index: 0, kind: input, shape index: {}]
  %s1 = inlined_call_operand.hbm [shape: bf16[256,128], index: 1, kind: input, shape index: {}]
  %s2 = inlined_call_operand.hbm [shape: f32[2,256,128], index: 2, kind: input, shape index: {}]
  %s3 = inlined_call_operand.hbm [shape: bf16[2,256,384], index: 3, kind: input, shape index: {}]
  %s4 = inlined_call_operand.vmem [shape: f32[2,1,384], index: 4, kind: input, shape index: {}]
  %s5 = inlined_call_operand.hbm [shape: bf16[2,128,128], index: 5, kind: input, shape index: {}]
  %s6 = inlined_call_operand.hbm [shape: f32[2,256,128], index: 6, kind: output, shape index: {}]
  %s7 = sld [smem:[#allocation0]]
  $region81: #{tpu_custom_call.1} parent=0
    _
  %s9 = ssub.s32 1, %s7
  %s10 = scalar_select 0, %s9, %s7
  $region1: #{tpu_custom_call.1} parent=0
    #allocation3 [shape = 'u8[131072]{0}', space=vmem, size = 0x20000, scoped, tag = 'input window, operand 0, single buffered']
    #allocation4 [shape = 's32[2]{0}', space=sflag, size = 0x8, scoped, tag = 'scoped memory for tpu_custom_call.1']
    #allocation5 [shape = 's32[2]{0}', space=sflag, size = 0x8, scoped, tag = 'scoped memory for tpu_custom_call.1']
    #allocation6 [shape = 'u8[65536]{0}', space=vmem, size = 0x10000, scoped, tag = 'input window, operand 1, single buffered']
    #allocation7 [shape = 's32[1]{0}', space=sflag, size = 0x4, scoped, tag = 'scoped memory for tpu_custom_call.1']
    #allocation8 [shape = 'u8[262144]{0}', space=vmem, size = 0x40000, scoped, tag = 'input window, operand 2']
    #allocation9 [shape = 'u8[393216]{0}', space=vmem, size = 0x60000, scoped, tag = 'input window, operand 3']
    #allocation10 [shape = 'u8[65536]{0}', space=vmem, size = 0x10000, scoped, tag = 'input window, operand 5']
    #allocation11 [shape = 'u8[262144]{0}', space=vmem, size = 0x40000, scoped, tag = 'output window, operand 0']
    %11 = vsyncpa [#allocation4], 0
    %12 = vsyncpa [#allocation7], 0
    %13 = vsyncpa [#allocation5], 0
    %s14 = scalar_lea.sflag [#allocation5], 1
    %15 = vsyncpa %s14, 0
    loop: start=0, step=1, limit=4
    $region2: #{tpu_custom_call.1} parent=1 // loop_pre_header
      _
    $region3: #{tpu_custom_call.1} parent=1 // loop_header
      %s17 = sphi 0, %s21
      %p18 = scmp.ge.s32.totalorder %s17, 4
      %s25 = sphi 0, %s25
      %s27 = sphi 0, %s25
      %s28 = sphi 0, %s27
      %s42 = sphi 0, %s28
      %s46 = sphi 0, %s46
      %s48 = sphi 0, %s46
      %s49 = sphi 0, %s48
      %s63 = sphi 0, %s49
      %s69 = sphi 0, %s71
      %s72 = sphi 0, %s69
      %s73 = sphi 0, %s72
      %s89 = sphi 0, %s73
      %s95 = sphi 0, %s97
      %s98 = sphi 0, %s95
      %s99 = sphi 0, %s98
      %s115 = sphi 0, %s99
      %s121 = sphi 0, %s123
      %s124 = sphi 0, %s121
      %s125 = sphi 0, %s124
      %s141 = sphi 0, %s125
      %s147 = sphi 0, %s149
      %s150 = sphi 0, %s147
      %s151 = sphi 0, %s150
      %s167 = sphi 0, %s151
      %s173 = sphi 0, %s175
      %s176 = sphi 0, %s173
      %s177 = sphi 0, %s176
      %s193 = sphi 0, %s177
    $region4: #{tpu_custom_call.1} parent=1 // loop_header_branch
      %20 = sbr.rel (%p18) target = $region8
    $region5: #{tpu_custom_call.1} parent=1 // loop_body
      %s22 = ssub.s32 %s17, 1
      %s23 = ssub.s32 %s17, 2
      %s24 = sadd.s32 %s17, 1
      %s26 = sadd.s32 %s25, 1
      %p29 = scmp.eq.s32.totalorder %s17, 1
      %p30 = scmp.ne.s32.totalorder %s25, %s27
      %p31 = scmp.eq.s32.totalorder %s17, 0
      %p32 = por %p30, %p31
      %p33 = scmp.ne.s32.totalorder %s25, %s27
      %p34 = scmp.eq.s32.totalorder %s22, 1
      %p35 = por %p33, %p34
      %p36 = scmp.ne.s32.totalorder %s27, %s28
      %p37 = scmp.eq.s32.totalorder %s22, 0
      %p38 = por %p36, %p37
      %p39 = scmp.ne.s32.totalorder %s27, %s28
      %p40 = scmp.eq.s32.totalorder %s23, 1
      %p41 = por %p39, %p40
      %p43 = scmp.ne.s32.totalorder %s28, %s42
      %p44 = scmp.eq.s32.totalorder %s23, 0
      %p45 = por %p43, %p44
      %s47 = sadd.s32 %s46, 1
      %p50 = scmp.eq.s32.totalorder %s17, 1
      %p51 = scmp.ne.s32.totalorder %s46, %s48
      %p52 = scmp.eq.s32.totalorder %s17, 0
      %p53 = por %p51, %p52
      %p54 = scmp.ne.s32.totalorder %s46, %s48
      %p55 = scmp.eq.s32.totalorder %s22, 1
      %p56 = por %p54, %p55
      %p57 = scmp.ne.s32.totalorder %s48, %s49
      %p58 = scmp.eq.s32.totalorder %s22, 0
      %p59 = por %p57, %p58
      %p60 = scmp.ne.s32.totalorder %s48, %s49
      %p61 = scmp.eq.s32.totalorder %s23, 1
      %p62 = por %p60, %p61
      %p64 = scmp.ne.s32.totalorder %s49, %s63
      %p65 = scmp.eq.s32.totalorder %s23, 0
      %p66 = por %p64, %p65
      %s67 = ssub.s32 %s17, %s24
      %p68 = scmp.eq.s32.totalorder %s67, 0
      %s70 = sadd.s32 %s69, 1
      %s71 = scalar_select %p68, %s69, %s70
      %p74 = pneg %p68
      %p75 = scmp.eq.s32.totalorder %s17, 1
      %p76 = por %p74, %p75
      %p77 = scmp.ne.s32.totalorder %s69, %s72
      %p78 = scmp.eq.s32.totalorder %s17, 0
      %p79 = por %p77, %p78
      %p80 = scmp.ne.s32.totalorder %s69, %s72
      %p81 = scmp.eq.s32.totalorder %s22, 1
      %p82 = por %p80, %p81
      %p83 = scmp.ne.s32.totalorder %s72, %s73
      %p84 = scmp.eq.s32.totalorder %s22, 0
      %p85 = por %p83, %p84
      %p86 = scmp.ne.s32.totalorder %s72, %s73
      %p87 = scmp.eq.s32.totalorder %s23, 1
      %p88 = por %p86, %p87
      %p90 = scmp.ne.s32.totalorder %s73, %s89
      %p91 = scmp.eq.s32.totalorder %s23, 0
      %p92 = por %p90, %p91
      %s93 = ssub.s32 %s17, %s24
      %p94 = scmp.eq.s32.totalorder %s93, 0
      %s96 = sadd.s32 %s95, 1
      %s97 = scalar_select %p94, %s95, %s96
      %p100 = pneg %p94
      %p101 = scmp.eq.s32.totalorder %s17, 1
      %p102 = por %p100, %p101
      %p103 = scmp.ne.s32.totalorder %s95, %s98
      %p104 = scmp.eq.s32.totalorder %s17, 0
      %p105 = por %p103, %p104
      %p106 = scmp.ne.s32.totalorder %s95, %s98
      %p107 = scmp.eq.s32.totalorder %s22, 1
      %p108 = por %p106, %p107
      %p109 = scmp.ne.s32.totalorder %s98, %s99
      %p110 = scmp.eq.s32.totalorder %s22, 0
      %p111 = por %p109, %p110
      %p112 = scmp.ne.s32.totalorder %s98, %s99
      %p113 = scmp.eq.s32.totalorder %s23, 1
      %p114 = por %p112, %p113
      %p116 = scmp.ne.s32.totalorder %s99, %s115
      %p117 = scmp.eq.s32.totalorder %s23, 0
      %p118 = por %p116, %p117
      %s119 = ssub.s32 %s17, %s24
      %p120 = scmp.eq.s32.totalorder %s119, 0
      %s122 = sadd.s32 %s121, 1
      %s123 = scalar_select %p120, %s121, %s122
      %p126 = pneg %p120
      %p127 = scmp.eq.s32.totalorder %s17, 1
      %p128 = por %p126, %p127
      %p129 = scmp.ne.s32.totalorder %s121, %s124
      %p130 = scmp.eq.s32.totalorder %s17, 0
      %p131 = por %p129, %p130
      %p132 = scmp.ne.s32.totalorder %s121, %s124
      %p133 = scmp.eq.s32.totalorder %s22, 1
      %p134 = por %p132, %p133
      %p135 = scmp.ne.s32.totalorder %s124, %s125
      %p136 = scmp.eq.s32.totalorder %s22, 0
      %p137 = por %p135, %p136
      %p138 = scmp.ne.s32.totalorder %s124, %s125
      %p139 = scmp.eq.s32.totalorder %s23, 1
      %p140 = por %p138, %p139
      %p142 = scmp.ne.s32.totalorder %s125, %s141
      %p143 = scmp.eq.s32.totalorder %s23, 0
      %p144 = por %p142, %p143
      %s145 = ssub.s32 %s17, %s24
      %p146 = scmp.eq.s32.totalorder %s145, 0
      %s148 = sadd.s32 %s147, 1
      %s149 = scalar_select %p146, %s147, %s148
      %p152 = pneg %p146
      %p153 = scmp.eq.s32.totalorder %s17, 1
      %p154 = por %p152, %p153
      %p155 = scmp.ne.s32.totalorder %s147, %s150
      %p156 = scmp.eq.s32.totalorder %s17, 0
      %p157 = por %p155, %p156
      %p158 = scmp.ne.s32.totalorder %s147, %s150
      %p159 = scmp.eq.s32.totalorder %s22, 1
      %p160 = por %p158, %p159
      %p161 = scmp.ne.s32.totalorder %s150, %s151
      %p162 = scmp.eq.s32.totalorder %s22, 0
      %p163 = por %p161, %p162
      %p164 = scmp.ne.s32.totalorder %s150, %s151
      %p165 = scmp.eq.s32.totalorder %s23, 1
      %p166 = por %p164, %p165
      %p168 = scmp.ne.s32.totalorder %s151, %s167
      %p169 = scmp.eq.s32.totalorder %s23, 0
      %p170 = por %p168, %p169
      %s171 = ssub.s32 %s17, %s24
      %p172 = scmp.eq.s32.totalorder %s171, 0
      %s174 = sadd.s32 %s173, 1
      %s175 = scalar_select %p172, %s173, %s174
      %p178 = pneg %p172
      %p179 = scmp.eq.s32.totalorder %s17, 1
      %p180 = por %p178, %p179
      %p181 = scmp.ne.s32.totalorder %s173, %s176
      %p182 = scmp.eq.s32.totalorder %s17, 0
      %p183 = por %p181, %p182
      %p184 = scmp.ne.s32.totalorder %s173, %s176
      %p185 = scmp.eq.s32.totalorder %s22, 1
      %p186 = por %p184, %p185
      %p187 = scmp.ne.s32.totalorder %s176, %s177
      %p188 = scmp.eq.s32.totalorder %s22, 0
      %p189 = por %p187, %p188
      %p190 = scmp.ne.s32.totalorder %s176, %s177
      %p191 = scmp.eq.s32.totalorder %s23, 1
      %p192 = por %p190, %p191
      %p194 = scmp.ne.s32.totalorder %s177, %s193
      %p195 = scmp.eq.s32.totalorder %s23, 0
      %p196 = por %p194, %p195
      %p197 = scmp.le.s32.totalorder 1, %s17
      %p198 = scmp.lt.s32.totalorder %s17, 3
      %p199 = pnand %p197, %p198
      %p200 = pneg %p199
      // Predicated region
      $region9: #{tpu_custom_call.1} parent=5 // pred_check
        _
      $region10: #{tpu_custom_call.1} parent=5 // pred_check_branch
        %202 = sbr.rel (%p199) target = $region12
      $region11: #{tpu_custom_call.1} parent=5 // pred_region
        %s203 = ssub.s32 %s17, 1
        // Predicated region
        $region13: #{tpu_custom_call.1} parent=11 // pred_check
          %p204 = pneg %p38
        $region14: #{tpu_custom_call.1} parent=11 // pred_check_branch
          %206 = sbr.rel (%p204) target = $region16
        $region15: #{tpu_custom_call.1} parent=11 // pred_region
          %s208 = ssub.s32 4096, 4096
          %209 = vsyncadd [#allocation4], %s208
          %s210 = sshll.u32 [#allocation3], 4
          %s211 = int_to_ptr.vmem [resolvable:$true] %s210
          %216 = dma.hbm_to_vmem [thread:$0]  %s0, 4096, %s211, [#allocation4], 128, 128, 8
        $region16: #{tpu_custom_call.1} parent=11 // pred_fallthru
          _
        // Predicated region
        $region17: #{tpu_custom_call.1} parent=11 // pred_check
          %p217 = pneg %p59
        $region18: #{tpu_custom_call.1} parent=11 // pred_check_branch
          %219 = sbr.rel (%p217) target = $region20
        $region19: #{tpu_custom_call.1} parent=11 // pred_region
          %s221 = ssub.s32 2048, 2048
          %222 = vsyncadd [#allocation7], %s221
          %s223 = sshll.u32 [#allocation6], 4
          %s224 = int_to_ptr.vmem [resolvable:$true] %s223
          %229 = dma.hbm_to_vmem [thread:$0]  %s1, 2048, %s224, [#allocation7], 64, 64, 4
        $region20: #{tpu_custom_call.1} parent=11 // pred_fallthru
          _
      $region12: #{tpu_custom_call.1} parent=5 // pred_fallthru
        _
      %p230 = scmp.lt.s32.totalorder %s17, 2
      // Predicated region
      $region21: #{tpu_custom_call.1} parent=5 // pred_check
        %p231 = pneg %p230
      $region22: #{tpu_custom_call.1} parent=5 // pred_check_branch
        %233 = sbr.rel (%p231) target = $region24
      $region23: #{tpu_custom_call.1} parent=5 // pred_region
        // Predicated region
        $region25: #{tpu_custom_call.1} parent=23 // pred_check
          %p234 = pneg %p79
        $region26: #{tpu_custom_call.1} parent=23 // pred_check_branch
          %236 = sbr.rel (%p234) target = $region28
        $region27: #{tpu_custom_call.1} parent=23 // pred_region
          %s237 = sand.u32 %s17, 1
          %s238 = scalar_lea.sflag [#allocation4], %s237
          %s239 = sand.u32 %s69, 1
          %s240 = smul.addr %s239, 256
          %s241 = scalar_lea.vmem [#allocation8], %s240
          %s243 = ssub.s32 4096, 4096
          %244 = vsyncadd %s238, %s243
          %s245 = smul.addr %s17, 32
          %s246 = smul.addr %s245, 128
          %s247 = scalar_lea.hbm %s2, %s246
          %s248 = sshll.u32 %s241, 4
          %s249 = int_to_ptr.vmem [resolvable:$true] %s248
          %254 = dma.hbm_to_vmem [thread:$0]  %s247, 4096, %s249, %s238, 128, 128, 8
        $region28: #{tpu_custom_call.1} parent=23 // pred_fallthru
          _
        // Predicated region
        $region29: #{tpu_custom_call.1} parent=23 // pred_check
          %p255 = pneg %p105
        $region30: #{tpu_custom_call.1} parent=23 // pred_check_branch
          %257 = sbr.rel (%p255) target = $region32
        $region31: #{tpu_custom_call.1} parent=23 // pred_region
          %s258 = sand.u32 %s17, 1
          %s259 = scalar_lea.sflag [#allocation4], %s258
          %s260 = sand.u32 %s95, 1
          %s261 = smul.addr %s260, 384
          %s262 = scalar_lea.vmem [#allocation9], %s261
          %s264 = ssub.s32 6144, 6144
          %265 = vsyncadd %s259, %s264
          %s266 = smul.addr %s17, 96
          %s267 = smul.addr %s266, 64
          %s268 = scalar_lea.hbm %s3, %s267
          %s269 = sshll.u32 %s262, 4
          %s270 = int_to_ptr.vmem [resolvable:$true] %s269
          %275 = dma.hbm_to_vmem [thread:$0]  %s268, 6144, %s270, %s259, 192, 192, 12
        $region32: #{tpu_custom_call.1} parent=23 // pred_fallthru
          _
        // Predicated region
        $region33: #{tpu_custom_call.1} parent=23 // pred_check
          %p276 = pneg %p131
        $region34: #{tpu_custom_call.1} parent=23 // pred_check_branch
          %278 = sbr.rel (%p276) target = $region36
        $region35: #{tpu_custom_call.1} parent=23 // pred_region
          %p279 = scmp.lt.s32.totalorder %s17, 1
          %s280 = scalar_select %p279, %s17, 1
          %s281 = smul.addr %s280, 3
          %s282 = scalar_lea.vmem %s4, %s281
        $region36: #{tpu_custom_call.1} parent=23 // pred_fallthru
          _
        // Predicated region
        $region37: #{tpu_custom_call.1} parent=23 // pred_check
          %p283 = pneg %p157
        $region38: #{tpu_custom_call.1} parent=23 // pred_check_branch
          %285 = sbr.rel (%p283) target = $region40
        $region39: #{tpu_custom_call.1} parent=23 // pred_region
          %s286 = sand.u32 %s17, 1
          %s287 = scalar_lea.sflag [#allocation4], %s286
          %s288 = sand.u32 %s147, 1
          %s289 = smul.addr %s288, 64
          %s290 = scalar_lea.vmem [#allocation10], %s289
          %s292 = ssub.s32 1024, 1024
          %293 = vsyncadd %s287, %s292
          %s294 = smul.addr %s17, 16
          %s295 = smul.addr %s294, 64
          %s296 = scalar_lea.hbm %s5, %s295
          %s297 = sshll.u32 %s290, 4
          %s298 = int_to_ptr.vmem [resolvable:$true] %s297
          %303 = dma.hbm_to_vmem [thread:$0]  %s296, 1024, %s298, %s287, 64, 64, 4
        $region40: #{tpu_custom_call.1} parent=23 // pred_fallthru
          _
      $region24: #{tpu_custom_call.1} parent=5 // pred_fallthru
        _
      %p304 = scmp.le.s32.totalorder 1, %s17
      %p305 = scmp.lt.s32.totalorder %s17, 3
      %p306 = pnand %p304, %p305
      %p307 = pneg %p306
      // Predicated region
      $region41: #{tpu_custom_call.1} parent=5 // pred_check
        _
      $region42: #{tpu_custom_call.1} parent=5 // pred_check_branch
        %309 = sbr.rel (%p306) target = $region44
      $region43: #{tpu_custom_call.1} parent=5 // pred_region
        %s310 = ssub.s32 %s17, 1
        // Predicated region
        $region45: #{tpu_custom_call.1} parent=43 // pred_check
          %p311 = pneg %p38
        $region46: #{tpu_custom_call.1} parent=43 // pred_check_branch
          %313 = sbr.rel (%p311) target = $region48
        $region47: #{tpu_custom_call.1} parent=43 // pred_region
          %314 = dma.done [#allocation4], 4096
        $region48: #{tpu_custom_call.1} parent=43 // pred_fallthru
          _
        // Predicated region
        $region49: #{tpu_custom_call.1} parent=43 // pred_check
          %p315 = pneg %p59
        $region50: #{tpu_custom_call.1} parent=43 // pred_check_branch
          %317 = sbr.rel (%p315) target = $region52
        $region51: #{tpu_custom_call.1} parent=43 // pred_region
          %318 = dma.done [#allocation7], 2048
        $region52: #{tpu_custom_call.1} parent=43 // pred_fallthru
          _
        %s319 = sand.u32 %s22, 1
        %s320 = scalar_lea.sflag [#allocation4], %s319
        %s321 = sand.u32 %s72, 1
        %s322 = smul.addr %s321, 256
        %s323 = scalar_lea.vmem [#allocation8], %s322
        // Predicated region
        $region53: #{tpu_custom_call.1} parent=43 // pred_check
          %p324 = pneg %p85
        $region54: #{tpu_custom_call.1} parent=43 // pred_check_branch
          %326 = sbr.rel (%p324) target = $region56
        $region55: #{tpu_custom_call.1} parent=43 // pred_region
          %327 = dma.done %s320, 4096
        $region56: #{tpu_custom_call.1} parent=43 // pred_fallthru
          _
        %s328 = sand.u32 %s22, 1
        %s329 = scalar_lea.sflag [#allocation4], %s328
        %s330 = sand.u32 %s98, 1
        %s331 = smul.addr %s330, 384
        %s332 = scalar_lea.vmem [#allocation9], %s331
        // Predicated region
        $region57: #{tpu_custom_call.1} parent=43 // pred_check
          %p333 = pneg %p111
        $region58: #{tpu_custom_call.1} parent=43 // pred_check_branch
          %335 = sbr.rel (%p333) target = $region60
        $region59: #{tpu_custom_call.1} parent=43 // pred_region
          %336 = dma.done %s329, 6144
        $region60: #{tpu_custom_call.1} parent=43 // pred_fallthru
          _
        %s337 = sand.u32 %s22, 1
        %s338 = scalar_lea.sflag [#allocation4], %s337
        %s339 = sand.u32 %s150, 1
        %s340 = smul.addr %s339, 64
        %s341 = scalar_lea.vmem [#allocation10], %s340
        // Predicated region
        $region61: #{tpu_custom_call.1} parent=43 // pred_check
          %p342 = pneg %p163
        $region62: #{tpu_custom_call.1} parent=43 // pred_check_branch
          %344 = sbr.rel (%p342) target = $region64
        $region63: #{tpu_custom_call.1} parent=43 // pred_region
          %345 = dma.done %s338, 1024
        $region64: #{tpu_custom_call.1} parent=43 // pred_fallthru
          _
        %p346 = pneg %p38
        %p347 = pneg %p35
        %p348 = pneg %p59
        %p349 = pneg %p56
        %s350 = sand.u32 %s22, 1
        %s351 = scalar_lea.sflag [#allocation4], %s350
        %s352 = sand.u32 %s72, 1
        %s353 = smul.addr %s352, 256
        %s354 = scalar_lea.vmem [#allocation8], %s353
        %p355 = pneg %p85
        %p356 = pneg %p82
        %s357 = sand.u32 %s22, 1
        %s358 = scalar_lea.sflag [#allocation4], %s357
        %s359 = sand.u32 %s98, 1
        %s360 = smul.addr %s359, 384
        %s361 = scalar_lea.vmem [#allocation9], %s360
        %p362 = pneg %p111
        %p363 = pneg %p108
        %p364 = scmp.lt.s32.totalorder %s22, 1
        %s365 = scalar_select %p364, %s22, 1
        %s366 = smul.addr %s365, 3
        %s367 = scalar_lea.vmem %s4, %s366
        %p368 = pneg %p137
        %p369 = pneg %p134
        %s370 = sand.u32 %s22, 1
        %s371 = scalar_lea.sflag [#allocation4], %s370
        %s372 = sand.u32 %s150, 1
        %s373 = smul.addr %s372, 64
        %s374 = scalar_lea.vmem [#allocation10], %s373
        %p375 = pneg %p163
        %p376 = pneg %p160
        %p377 = pneg %p189
        %p378 = pneg %p186
        %s379 = sand.u32 %s176, 1
        %s380 = scalar_lea.sflag [#allocation5], %s379
        %s381 = sand.u32 %s176, 1
        %s382 = smul.addr %s381, 256
        %s383 = scalar_lea.vmem [#allocation11], %s382
        %p384 = scmp.lt.s32.totalorder %s22, 1
        %s385 = scalar_select %p384, %s22, 1
        %s386 = smul.addr %s385, 3
        %s387 = scalar_lea.vmem %s4, %s386
        %v389 = vld [vmem:[%s323] sm:$0xff]
        %v390 = vld [vmem:[%s323 + $0x8] sm:$0xff]
        %v391 = vld [vmem:[%s323 + $0x10] sm:$0xff]
        %v392 = vld [vmem:[%s323 + $0x18] sm:$0xff]
        %v393 = vld [vmem:[%s323 + $0x20] sm:$0xff]
        %v394 = vld [vmem:[%s323 + $0x28] sm:$0xff]
        %v395 = vld [vmem:[%s323 + $0x30] sm:$0xff]
        %v396 = vld [vmem:[%s323 + $0x38] sm:$0xff]
        %v397 = vld [vmem:[%s323 + $0x40] sm:$0xff]
        %v398 = vld [vmem:[%s323 + $0x48] sm:$0xff]
        %v399 = vld [vmem:[%s323 + $0x50] sm:$0xff]
        %v400 = vld [vmem:[%s323 + $0x58] sm:$0xff]
        %v401 = vld [vmem:[%s323 + $0x60] sm:$0xff]
        %v402 = vld [vmem:[%s323 + $0x68] sm:$0xff]
        %v403 = vld [vmem:[%s323 + $0x70] sm:$0xff]
        %v404 = vld [vmem:[%s323 + $0x78] sm:$0xff]
        %v405 = vld [vmem:[%s323 + $0x80] sm:$0xff]
        %v406 = vld [vmem:[%s323 + $0x88] sm:$0xff]
        %v407 = vld [vmem:[%s323 + $0x90] sm:$0xff]
        %v408 = vld [vmem:[%s323 + $0x98] sm:$0xff]
        %v409 = vld [vmem:[%s323 + $0xa0] sm:$0xff]
        %v410 = vld [vmem:[%s323 + $0xa8] sm:$0xff]
        %v411 = vld [vmem:[%s323 + $0xb0] sm:$0xff]
        %v412 = vld [vmem:[%s323 + $0xb8] sm:$0xff]
        %v413 = vld [vmem:[%s323 + $0xc0] sm:$0xff]
        %v414 = vld [vmem:[%s323 + $0xc8] sm:$0xff]
        %v415 = vld [vmem:[%s323 + $0xd0] sm:$0xff]
        %v416 = vld [vmem:[%s323 + $0xd8] sm:$0xff]
        %v417 = vld [vmem:[%s323 + $0xe0] sm:$0xff]
        %v418 = vld [vmem:[%s323 + $0xe8] sm:$0xff]
        %v419 = vld [vmem:[%s323 + $0xf0] sm:$0xff]
        %v420 = vld [vmem:[%s323 + $0xf8] sm:$0xff]
        %v421 = vpack.c.bf16 %v390, %v389
        %v422 = vpack.c.bf16 %v392, %v391
        %v423 = vpack.c.bf16 %v394, %v393
        %v424 = vpack.c.bf16 %v396, %v395
        %v425 = vpack.c.bf16 %v398, %v397
        %v426 = vpack.c.bf16 %v400, %v399
        %v427 = vpack.c.bf16 %v402, %v401
        %v428 = vpack.c.bf16 %v404, %v403
        %v429 = vpack.c.bf16 %v406, %v405
        %v430 = vpack.c.bf16 %v408, %v407
        %v431 = vpack.c.bf16 %v410, %v409
        %v432 = vpack.c.bf16 %v412, %v411
        %v433 = vpack.c.bf16 %v414, %v413
        %v434 = vpack.c.bf16 %v416, %v415
        %v435 = vpack.c.bf16 %v418, %v417
        %v436 = vpack.c.bf16 %v420, %v419
        %437 = vst [vmem:[#allocation2 + $0x8] sm:$0xff] %v421
        %438 = vst [vmem:[#allocation2 + $0x18] sm:$0xff] %v422
        %439 = vst [vmem:[#allocation2 + $0x28] sm:$0xff] %v423
        %440 = vst [vmem:[#allocation2 + $0x38] sm:$0xff] %v424
        %441 = vst [vmem:[#allocation2 + $0x48] sm:$0xff] %v425
        %442 = vst [vmem:[#allocation2 + $0x58] sm:$0xff] %v426
        %443 = vst [vmem:[#allocation2 + $0x68] sm:$0xff] %v427
        %444 = vst [vmem:[#allocation2 + $0x78] sm:$0xff] %v428
        %445 = vst [vmem:[#allocation2 + $0x88] sm:$0xff] %v429
        %446 = vst [vmem:[#allocation2 + $0x98] sm:$0xff] %v430
        %447 = vst [vmem:[#allocation2 + $0xa8] sm:$0xff] %v431
        %448 = vst [vmem:[#allocation2 + $0xb8] sm:$0xff] %v432
        %449 = vst [vmem:[#allocation2 + $0xc8] sm:$0xff] %v433
        %450 = vst [vmem:[#allocation2 + $0xd8] sm:$0xff] %v434
        %451 = vst [vmem:[#allocation2 + $0xe8] sm:$0xff] %v435
        %452 = vst [vmem:[#allocation2 + $0xf8] sm:$0xff] %v436
        %p453 = scmp.eq.s32.totalorder %s22, 0
        // Predicated region
        $region65: #{tpu_custom_call.1} parent=43 // pred_check
          %p454 = pneg %p453
        $region66: #{tpu_custom_call.1} parent=43 // pred_check_branch
          %456 = sbr.rel (%p454) target = $region68
        $region67: #{tpu_custom_call.1} parent=43 // pred_region
          %v457 = vld [vmem:[#allocation6] sm:$0xf]
          %v458 = vld [vmem:[#allocation6 + $0x4] sm:$0xf]
          %v459 = vld [vmem:[#allocation6 + $0x8] sm:$0xf]
          %v460 = vld [vmem:[#allocation6 + $0xc] sm:$0xf]
          %v461 = vld [vmem:[#allocation6 + $0x10] sm:$0xf]
          %v462 = vld [vmem:[#allocation6 + $0x14] sm:$0xf]
          %v463 = vld [vmem:[#allocation6 + $0x18] sm:$0xf]
          %v464 = vld [vmem:[#allocation6 + $0x1c] sm:$0xf]
          %v465 = vld [vmem:[#allocation6 + $0x20] sm:$0xf]
          %v466 = vld [vmem:[#allocation6 + $0x24] sm:$0xf]
          %v467 = vld [vmem:[#allocation6 + $0x28] sm:$0xf]
          %v468 = vld [vmem:[#allocation6 + $0x2c] sm:$0xf]
          %v469 = vld [vmem:[#allocation6 + $0x30] sm:$0xf]
          %v470 = vld [vmem:[#allocation6 + $0x34] sm:$0xf]
          %v471 = vld [vmem:[#allocation6 + $0x38] sm:$0xf]
          %v472 = vld [vmem:[#allocation6 + $0x3c] sm:$0xf]
          %v473 = vld [vmem:[#allocation6 + $0x40] sm:$0xf]
          %v474 = vld [vmem:[#allocation6 + $0x44] sm:$0xf]
          %v475 = vld [vmem:[#allocation6 + $0x48] sm:$0xf]
          %v476 = vld [vmem:[#allocation6 + $0x4c] sm:$0xf]
          %v477 = vld [vmem:[#allocation6 + $0x50] sm:$0xf]
          %v478 = vld [vmem:[#allocation6 + $0x54] sm:$0xf]
          %v479 = vld [vmem:[#allocation6 + $0x58] sm:$0xf]
          %v480 = vld [vmem:[#allocation6 + $0x5c] sm:$0xf]
          %v481 = vld [vmem:[#allocation6 + $0x60] sm:$0xf]
          %v482 = vld [vmem:[#allocation6 + $0x64] sm:$0xf]
          %v483 = vld [vmem:[#allocation6 + $0x68] sm:$0xf]
          %v484 = vld [vmem:[#allocation6 + $0x6c] sm:$0xf]
          %v485 = vld [vmem:[#allocation6 + $0x70] sm:$0xf]
          %v486 = vld [vmem:[#allocation6 + $0x74] sm:$0xf]
          %v487 = vld [vmem:[#allocation6 + $0x78] sm:$0xf]
          %v488 = vld [vmem:[#allocation6 + $0x7c] sm:$0xf]
          %v521 = vunpack.c.l.b16 %v457
          %v522 = vunpack.c.l.b16 %v458
          %v523 = vunpack.c.l.b16 %v459
          %v524 = vunpack.c.l.b16 %v460
          %v525 = vunpack.c.l.b16 %v461
          %v526 = vunpack.c.l.b16 %v462
          %v527 = vunpack.c.l.b16 %v463
          %v528 = vunpack.c.l.b16 %v464
          %v529 = vunpack.c.l.b16 %v465
          %v530 = vunpack.c.l.b16 %v466
          %v531 = vunpack.c.l.b16 %v467
          %v532 = vunpack.c.l.b16 %v468
          %v533 = vunpack.c.l.b16 %v469
          %v534 = vunpack.c.l.b16 %v470
          %v535 = vunpack.c.l.b16 %v471
          %v536 = vunpack.c.l.b16 %v472
          %v537 = vunpack.c.l.b16 %v473
          %v538 = vunpack.c.l.b16 %v474
          %v539 = vunpack.c.l.b16 %v475
          %v540 = vunpack.c.l.b16 %v476
          %v541 = vunpack.c.l.b16 %v477
          %v542 = vunpack.c.l.b16 %v478
          %v543 = vunpack.c.l.b16 %v479
          %v544 = vunpack.c.l.b16 %v480
          %v545 = vunpack.c.l.b16 %v481
          %v546 = vunpack.c.l.b16 %v482
          %v547 = vunpack.c.l.b16 %v483
          %v548 = vunpack.c.l.b16 %v484
          %v549 = vunpack.c.l.b16 %v485
          %v550 = vunpack.c.l.b16 %v486
          %v551 = vunpack.c.l.b16 %v487
          %v552 = vunpack.c.l.b16 %v488
          %v553 = vpack.c.b16 %v522, %v521
          %v554 = vpack.c.b16 %v524, %v523
          %v555 = vpack.c.b16 %v526, %v525
          %v556 = vpack.c.b16 %v528, %v527
          %v557 = vpack.c.b16 %v530, %v529
          %v558 = vpack.c.b16 %v532, %v531
          %v559 = vpack.c.b16 %v534, %v533
          %v560 = vpack.c.b16 %v536, %v535
          %v561 = vpack.c.b16 %v538, %v537
          %v562 = vpack.c.b16 %v540, %v539
          %v563 = vpack.c.b16 %v542, %v541
          %v564 = vpack.c.b16 %v544, %v543
          %v565 = vpack.c.b16 %v546, %v545
          %v566 = vpack.c.b16 %v548, %v547
          %v567 = vpack.c.b16 %v550, %v549
          %v568 = vpack.c.b16 %v552, %v551
          %585 = vst [vmem:[#allocation2] sm:$0xff] %v553
          %586 = vst [vmem:[#allocation2 + $0x10] sm:$0xff] %v554
          %587 = vst [vmem:[#allocation2 + $0x20] sm:$0xff] %v555
          %588 = vst [vmem:[#allocation2 + $0x30] sm:$0xff] %v556
          %589 = vst [vmem:[#allocation2 + $0x40] sm:$0xff] %v557
          %590 = vst [vmem:[#allocation2 + $0x50] sm:$0xff] %v558
          %591 = vst [vmem:[#allocation2 + $0x60] sm:$0xff] %v559
          %592 = vst [vmem:[#allocation2 + $0x70] sm:$0xff] %v560
          %593 = vst [vmem:[#allocation2 + $0x80] sm:$0xff] %v561
          %594 = vst [vmem:[#allocation2 + $0x90] sm:$0xff] %v562
          %595 = vst [vmem:[#allocation2 + $0xa0] sm:$0xff] %v563
          %596 = vst [vmem:[#allocation2 + $0xb0] sm:$0xff] %v564
          %597 = vst [vmem:[#allocation2 + $0xc0] sm:$0xff] %v565
          %598 = vst [vmem:[#allocation2 + $0xd0] sm:$0xff] %v566
          %599 = vst [vmem:[#allocation2 + $0xe0] sm:$0xff] %v567
          %600 = vst [vmem:[#allocation2 + $0xf0] sm:$0xff] %v568
        $region68: #{tpu_custom_call.1} parent=43 // pred_fallthru
          _
        %v601 = vld [vmem:[#allocation3] sm:$0xff]
        %v602 = vld [vmem:[#allocation3 + $0x8] sm:$0xff]
        %v603 = vld [vmem:[#allocation3 + $0x10] sm:$0xff]
        %v604 = vld [vmem:[#allocation3 + $0x18] sm:$0xff]
        %v605 = vld [vmem:[#allocation3 + $0x20] sm:$0xff]
        %v606 = vld [vmem:[#allocation3 + $0x28] sm:$0xff]
        %v607 = vld [vmem:[#allocation3 + $0x30] sm:$0xff]
        %v608 = vld [vmem:[#allocation3 + $0x38] sm:$0xff]
        %v609 = vld [vmem:[#allocation3 + $0x40] sm:$0xff]
        %v610 = vld [vmem:[#allocation3 + $0x48] sm:$0xff]
        %v611 = vld [vmem:[#allocation3 + $0x50] sm:$0xff]
        %v612 = vld [vmem:[#allocation3 + $0x58] sm:$0xff]
        %v613 = vld [vmem:[#allocation3 + $0x60] sm:$0xff]
        %v614 = vld [vmem:[#allocation3 + $0x68] sm:$0xff]
        %v615 = vld [vmem:[#allocation3 + $0x70] sm:$0xff]
        %v616 = vld [vmem:[#allocation3 + $0x78] sm:$0xff]
        %v617 = vld [vmem:[#allocation3 + $0x80] sm:$0xff]
        %v618 = vld [vmem:[#allocation3 + $0x88] sm:$0xff]
        %v619 = vld [vmem:[#allocation3 + $0x90] sm:$0xff]
        %v620 = vld [vmem:[#allocation3 + $0x98] sm:$0xff]
        %v621 = vld [vmem:[#allocation3 + $0xa0] sm:$0xff]
        %v622 = vld [vmem:[#allocation3 + $0xa8] sm:$0xff]
        %v623 = vld [vmem:[#allocation3 + $0xb0] sm:$0xff]
        %v624 = vld [vmem:[#allocation3 + $0xb8] sm:$0xff]
        %v625 = vld [vmem:[#allocation3 + $0xc0] sm:$0xff]
        %v626 = vld [vmem:[#allocation3 + $0xc8] sm:$0xff]
        %v627 = vld [vmem:[#allocation3 + $0xd0] sm:$0xff]
        %v628 = vld [vmem:[#allocation3 + $0xd8] sm:$0xff]
        %v629 = vld [vmem:[#allocation3 + $0xe0] sm:$0xff]
        %v630 = vld [vmem:[#allocation3 + $0xe8] sm:$0xff]
        %v631 = vld [vmem:[#allocation3 + $0xf0] sm:$0xff]
        %v632 = vld [vmem:[#allocation3 + $0xf8] sm:$0xff]
        %v633 = vld [vmem:[#allocation2] sm:$0xff]
        %v634 = vld [vmem:[#allocation2 + $0x8] sm:$0xff]
        %v635 = vld [vmem:[#allocation2 + $0x10] sm:$0xff]
        %v636 = vld [vmem:[#allocation2 + $0x18] sm:$0xff]
        %v637 = vld [vmem:[#allocation2 + $0x20] sm:$0xff]
        %v638 = vld [vmem:[#allocation2 + $0x28] sm:$0xff]
        %v639 = vld [vmem:[#allocation2 + $0x30] sm:$0xff]
        %v640 = vld [vmem:[#allocation2 + $0x38] sm:$0xff]
        %v641 = vld [vmem:[#allocation2 + $0x40] sm:$0xff]
        %v642 = vld [vmem:[#allocation2 + $0x48] sm:$0xff]
        %v643 = vld [vmem:[#allocation2 + $0x50] sm:$0xff]
        %v644 = vld [vmem:[#allocation2 + $0x58] sm:$0xff]
        %v645 = vld [vmem:[#allocation2 + $0x60] sm:$0xff]
        %v646 = vld [vmem:[#allocation2 + $0x68] sm:$0xff]
        %v647 = vld [vmem:[#allocation2 + $0x70] sm:$0xff]
        %v648 = vld [vmem:[#allocation2 + $0x78] sm:$0xff]
        %v649 = vld [vmem:[#allocation2 + $0x80] sm:$0xff]
        %v650 = vld [vmem:[#allocation2 + $0x88] sm:$0xff]
        %v651 = vld [vmem:[#allocation2 + $0x90] sm:$0xff]
        %v652 = vld [vmem:[#allocation2 + $0x98] sm:$0xff]
        %v653 = vld [vmem:[#allocation2 + $0xa0] sm:$0xff]
        %v654 = vld [vmem:[#allocation2 + $0xa8] sm:$0xff]
        %v655 = vld [vmem:[#allocation2 + $0xb0] sm:$0xff]
        %v656 = vld [vmem:[#allocation2 + $0xb8] sm:$0xff]
        %v657 = vld [vmem:[#allocation2 + $0xc0] sm:$0xff]
        %v658 = vld [vmem:[#allocation2 + $0xc8] sm:$0xff]
        %v659 = vld [vmem:[#allocation2 + $0xd0] sm:$0xff]
        %v660 = vld [vmem:[#allocation2 + $0xd8] sm:$0xff]
        %v661 = vld [vmem:[#allocation2 + $0xe0] sm:$0xff]
        %v662 = vld [vmem:[#allocation2 + $0xe8] sm:$0xff]
        %v663 = vld [vmem:[#allocation2 + $0xf0] sm:$0xff]
        %v664 = vld [vmem:[#allocation2 + $0xf8] sm:$0xff]
        %v665 = vld [vmem:[%s323] sm:$0xff]
        %v666 = vld [vmem:[%s323 + $0x8] sm:$0xff]
        %v667 = vld [vmem:[%s323 + $0x10] sm:$0xff]
        %v668 = vld [vmem:[%s323 + $0x18] sm:$0xff]
        %v669 = vld [vmem:[%s323 + $0x20] sm:$0xff]
        %v670 = vld [vmem:[%s323 + $0x28] sm:$0xff]
        %v671 = vld [vmem:[%s323 + $0x30] sm:$0xff]
        %v672 = vld [vmem:[%s323 + $0x38] sm:$0xff]
        %v673 = vld [vmem:[%s323 + $0x40] sm:$0xff]
        %v674 = vld [vmem:[%s323 + $0x48] sm:$0xff]
        %v675 = vld [vmem:[%s323 + $0x50] sm:$0xff]
        %v676 = vld [vmem:[%s323 + $0x58] sm:$0xff]
        %v677 = vld [vmem:[%s323 + $0x60] sm:$0xff]
        %v678 = vld [vmem:[%s323 + $0x68] sm:$0xff]
        %v679 = vld [vmem:[%s323 + $0x70] sm:$0xff]
        %v680 = vld [vmem:[%s323 + $0x78] sm:$0xff]
        %v681 = vld [vmem:[%s323 + $0x80] sm:$0xff]
        %v682 = vld [vmem:[%s323 + $0x88] sm:$0xff]
        %v683 = vld [vmem:[%s323 + $0x90] sm:$0xff]
        %v684 = vld [vmem:[%s323 + $0x98] sm:$0xff]
        %v685 = vld [vmem:[%s323 + $0xa0] sm:$0xff]
        %v686 = vld [vmem:[%s323 + $0xa8] sm:$0xff]
        %v687 = vld [vmem:[%s323 + $0xb0] sm:$0xff]
        %v688 = vld [vmem:[%s323 + $0xb8] sm:$0xff]
        %v689 = vld [vmem:[%s323 + $0xc0] sm:$0xff]
        %v690 = vld [vmem:[%s323 + $0xc8] sm:$0xff]
        %v691 = vld [vmem:[%s323 + $0xd0] sm:$0xff]
        %v692 = vld [vmem:[%s323 + $0xd8] sm:$0xff]
        %v693 = vld [vmem:[%s323 + $0xe0] sm:$0xff]
        %v694 = vld [vmem:[%s323 + $0xe8] sm:$0xff]
        %v695 = vld [vmem:[%s323 + $0xf0] sm:$0xff]
        %v696 = vld [vmem:[%s323 + $0xf8] sm:$0xff]
        %v697 = vunpack.c.l.bf16 %v633
        %v698 = vunpack.c.l.bf16 %v634
        %v699 = vunpack.c.h.bf16 %v633
        %v700 = vunpack.c.h.bf16 %v634
        %v701 = vunpack.c.l.bf16 %v635
        %v702 = vunpack.c.l.bf16 %v636
        %v703 = vunpack.c.h.bf16 %v635
        %v704 = vunpack.c.h.bf16 %v636
        %v705 = vunpack.c.l.bf16 %v637
        %v706 = vunpack.c.l.bf16 %v638
        %v707 = vunpack.c.h.bf16 %v637
        %v708 = vunpack.c.h.bf16 %v638
        %v709 = vunpack.c.l.bf16 %v639
        %v710 = vunpack.c.l.bf16 %v640
        %v711 = vunpack.c.h.bf16 %v639
        %v712 = vunpack.c.h.bf16 %v640
        %v713 = vunpack.c.l.bf16 %v641
        %v714 = vunpack.c.l.bf16 %v642
        %v715 = vunpack.c.h.bf16 %v641
        %v716 = vunpack.c.h.bf16 %v642
        %v717 = vunpack.c.l.bf16 %v643
        %v718 = vunpack.c.l.bf16 %v644
        %v719 = vunpack.c.h.bf16 %v643
        %v720 = vunpack.c.h.bf16 %v644
        %v721 = vunpack.c.l.bf16 %v645
        %v722 = vunpack.c.l.bf16 %v646
        %v723 = vunpack.c.h.bf16 %v645
        %v724 = vunpack.c.h.bf16 %v646
        %v725 = vunpack.c.l.bf16 %v647
        %v726 = vunpack.c.l.bf16 %v648
        %v727 = vunpack.c.h.bf16 %v647
        %v728 = vunpack.c.h.bf16 %v648
        %v729 = vunpack.c.l.bf16 %v649
        %v730 = vunpack.c.l.bf16 %v650
        %v731 = vunpack.c.h.bf16 %v649
        %v732 = vunpack.c.h.bf16 %v650
        %v733 = vunpack.c.l.bf16 %v651
        %v734 = vunpack.c.l.bf16 %v652
        %v735 = vunpack.c.h.bf16 %v651
        %v736 = vunpack.c.h.bf16 %v652
        %v737 = vunpack.c.l.bf16 %v653
        %v738 = vunpack.c.l.bf16 %v654
        %v739 = vunpack.c.h.bf16 %v653
        %v740 = vunpack.c.h.bf16 %v654
        %v741 = vunpack.c.l.bf16 %v655
        %v742 = vunpack.c.l.bf16 %v656
        %v743 = vunpack.c.h.bf16 %v655
        %v744 = vunpack.c.h.bf16 %v656
        %v745 = vunpack.c.l.bf16 %v657
        %v746 = vunpack.c.l.bf16 %v658
        %v747 = vunpack.c.h.bf16 %v657
        %v748 = vunpack.c.h.bf16 %v658
        %v749 = vunpack.c.l.bf16 %v659
        %v750 = vunpack.c.l.bf16 %v660
        %v751 = vunpack.c.h.bf16 %v659
        %v752 = vunpack.c.h.bf16 %v660
        %v753 = vunpack.c.l.bf16 %v661
        %v754 = vunpack.c.l.bf16 %v662
        %v755 = vunpack.c.h.bf16 %v661
        %v756 = vunpack.c.h.bf16 %v662
        %v757 = vunpack.c.l.bf16 %v663
        %v758 = vunpack.c.l.bf16 %v664
        %v759 = vunpack.c.h.bf16 %v663
        %v760 = vunpack.c.h.bf16 %v664
        %v793 = vunpack.c.l.b16 %v601
        %v794 = vunpack.c.h.b16 %v601
        %v795 = vunpack.c.l.b16 %v602
        %v796 = vunpack.c.h.b16 %v602
        %v797 = vunpack.c.l.b16 %v603
        %v798 = vunpack.c.h.b16 %v603
        %v799 = vunpack.c.l.b16 %v604
        %v800 = vunpack.c.h.b16 %v604
        %v801 = vunpack.c.l.b16 %v605
        %v802 = vunpack.c.h.b16 %v605
        %v803 = vunpack.c.l.b16 %v606
        %v804 = vunpack.c.h.b16 %v606
        %v805 = vunpack.c.l.b16 %v607
        %v806 = vunpack.c.h.b16 %v607
        %v807 = vunpack.c.l.b16 %v608
        %v808 = vunpack.c.h.b16 %v608
        %v809 = vunpack.c.l.b16 %v609
        %v810 = vunpack.c.h.b16 %v609
        %v811 = vunpack.c.l.b16 %v610
        %v812 = vunpack.c.h.b16 %v610
        %v813 = vunpack.c.l.b16 %v611
        %v814 = vunpack.c.h.b16 %v611
        %v815 = vunpack.c.l.b16 %v612
        %v816 = vunpack.c.h.b16 %v612
        %v817 = vunpack.c.l.b16 %v613
        %v818 = vunpack.c.h.b16 %v613
        %v819 = vunpack.c.l.b16 %v614
        %v820 = vunpack.c.h.b16 %v614
        %v821 = vunpack.c.l.b16 %v615
        %v822 = vunpack.c.h.b16 %v615
        %v823 = vunpack.c.l.b16 %v616
        %v824 = vunpack.c.h.b16 %v616
        %v825 = vunpack.c.l.b16 %v617
        %v826 = vunpack.c.h.b16 %v617
        %v827 = vunpack.c.l.b16 %v618
        %v828 = vunpack.c.h.b16 %v618
        %v829 = vunpack.c.l.b16 %v619
        %v830 = vunpack.c.h.b16 %v619
        %v831 = vunpack.c.l.b16 %v620
        %v832 = vunpack.c.h.b16 %v620
        %v833 = vunpack.c.l.b16 %v621
        %v834 = vunpack.c.h.b16 %v621
        %v835 = vunpack.c.l.b16 %v622
        %v836 = vunpack.c.h.b16 %v622
        %v837 = vunpack.c.l.b16 %v623
        %v838 = vunpack.c.h.b16 %v623
        %v839 = vunpack.c.l.b16 %v624
        %v840 = vunpack.c.h.b16 %v624
        %v841 = vunpack.c.l.b16 %v625
        %v842 = vunpack.c.h.b16 %v625
        %v843 = vunpack.c.l.b16 %v626
        %v844 = vunpack.c.h.b16 %v626
        %v845 = vunpack.c.l.b16 %v627
        %v846 = vunpack.c.h.b16 %v627
        %v847 = vunpack.c.l.b16 %v628
        %v848 = vunpack.c.h.b16 %v628
        %v849 = vunpack.c.l.b16 %v629
        %v850 = vunpack.c.h.b16 %v629
        %v851 = vunpack.c.l.b16 %v630
        %v852 = vunpack.c.h.b16 %v630
        %v853 = vunpack.c.l.b16 %v631
        %v854 = vunpack.c.h.b16 %v631
        %v855 = vunpack.c.l.b16 %v632
        %v856 = vunpack.c.h.b16 %v632
        %v857 = vpack.c.b16 %v795, %v793
        %v858 = vpack.c.b16 %v796, %v794
        %v859 = vpack.c.b16 %v799, %v797
        %v860 = vpack.c.b16 %v800, %v798
        %v861 = vpack.c.b16 %v803, %v801
        %v862 = vpack.c.b16 %v804, %v802
        %v863 = vpack.c.b16 %v807, %v805
        %v864 = vpack.c.b16 %v808, %v806
        %v865 = vpack.c.b16 %v811, %v809
        %v866 = vpack.c.b16 %v812, %v810
        %v867 = vpack.c.b16 %v815, %v813
        %v868 = vpack.c.b16 %v816, %v814
        %v869 = vpack.c.b16 %v819, %v817
        %v870 = vpack.c.b16 %v820, %v818
        %v871 = vpack.c.b16 %v823, %v821
        %v872 = vpack.c.b16 %v824, %v822
        %v873 = vpack.c.b16 %v827, %v825
        %v874 = vpack.c.b16 %v828, %v826
        %v875 = vpack.c.b16 %v831, %v829
        %v876 = vpack.c.b16 %v832, %v830
        %v877 = vpack.c.b16 %v835, %v833
        %v878 = vpack.c.b16 %v836, %v834
        %v879 = vpack.c.b16 %v839, %v837
        %v880 = vpack.c.b16 %v840, %v838
        %v881 = vpack.c.b16 %v843, %v841
        %v882 = vpack.c.b16 %v844, %v842
        %v883 = vpack.c.b16 %v847, %v845
        %v884 = vpack.c.b16 %v848, %v846
        %v885 = vpack.c.b16 %v851, %v849
        %v886 = vpack.c.b16 %v852, %v850
        %v887 = vpack.c.b16 %v855, %v853
        %v888 = vpack.c.b16 %v856, %v854
        %921 = vmatprep.subr.bf16.mxu0 %v634
        %922 = vmatpush1.bf16.msra.mxu0 %v633
        %923 = vmatprep.subr.bf16.mxu0 %v636
        %924 = vmatpush1.bf16.msra.mxu0 %v635
        %925 = vmatprep.subr.bf16.mxu0 %v638
        %926 = vmatpush1.bf16.msra.mxu0 %v637
        %927 = vmatprep.subr.bf16.mxu0 %v640
        %928 = vmatpush1.bf16.msra.mxu0 %v639
        %929 = vmatprep.subr.bf16.mxu0 %v642
        %930 = vmatpush1.bf16.msra.mxu0 %v641
        %931 = vmatprep.subr.bf16.mxu0 %v644
        %932 = vmatpush1.bf16.msra.mxu0 %v643
        %933 = vmatprep.subr.bf16.mxu0 %v646
        %934 = vmatpush1.bf16.msra.mxu0 %v645
        %935 = vmatprep.subr.bf16.mxu0 %v648
        %936 = vmatpush1.bf16.msra.mxu0 %v647
        %937 = vmatprep.subr.bf16.mxu0 %v650
        %938 = vmatpush1.bf16.msra.mxu0 %v649
        %939 = vmatprep.subr.bf16.mxu0 %v652
        %940 = vmatpush1.bf16.msra.mxu0 %v651
        %941 = vmatprep.subr.bf16.mxu0 %v654
        %942 = vmatpush1.bf16.msra.mxu0 %v653
        %943 = vmatprep.subr.bf16.mxu0 %v656
        %944 = vmatpush1.bf16.msra.mxu0 %v655
        %945 = vmatprep.subr.bf16.mxu0 %v658
        %946 = vmatpush1.bf16.msra.mxu0 %v657
        %947 = vmatprep.subr.bf16.mxu0 %v660
        %948 = vmatpush1.bf16.msra.mxu0 %v659
        %949 = vmatprep.subr.bf16.mxu0 %v662
        %950 = vmatpush1.bf16.msra.mxu0 %v661
        %951 = vmatprep.subr.bf16.mxu0 %v664
        %952 = vmatpush1.bf16.msra.mxu0 %v663
        %953 = vmatprep.mubr.bf16.mxu0 %v858
        %954 = vmatmul.mubr.bf16.gmra.mrb[0].mxu0 %v857
        %v955 = vpop.f32.mrb[0].mxu0
        %v956 = vadd.f32 0.0, %v955
        %v957 = vpop.f32.mrb[0].mxu0
        %v958 = vadd.f32 0.0, %v957
        %v959 = vpop.f32.mrb[0].mxu0
        %v960 = vadd.f32 0.0, %v959
        %v961 = vpop.f32.mrb[0].mxu0
        %v962 = vadd.f32 0.0, %v961
        %963 = vmatprep.mubr.bf16.mxu0 %v860
        %964 = vmatmul.mubr.bf16.gmra.mrb[0].mxu0 %v859
        %v965 = vpop.f32.mrb[0].mxu0
        %v966 = vadd.f32 0.0, %v965
        %v967 = vpop.f32.mrb[0].mxu0
        %v968 = vadd.f32 0.0, %v967
        %v969 = vpop.f32.mrb[0].mxu0
        %v970 = vadd.f32 0.0, %v969
        %v971 = vpop.f32.mrb[0].mxu0
        %v972 = vadd.f32 0.0, %v971
        %973 = vmatprep.mubr.bf16.mxu0 %v862
        %974 = vmatmul.mubr.bf16.gmra.mrb[0].mxu0 %v861
        %v975 = vpop.f32.mrb[0].mxu0
        %v976 = vadd.f32 0.0, %v975
        %v977 = vpop.f32.mrb[0].mxu0
        %v978 = vadd.f32 0.0, %v977
        %v979 = vpop.f32.mrb[0].mxu0
        %v980 = vadd.f32 0.0, %v979
        %v981 = vpop.f32.mrb[0].mxu0
        %v982 = vadd.f32 0.0, %v981
        %983 = vmatprep.mubr.bf16.mxu0 %v864
        %984 = vmatmul.mubr.bf16.gmra.mrb[0].mxu0 %v863
        %v985 = vpop.f32.mrb[0].mxu0
        %v986 = vadd.f32 0.0, %v985
        %v987 = vpop.f32.mrb[0].mxu0
        %v988 = vadd.f32 0.0, %v987
        %v989 = vpop.f32.mrb[0].mxu0
        %v990 = vadd.f32 0.0, %v989
        %v991 = vpop.f32.mrb[0].mxu0
        %v992 = vadd.f32 0.0, %v991
        %993 = vmatprep.mubr.bf16.mxu0 %v866
        %994 = vmatmul.mubr.bf16.gmra.mrb[0].mxu0 %v865
        %v995 = vpop.f32.mrb[0].mxu0
        %v996 = vadd.f32 0.0, %v995
        %v997 = vpop.f32.mrb[0].mxu0
        %v998 = vadd.f32 0.0, %v997
        %v999 = vpop.f32.mrb[0].mxu0
        %v1000 = vadd.f32 0.0, %v999
        %v1001 = vpop.f32.mrb[0].mxu0
        %v1002 = vadd.f32 0.0, %v1001
        %1003 = vmatprep.mubr.bf16.mxu0 %v868
        %1004 = vmatmul.mubr.bf16.gmra.mrb[0].mxu0 %v867
        %v1005 = vpop.f32.mrb[0].mxu0
        %v1006 = vadd.f32 0.0, %v1005
        %v1007 = vpop.f32.mrb[0].mxu0
        %v1008 = vadd.f32 0.0, %v1007
        %v1009 = vpop.f32.mrb[0].mxu0
        %v1010 = vadd.f32 0.0, %v1009
        %v1011 = vpop.f32.mrb[0].mxu0
        %v1012 = vadd.f32 0.0, %v1011
        %1013 = vmatprep.mubr.bf16.mxu0 %v870
        %1014 = vmatmul.mubr.bf16.gmra.mrb[0].mxu0 %v869
        %v1015 = vpop.f32.mrb[0].mxu0
        %v1016 = vadd.f32 0.0, %v1015
        %v1017 = vpop.f32.mrb[0].mxu0
        %v1018 = vadd.f32 0.0, %v1017
        %v1019 = vpop.f32.mrb[0].mxu0
        %v1020 = vadd.f32 0.0, %v1019
        %v1021 = vpop.f32.mrb[0].mxu0
        %v1022 = vadd.f32 0.0, %v1021
        %1023 = vmatprep.mubr.bf16.mxu0 %v872
        %1024 = vmatmul.mubr.bf16.gmra.mrb[0].mxu0 %v871
        %v1025 = vpop.f32.mrb[0].mxu0
        %v1026 = vadd.f32 0.0, %v1025
        %v1027 = vpop.f32.mrb[0].mxu0
        %v1028 = vadd.f32 0.0, %v1027
        %v1029 = vpop.f32.mrb[0].mxu0
        %v1030 = vadd.f32 0.0, %v1029
        %v1031 = vpop.f32.mrb[0].mxu0
        %v1032 = vadd.f32 0.0, %v1031
        %1033 = vmatprep.mubr.bf16.mxu0 %v874
        %1034 = vmatmul.mubr.bf16.gmra.mrb[0].mxu0 %v873
        %v1035 = vpop.f32.mrb[0].mxu0
        %v1036 = vadd.f32 0.0, %v1035
        %v1037 = vpop.f32.mrb[0].mxu0
        %v1038 = vadd.f32 0.0, %v1037
        %v1039 = vpop.f32.mrb[0].mxu0
        %v1040 = vadd.f32 0.0, %v1039
        %v1041 = vpop.f32.mrb[0].mxu0
        %v1042 = vadd.f32 0.0, %v1041
        %1043 = vmatprep.mubr.bf16.mxu0 %v876
        %1044 = vmatmul.mubr.bf16.gmra.mrb[0].mxu0 %v875
        %v1045 = vpop.f32.mrb[0].mxu0
        %v1046 = vadd.f32 0.0, %v1045
        %v1047 = vpop.f32.mrb[0].mxu0
        %v1048 = vadd.f32 0.0, %v1047
        %v1049 = vpop.f32.mrb[0].mxu0
        %v1050 = vadd.f32 0.0, %v1049
        %v1051 = vpop.f32.mrb[0].mxu0
        %v1052 = vadd.f32 0.0, %v1051
        %1053 = vmatprep.mubr.bf16.mxu0 %v878
        %1054 = vmatmul.mubr.bf16.gmra.mrb[0].mxu0 %v877
        %v1055 = vpop.f32.mrb[0].mxu0
        %v1056 = vadd.f32 0.0, %v1055
        %v1057 = vpop.f32.mrb[0].mxu0
        %v1058 = vadd.f32 0.0, %v1057
        %v1059 = vpop.f32.mrb[0].mxu0
        %v1060 = vadd.f32 0.0, %v1059
        %v1061 = vpop.f32.mrb[0].mxu0
        %v1062 = vadd.f32 0.0, %v1061
        %1063 = vmatprep.mubr.bf16.mxu0 %v880
        %1064 = vmatmul.mubr.bf16.gmra.mrb[0].mxu0 %v879
        %v1065 = vpop.f32.mrb[0].mxu0
        %v1066 = vadd.f32 0.0, %v1065
        %v1067 = vpop.f32.mrb[0].mxu0
        %v1068 = vadd.f32 0.0, %v1067
        %v1069 = vpop.f32.mrb[0].mxu0
        %v1070 = vadd.f32 0.0, %v1069
        %v1071 = vpop.f32.mrb[0].mxu0
        %v1072 = vadd.f32 0.0, %v1071
        %1073 = vmatprep.mubr.bf16.mxu0 %v882
        %1074 = vmatmul.mubr.bf16.gmra.mrb[0].mxu0 %v881
        %v1075 = vpop.f32.mrb[0].mxu0
        %v1076 = vadd.f32 0.0, %v1075
        %v1077 = vpop.f32.mrb[0].mxu0
        %v1078 = vadd.f32 0.0, %v1077
        %v1079 = vpop.f32.mrb[0].mxu0
        %v1080 = vadd.f32 0.0, %v1079
        %v1081 = vpop.f32.mrb[0].mxu0
        %v1082 = vadd.f32 0.0, %v1081
        %1083 = vmatprep.mubr.bf16.mxu0 %v884
        %1084 = vmatmul.mubr.bf16.gmra.mrb[0].mxu0 %v883
        %v1085 = vpop.f32.mrb[0].mxu0
        %v1086 = vadd.f32 0.0, %v1085
        %v1087 = vpop.f32.mrb[0].mxu0
        %v1088 = vadd.f32 0.0, %v1087
        %v1089 = vpop.f32.mrb[0].mxu0
        %v1090 = vadd.f32 0.0, %v1089
        %v1091 = vpop.f32.mrb[0].mxu0
        %v1092 = vadd.f32 0.0, %v1091
        %1093 = vmatprep.mubr.bf16.mxu0 %v886
        %1094 = vmatmul.mubr.bf16.gmra.mrb[0].mxu0 %v885
        %v1095 = vpop.f32.mrb[0].mxu0
        %v1096 = vadd.f32 0.0, %v1095
        %v1097 = vpop.f32.mrb[0].mxu0
        %v1098 = vadd.f32 0.0, %v1097
        %v1099 = vpop.f32.mrb[0].mxu0
        %v1100 = vadd.f32 0.0, %v1099
        %v1101 = vpop.f32.mrb[0].mxu0
        %v1102 = vadd.f32 0.0, %v1101
        %1103 = vmatprep.mubr.bf16.mxu0 %v888
        %1104 = vmatmul.mubr.bf16.gmra.mrb[0].mxu0 %v887
        %v1105 = vpop.f32.mrb[0].mxu0
        %v1106 = vadd.f32 0.0, %v1105
        %v1107 = vpop.f32.mrb[0].mxu0
        %v1108 = vadd.f32 0.0, %v1107
        %v1109 = vpop.f32.mrb[0].mxu0
        %v1110 = vadd.f32 0.0, %v1109
        %v1111 = vpop.f32.mrb[0].mxu0
        %v1112 = vadd.f32 0.0, %v1111
        %1113 = vdwg.mxu0
        %v1114 = vadd.f32 %v697, %v956
        %v1115 = vadd.f32 %v698, %v958
        %v1116 = vadd.f32 %v699, %v960
        %v1117 = vadd.f32 %v700, %v962
        %v1118 = vadd.f32 %v701, %v966
        %v1119 = vadd.f32 %v702, %v968
        %v1120 = vadd.f32 %v703, %v970
        %v1121 = vadd.f32 %v704, %v972
        %v1122 = vadd.f32 %v705, %v976
        %v1123 = vadd.f32 %v706, %v978
        %v1124 = vadd.f32 %v707, %v980
        %v1125 = vadd.f32 %v708, %v982
        %v1126 = vadd.f32 %v709, %v986
        %v1127 = vadd.f32 %v710, %v988
        %v1128 = vadd.f32 %v711, %v990
        %v1129 = vadd.f32 %v712, %v992
        %v1130 = vadd.f32 %v713, %v996
        %v1131 = vadd.f32 %v714, %v998
        %v1132 = vadd.f32 %v715, %v1000
        %v1133 = vadd.f32 %v716, %v1002
        %v1134 = vadd.f32 %v717, %v1006
        %v1135 = vadd.f32 %v718, %v1008
        %v1136 = vadd.f32 %v719, %v1010
        %v1137 = vadd.f32 %v720, %v1012
        %v1138 = vadd.f32 %v721, %v1016
        %v1139 = vadd.f32 %v722, %v1018
        %v1140 = vadd.f32 %v723, %v1020
        %v1141 = vadd.f32 %v724, %v1022
        %v1142 = vadd.f32 %v725, %v1026
        %v1143 = vadd.f32 %v726, %v1028
        %v1144 = vadd.f32 %v727, %v1030
        %v1145 = vadd.f32 %v728, %v1032
        %v1146 = vadd.f32 %v729, %v1036
        %v1147 = vadd.f32 %v730, %v1038
        %v1148 = vadd.f32 %v731, %v1040
        %v1149 = vadd.f32 %v732, %v1042
        %v1150 = vadd.f32 %v733, %v1046
        %v1151 = vadd.f32 %v734, %v1048
        %v1152 = vadd.f32 %v735, %v1050
        %v1153 = vadd.f32 %v736, %v1052
        %v1154 = vadd.f32 %v737, %v1056
        %v1155 = vadd.f32 %v738, %v1058
        %v1156 = vadd.f32 %v739, %v1060
        %v1157 = vadd.f32 %v740, %v1062
        %v1158 = vadd.f32 %v741, %v1066
        %v1159 = vadd.f32 %v742, %v1068
        %v1160 = vadd.f32 %v743, %v1070
        %v1161 = vadd.f32 %v744, %v1072
        %v1162 = vadd.f32 %v745, %v1076
        %v1163 = vadd.f32 %v746, %v1078
        %v1164 = vadd.f32 %v747, %v1080
        %v1165 = vadd.f32 %v748, %v1082
        %v1166 = vadd.f32 %v749, %v1086
        %v1167 = vadd.f32 %v750, %v1088
        %v1168 = vadd.f32 %v751, %v1090
        %v1169 = vadd.f32 %v752, %v1092
        %v1170 = vadd.f32 %v753, %v1096
        %v1171 = vadd.f32 %v754, %v1098
        %v1172 = vadd.f32 %v755, %v1100
        %v1173 = vadd.f32 %v756, %v1102
        %v1174 = vadd.f32 %v757, %v1106
        %v1175 = vadd.f32 %v758, %v1108
        %v1176 = vadd.f32 %v759, %v1110
        %v1177 = vadd.f32 %v760, %v1112
        %v1178 = vpack.c.bf16 %v1116, %v1114
        %v1179 = vpack.c.bf16 %v1117, %v1115
        %v1180 = vpack.c.bf16 %v1120, %v1118
        %v1181 = vpack.c.bf16 %v1121, %v1119
        %v1182 = vpack.c.bf16 %v1124, %v1122
        %v1183 = vpack.c.bf16 %v1125, %v1123
        %v1184 = vpack.c.bf16 %v1128, %v1126
        %v1185 = vpack.c.bf16 %v1129, %v1127
        %v1186 = vpack.c.bf16 %v1132, %v1130
        %v1187 = vpack.c.bf16 %v1133, %v1131
        %v1188 = vpack.c.bf16 %v1136, %v1134
        %v1189 = vpack.c.bf16 %v1137, %v1135
        %v1190 = vpack.c.bf16 %v1140, %v1138
        %v1191 = vpack.c.bf16 %v1141, %v1139
        %v1192 = vpack.c.bf16 %v1144, %v1142
        %v1193 = vpack.c.bf16 %v1145, %v1143
        %v1194 = vpack.c.bf16 %v1148, %v1146
        %v1195 = vpack.c.bf16 %v1149, %v1147
        %v1196 = vpack.c.bf16 %v1152, %v1150
        %v1197 = vpack.c.bf16 %v1153, %v1151
        %v1198 = vpack.c.bf16 %v1156, %v1154
        %v1199 = vpack.c.bf16 %v1157, %v1155
        %v1200 = vpack.c.bf16 %v1160, %v1158
        %v1201 = vpack.c.bf16 %v1161, %v1159
        %v1202 = vpack.c.bf16 %v1164, %v1162
        %v1203 = vpack.c.bf16 %v1165, %v1163
        %v1204 = vpack.c.bf16 %v1168, %v1166
        %v1205 = vpack.c.bf16 %v1169, %v1167
        %v1206 = vpack.c.bf16 %v1172, %v1170
        %v1207 = vpack.c.bf16 %v1173, %v1171
        %v1208 = vpack.c.bf16 %v1176, %v1174
        %v1209 = vpack.c.bf16 %v1177, %v1175
        %v1210 = vld [vmem:[%s332] sm:$0xff]
        %v1211 = vld [vmem:[%s332 + $0x8] sm:$0xf]
        %v1212 = vld [vmem:[%s332 + $0xc] sm:$0xff]
        %v1213 = vld [vmem:[%s332 + $0x14] sm:$0xf]
        %v1214 = vld [vmem:[%s332 + $0x18] sm:$0xff]
        %v1215 = vld [vmem:[%s332 + $0x20] sm:$0xf]
        %v1216 = vld [vmem:[%s332 + $0x24] sm:$0xff]
        %v1217 = vld [vmem:[%s332 + $0x2c] sm:$0xf]
        %v1218 = vld [vmem:[%s332 + $0x30] sm:$0xff]
        %v1219 = vld [vmem:[%s332 + $0x38] sm:$0xf]
        %v1220 = vld [vmem:[%s332 + $0x3c] sm:$0xff]
        %v1221 = vld [vmem:[%s332 + $0x44] sm:$0xf]
        %v1222 = vld [vmem:[%s332 + $0x48] sm:$0xff]
        %v1223 = vld [vmem:[%s332 + $0x50] sm:$0xf]
        %v1224 = vld [vmem:[%s332 + $0x54] sm:$0xff]
        %v1225 = vld [vmem:[%s332 + $0x5c] sm:$0xf]
        %v1226 = vld [vmem:[%s332 + $0x60] sm:$0xff]
        %v1227 = vld [vmem:[%s332 + $0x68] sm:$0xf]
        %v1228 = vld [vmem:[%s332 + $0x6c] sm:$0xff]
        %v1229 = vld [vmem:[%s332 + $0x74] sm:$0xf]
        %v1230 = vld [vmem:[%s332 + $0x78] sm:$0xff]
        %v1231 = vld [vmem:[%s332 + $0x80] sm:$0xf]
        %v1232 = vld [vmem:[%s332 + $0x84] sm:$0xff]
        %v1233 = vld [vmem:[%s332 + $0x8c] sm:$0xf]
        %v1234 = vld [vmem:[%s332 + $0x90] sm:$0xff]
        %v1235 = vld [vmem:[%s332 + $0x98] sm:$0xf]
        %v1236 = vld [vmem:[%s332 + $0x9c] sm:$0xff]
        %v1237 = vld [vmem:[%s332 + $0xa4] sm:$0xf]
        %v1238 = vld [vmem:[%s332 + $0xa8] sm:$0xff]
        %v1239 = vld [vmem:[%s332 + $0xb0] sm:$0xf]
        %v1240 = vld [vmem:[%s332 + $0xb4] sm:$0xff]
        %v1241 = vld [vmem:[%s332 + $0xbc] sm:$0xf]
        %v1242 = vld [vmem:[%s332 + $0xc0] sm:$0xff]
        %v1243 = vld [vmem:[%s332 + $0xc8] sm:$0xf]
        %v1244 = vld [vmem:[%s332 + $0xcc] sm:$0xff]
        %v1245 = vld [vmem:[%s332 + $0xd4] sm:$0xf]
        %v1246 = vld [vmem:[%s332 + $0xd8] sm:$0xff]
        %v1247 = vld [vmem:[%s332 + $0xe0] sm:$0xf]
        %v1248 = vld [vmem:[%s332 + $0xe4] sm:$0xff]
        %v1249 = vld [vmem:[%s332 + $0xec] sm:$0xf]
        %v1250 = vld [vmem:[%s332 + $0xf0] sm:$0xff]
        %v1251 = vld [vmem:[%s332 + $0xf8] sm:$0xf]
        %v1252 = vld [vmem:[%s332 + $0xfc] sm:$0xff]
        %v1253 = vld [vmem:[%s332 + $0x104] sm:$0xf]
        %v1254 = vld [vmem:[%s332 + $0x108] sm:$0xff]
        %v1255 = vld [vmem:[%s332 + $0x110] sm:$0xf]
        %v1256 = vld [vmem:[%s332 + $0x114] sm:$0xff]
        %v1257 = vld [vmem:[%s332 + $0x11c] sm:$0xf]
        %v1258 = vld [vmem:[%s332 + $0x120] sm:$0xff]
        %v1259 = vld [vmem:[%s332 + $0x128] sm:$0xf]
        %v1260 = vld [vmem:[%s332 + $0x12c] sm:$0xff]
        %v1261 = vld [vmem:[%s332 + $0x134] sm:$0xf]
        %v1262 = vld [vmem:[%s332 + $0x138] sm:$0xff]
        %v1263 = vld [vmem:[%s332 + $0x140] sm:$0xf]
        %v1264 = vld [vmem:[%s332 + $0x144] sm:$0xff]
        %v1265 = vld [vmem:[%s332 + $0x14c] sm:$0xf]
        %v1266 = vld [vmem:[%s332 + $0x150] sm:$0xff]
        %v1267 = vld [vmem:[%s332 + $0x158] sm:$0xf]
        %v1268 = vld [vmem:[%s332 + $0x15c] sm:$0xff]
        %v1269 = vld [vmem:[%s332 + $0x164] sm:$0xf]
        %v1270 = vld [vmem:[%s332 + $0x168] sm:$0xff]
        %v1271 = vld [vmem:[%s332 + $0x170] sm:$0xf]
        %v1272 = vld [vmem:[%s332 + $0x174] sm:$0xff]
        %v1273 = vld [vmem:[%s332 + $0x17c] sm:$0xf]
        %v1274 = vld [vmem:[%s387] sm:$0x7]
        %v1276 = vlaneseq
        %v1277 = vshrl.u32 %v1276, 7
        %v1278 = vsub.s32 0, %v1277
        %v1279 = vrot.slane %v1274, %v1278
        %v1280 = vlaneseq
        %v1281 = vshrl.u32 %v1280, 7
        %v1282 = vsub.s32 1, %v1281
        %v1283 = vrot.slane %v1274, %v1282
        %v1284 = vlaneseq
        %v1285 = vshrl.u32 %v1284, 7
        %v1286 = vsub.s32 2, %v1285
        %v1287 = vrot.slane %v1274, %v1286
        %v1355 = vunpack.c.l.b16 %v1210
        %v1356 = vunpack.c.h.b16 %v1210
        %v1357 = vunpack.c.l.b16 %v1211
        %v1358 = vunpack.c.l.b16 %v1212
        %v1359 = vunpack.c.h.b16 %v1212
        %v1360 = vunpack.c.l.b16 %v1213
        %v1361 = vunpack.c.l.b16 %v1214
        %v1362 = vunpack.c.h.b16 %v1214
        %v1363 = vunpack.c.l.b16 %v1215
        %v1364 = vunpack.c.l.b16 %v1216
        %v1365 = vunpack.c.h.b16 %v1216
        %v1366 = vunpack.c.l.b16 %v1217
        %v1367 = vunpack.c.l.b16 %v1218
        %v1368 = vunpack.c.h.b16 %v1218
        %v1369 = vunpack.c.l.b16 %v1219
        %v1370 = vunpack.c.l.b16 %v1220
        %v1371 = vunpack.c.h.b16 %v1220
        %v1372 = vunpack.c.l.b16 %v1221
        %v1373 = vunpack.c.l.b16 %v1222
        %v1374 = vunpack.c.h.b16 %v1222
        %v1375 = vunpack.c.l.b16 %v1223
        %v1376 = vunpack.c.l.b16 %v1224
        %v1377 = vunpack.c.h.b16 %v1224
        %v1378 = vunpack.c.l.b16 %v1225
        %v1379 = vunpack.c.l.b16 %v1226
        %v1380 = vunpack.c.h.b16 %v1226
        %v1381 = vunpack.c.l.b16 %v1227
        %v1382 = vunpack.c.l.b16 %v1228
        %v1383 = vunpack.c.h.b16 %v1228
        %v1384 = vunpack.c.l.b16 %v1229
        %v1385 = vunpack.c.l.b16 %v1230
        %v1386 = vunpack.c.h.b16 %v1230
        %v1387 = vunpack.c.l.b16 %v1231
        %v1388 = vunpack.c.l.b16 %v1232
        %v1389 = vunpack.c.h.b16 %v1232
        %v1390 = vunpack.c.l.b16 %v1233
        %v1391 = vunpack.c.l.b16 %v1234
        %v1392 = vunpack.c.h.b16 %v1234
        %v1393 = vunpack.c.l.b16 %v1235
        %v1394 = vunpack.c.l.b16 %v1236
        %v1395 = vunpack.c.h.b16 %v1236
        %v1396 = vunpack.c.l.b16 %v1237
        %v1397 = vunpack.c.l.b16 %v1238
        %v1398 = vunpack.c.h.b16 %v1238
        %v1399 = vunpack.c.l.b16 %v1239
        %v1400 = vunpack.c.l.b16 %v1240
        %v1401 = vunpack.c.h.b16 %v1240
        %v1402 = vunpack.c.l.b16 %v1241
        %v1403 = vunpack.c.l.b16 %v1242
        %v1404 = vunpack.c.h.b16 %v1242
        %v1405 = vunpack.c.l.b16 %v1243
        %v1406 = vunpack.c.l.b16 %v1244
        %v1407 = vunpack.c.h.b16 %v1244
        %v1408 = vunpack.c.l.b16 %v1245
        %v1409 = vunpack.c.l.b16 %v1246
        %v1410 = vunpack.c.h.b16 %v1246
        %v1411 = vunpack.c.l.b16 %v1247
        %v1412 = vunpack.c.l.b16 %v1248
        %v1413 = vunpack.c.h.b16 %v1248
        %v1414 = vunpack.c.l.b16 %v1249
        %v1415 = vunpack.c.l.b16 %v1250
        %v1416 = vunpack.c.h.b16 %v1250
        %v1417 = vunpack.c.l.b16 %v1251
        %v1418 = vunpack.c.l.b16 %v1252
        %v1419 = vunpack.c.h.b16 %v1252
        %v1420 = vunpack.c.l.b16 %v1253
        %v1421 = vunpack.c.l.b16 %v1254
        %v1422 = vunpack.c.h.b16 %v1254
        %v1423 = vunpack.c.l.b16 %v1255
        %v1424 = vunpack.c.l.b16 %v1256
        %v1425 = vunpack.c.h.b16 %v1256
        %v1426 = vunpack.c.l.b16 %v1257
        %v1427 = vunpack.c.l.b16 %v1258
        %v1428 = vunpack.c.h.b16 %v1258
        %v1429 = vunpack.c.l.b16 %v1259
        %v1430 = vunpack.c.l.b16 %v1260
        %v1431 = vunpack.c.h.b16 %v1260
        %v1432 = vunpack.c.l.b16 %v1261
        %v1433 = vunpack.c.l.b16 %v1262
        %v1434 = vunpack.c.h.b16 %v1262
        %v1435 = vunpack.c.l.b16 %v1263
        %v1436 = vunpack.c.l.b16 %v1264
        %v1437 = vunpack.c.h.b16 %v1264
        %v1438 = vunpack.c.l.b16 %v1265
        %v1439 = vunpack.c.l.b16 %v1266
        %v1440 = vunpack.c.h.b16 %v1266
        %v1441 = vunpack.c.l.b16 %v1267
        %v1442 = vunpack.c.l.b16 %v1268
        %v1443 = vunpack.c.h.b16 %v1268
        %v1444 = vunpack.c.l.b16 %v1269
        %v1445 = vunpack.c.l.b16 %v1270
        %v1446 = vunpack.c.h.b16 %v1270
        %v1447 = vunpack.c.l.b16 %v1271
        %v1448 = vunpack.c.l.b16 %v1272
        %v1449 = vunpack.c.h.b16 %v1272
        %v1450 = vunpack.c.l.b16 %v1273
        %v1451 = vpack.c.b16 %v1358, %v1355
        %v1452 = vpack.c.b16 %v1359, %v1356
        %v1453 = vpack.c.b16 %v1360, %v1357
        %v1454 = vpack.c.b16 %v1364, %v1361
        %v1455 = vpack.c.b16 %v1365, %v1362
        %v1456 = vpack.c.b16 %v1366, %v1363
        %v1457 = vpack.c.b16 %v1370, %v1367
        %v1458 = vpack.c.b16 %v1371, %v1368
        %v1459 = vpack.c.b16 %v1372, %v1369
        %v1460 = vpack.c.b16 %v1376, %v1373
        %v1461 = vpack.c.b16 %v1377, %v1374
        %v1462 = vpack.c.b16 %v1378, %v1375
        %v1463 = vpack.c.b16 %v1382, %v1379
        %v1464 = vpack.c.b16 %v1383, %v1380
        %v1465 = vpack.c.b16 %v1384, %v1381
        %v1466 = vpack.c.b16 %v1388, %v1385
        %v1467 = vpack.c.b16 %v1389, %v1386
        %v1468 = vpack.c.b16 %v1390, %v1387
        %v1469 = vpack.c.b16 %v1394, %v1391
        %v1470 = vpack.c.b16 %v1395, %v1392
        %v1471 = vpack.c.b16 %v1396, %v1393
        %v1472 = vpack.c.b16 %v1400, %v1397
        %v1473 = vpack.c.b16 %v1401, %v1398
        %v1474 = vpack.c.b16 %v1402, %v1399
        %v1475 = vpack.c.b16 %v1406, %v1403
        %v1476 = vpack.c.b16 %v1407, %v1404
        %v1477 = vpack.c.b16 %v1408, %v1405
        %v1478 = vpack.c.b16 %v1412, %v1409
        %v1479 = vpack.c.b16 %v1413, %v1410
        %v1480 = vpack.c.b16 %v1414, %v1411
        %v1481 = vpack.c.b16 %v1418, %v1415
        %v1482 = vpack.c.b16 %v1419, %v1416
        %v1483 = vpack.c.b16 %v1420, %v1417
        %v1484 = vpack.c.b16 %v1424, %v1421
        %v1485 = vpack.c.b16 %v1425, %v1422
        %v1486 = vpack.c.b16 %v1426, %v1423
        %v1487 = vpack.c.b16 %v1430, %v1427
        %v1488 = vpack.c.b16 %v1431, %v1428
        %v1489 = vpack.c.b16 %v1432, %v1429
        %v1490 = vpack.c.b16 %v1436, %v1433
        %v1491 = vpack.c.b16 %v1437, %v1434
        %v1492 = vpack.c.b16 %v1438, %v1435
        %v1493 = vpack.c.b16 %v1442, %v1439
        %v1494 = vpack.c.b16 %v1443, %v1440
        %v1495 = vpack.c.b16 %v1444, %v1441
        %v1496 = vpack.c.b16 %v1448, %v1445
        %v1497 = vpack.c.b16 %v1449, %v1446
        %v1498 = vpack.c.b16 %v1450, %v1447
        %1547 = vmatprep.subr.bf16.mxu0 %v1452
        %1548 = vmatpush1.bf16.msra.mxu0 %v1451
        %1549 = vmatprep.subr.bf16.mxu0 %v1455
        %1550 = vmatpush1.bf16.msra.mxu0 %v1454
        %1551 = vmatprep.subr.bf16.mxu0 %v1458
        %1552 = vmatpush1.bf16.msra.mxu0 %v1457
        %1553 = vmatprep.subr.bf16.mxu0 %v1461
        %1554 = vmatpush1.bf16.msra.mxu0 %v1460
        %1555 = vmatprep.subr.bf16.mxu0 %v1464
        %1556 = vmatpush1.bf16.msra.mxu0 %v1463
        %1557 = vmatprep.subr.bf16.mxu0 %v1467
        %1558 = vmatpush1.bf16.msra.mxu0 %v1466
        %1559 = vmatprep.subr.bf16.mxu0 %v1470
        %1560 = vmatpush1.bf16.msra.mxu0 %v1469
        %1561 = vmatprep.subr.bf16.mxu0 %v1473
        %1562 = vmatpush1.bf16.msra.mxu0 %v1472
        %1563 = vmatprep.subr.bf16.mxu0 %v1476
        %1564 = vmatpush1.bf16.msra.mxu0 %v1475
        %1565 = vmatprep.subr.bf16.mxu0 %v1479
        %1566 = vmatpush1.bf16.msra.mxu0 %v1478
        %1567 = vmatprep.subr.bf16.mxu0 %v1482
        %1568 = vmatpush1.bf16.msra.mxu0 %v1481
        %1569 = vmatprep.subr.bf16.mxu0 %v1485
        %1570 = vmatpush1.bf16.msra.mxu0 %v1484
        %1571 = vmatprep.subr.bf16.mxu0 %v1488
        %1572 = vmatpush1.bf16.msra.mxu0 %v1487
        %1573 = vmatprep.subr.bf16.mxu0 %v1491
        %1574 = vmatpush1.bf16.msra.mxu0 %v1490
        %1575 = vmatprep.subr.bf16.mxu0 %v1494
        %1576 = vmatpush1.bf16.msra.mxu0 %v1493
        %1577 = vmatprep.subr.bf16.mxu0 %v1497
        %1578 = vmatpush1.bf16.msra.mxu0 %v1496
        %1579 = vmatprep.mubr.bf16.mxu0 %v1179
        %1580 = vmatmul.mubr.bf16.gmra.mrb[0].mxu0 %v1178
        %v1581 = vpop.f32.mrb[0].mxu0
        %v1582 = vadd.f32 %v1279, %v1581
        %v1583 = vpop.f32.mrb[0].mxu0
        %v1584 = vadd.f32 %v1283, %v1583
        %v1585 = vpop.f32.mrb[0].mxu0
        %v1586 = vadd.f32 %v1279, %v1585
        %v1587 = vpop.f32.mrb[0].mxu0
        %v1588 = vadd.f32 %v1283, %v1587
        %1589 = vmatprep.mubr.bf16.mxu0 %v1181
        %1590 = vmatmul.mubr.bf16.gmra.mrb[0].mxu0 %v1180
        %v1591 = vpop.f32.mrb[0].mxu0
        %v1592 = vadd.f32 %v1279, %v1591
        %v1593 = vpop.f32.mrb[0].mxu0
        %v1594 = vadd.f32 %v1283, %v1593
        %v1595 = vpop.f32.mrb[0].mxu0
        %v1596 = vadd.f32 %v1279, %v1595
        %v1597 = vpop.f32.mrb[0].mxu0
        %v1598 = vadd.f32 %v1283, %v1597
        %1599 = vmatprep.mubr.bf16.mxu0 %v1183
        %1600 = vmatmul.mubr.bf16.gmra.mrb[0].mxu0 %v1182
        %v1601 = vpop.f32.mrb[0].mxu0
        %v1602 = vadd.f32 %v1279, %v1601
        %v1603 = vpop.f32.mrb[0].mxu0
        %v1604 = vadd.f32 %v1283, %v1603
        %v1605 = vpop.f32.mrb[0].mxu0
        %v1606 = vadd.f32 %v1279, %v1605
        %v1607 = vpop.f32.mrb[0].mxu0
        %v1608 = vadd.f32 %v1283, %v1607
        %1609 = vmatprep.mubr.bf16.mxu0 %v1185
        %1610 = vmatmul.mubr.bf16.gmra.mrb[0].mxu0 %v1184
        %v1611 = vpop.f32.mrb[0].mxu0
        %v1612 = vadd.f32 %v1279, %v1611
        %v1613 = vpop.f32.mrb[0].mxu0
        %v1614 = vadd.f32 %v1283, %v1613
        %v1615 = vpop.f32.mrb[0].mxu0
        %v1616 = vadd.f32 %v1279, %v1615
        %v1617 = vpop.f32.mrb[0].mxu0
        %v1618 = vadd.f32 %v1283, %v1617
        %1619 = vmatprep.mubr.bf16.mxu0 %v1187
        %1620 = vmatmul.mubr.bf16.gmra.mrb[0].mxu0 %v1186
        %v1621 = vpop.f32.mrb[0].mxu0
        %v1622 = vadd.f32 %v1279, %v1621
        %v1623 = vpop.f32.mrb[0].mxu0
        %v1624 = vadd.f32 %v1283, %v1623
        %v1625 = vpop.f32.mrb[0].mxu0
        %v1626 = vadd.f32 %v1279, %v1625
        %v1627 = vpop.f32.mrb[0].mxu0
        %v1628 = vadd.f32 %v1283, %v1627
        %1629 = vmatprep.mubr.bf16.mxu0 %v1189
        %1630 = vmatmul.mubr.bf16.gmra.mrb[0].mxu0 %v1188
        %v1631 = vpop.f32.mrb[0].mxu0
        %v1632 = vadd.f32 %v1279, %v1631
        %v1633 = vpop.f32.mrb[0].mxu0
        %v1634 = vadd.f32 %v1283, %v1633
        %v1635 = vpop.f32.mrb[0].mxu0
        %v1636 = vadd.f32 %v1279, %v1635
        %v1637 = vpop.f32.mrb[0].mxu0
        %v1638 = vadd.f32 %v1283, %v1637
        %1639 = vmatprep.mubr.bf16.mxu0 %v1191
        %1640 = vmatmul.mubr.bf16.gmra.mrb[0].mxu0 %v1190
        %v1641 = vpop.f32.mrb[0].mxu0
        %v1642 = vadd.f32 %v1279, %v1641
        %v1643 = vpop.f32.mrb[0].mxu0
        %v1644 = vadd.f32 %v1283, %v1643
        %v1645 = vpop.f32.mrb[0].mxu0
        %v1646 = vadd.f32 %v1279, %v1645
        %v1647 = vpop.f32.mrb[0].mxu0
        %v1648 = vadd.f32 %v1283, %v1647
        %1649 = vmatprep.mubr.bf16.mxu0 %v1193
        %1650 = vmatmul.mubr.bf16.gmra.mrb[0].mxu0 %v1192
        %v1651 = vpop.f32.mrb[0].mxu0
        %v1652 = vadd.f32 %v1279, %v1651
        %v1653 = vpop.f32.mrb[0].mxu0
        %v1654 = vadd.f32 %v1283, %v1653
        %v1655 = vpop.f32.mrb[0].mxu0
        %v1656 = vadd.f32 %v1279, %v1655
        %v1657 = vpop.f32.mrb[0].mxu0
        %v1658 = vadd.f32 %v1283, %v1657
        %1659 = vmatprep.mubr.bf16.mxu0 %v1195
        %1660 = vmatmul.mubr.bf16.gmra.mrb[0].mxu0 %v1194
        %v1661 = vpop.f32.mrb[0].mxu0
        %v1662 = vadd.f32 %v1279, %v1661
        %v1663 = vpop.f32.mrb[0].mxu0
        %v1664 = vadd.f32 %v1283, %v1663
        %v1665 = vpop.f32.mrb[0].mxu0
        %v1666 = vadd.f32 %v1279, %v1665
        %v1667 = vpop.f32.mrb[0].mxu0
        %v1668 = vadd.f32 %v1283, %v1667
        %1669 = vmatprep.mubr.bf16.mxu0 %v1197
        %1670 = vmatmul.mubr.bf16.gmra.mrb[0].mxu0 %v1196
        %v1671 = vpop.f32.mrb[0].mxu0
        %v1672 = vadd.f32 %v1279, %v1671
        %v1673 = vpop.f32.mrb[0].mxu0
        %v1674 = vadd.f32 %v1283, %v1673
        %v1675 = vpop.f32.mrb[0].mxu0
        %v1676 = vadd.f32 %v1279, %v1675
        %v1677 = vpop.f32.mrb[0].mxu0
        %v1678 = vadd.f32 %v1283, %v1677
        %1679 = vmatprep.mubr.bf16.mxu0 %v1199
        %1680 = vmatmul.mubr.bf16.gmra.mrb[0].mxu0 %v1198
        %v1681 = vpop.f32.mrb[0].mxu0
        %v1682 = vadd.f32 %v1279, %v1681
        %v1683 = vpop.f32.mrb[0].mxu0
        %v1684 = vadd.f32 %v1283, %v1683
        %v1685 = vpop.f32.mrb[0].mxu0
        %v1686 = vadd.f32 %v1279, %v1685
        %v1687 = vpop.f32.mrb[0].mxu0
        %v1688 = vadd.f32 %v1283, %v1687
        %1689 = vmatprep.mubr.bf16.mxu0 %v1201
        %1690 = vmatmul.mubr.bf16.gmra.mrb[0].mxu0 %v1200
        %v1691 = vpop.f32.mrb[0].mxu0
        %v1692 = vadd.f32 %v1279, %v1691
        %v1693 = vpop.f32.mrb[0].mxu0
        %v1694 = vadd.f32 %v1283, %v1693
        %v1695 = vpop.f32.mrb[0].mxu0
        %v1696 = vadd.f32 %v1279, %v1695
        %v1697 = vpop.f32.mrb[0].mxu0
        %v1698 = vadd.f32 %v1283, %v1697
        %1699 = vmatprep.mubr.bf16.mxu0 %v1203
        %1700 = vmatmul.mubr.bf16.gmra.mrb[0].mxu0 %v1202
        %v1701 = vpop.f32.mrb[0].mxu0
        %v1702 = vadd.f32 %v1279, %v1701
        %v1703 = vpop.f32.mrb[0].mxu0
        %v1704 = vadd.f32 %v1283, %v1703
        %v1705 = vpop.f32.mrb[0].mxu0
        %v1706 = vadd.f32 %v1279, %v1705
        %v1707 = vpop.f32.mrb[0].mxu0
        %v1708 = vadd.f32 %v1283, %v1707
        %1709 = vmatprep.mubr.bf16.mxu0 %v1205
        %1710 = vmatmul.mubr.bf16.gmra.mrb[0].mxu0 %v1204
        %v1711 = vpop.f32.mrb[0].mxu0
        %v1712 = vadd.f32 %v1279, %v1711
        %v1713 = vpop.f32.mrb[0].mxu0
        %v1714 = vadd.f32 %v1283, %v1713
        %v1715 = vpop.f32.mrb[0].mxu0
        %v1716 = vadd.f32 %v1279, %v1715
        %v1717 = vpop.f32.mrb[0].mxu0
        %v1718 = vadd.f32 %v1283, %v1717
        %1719 = vmatprep.mubr.bf16.mxu0 %v1207
        %1720 = vmatmul.mubr.bf16.gmra.mrb[0].mxu0 %v1206
        %v1721 = vpop.f32.mrb[0].mxu0
        %v1722 = vadd.f32 %v1279, %v1721
        %v1723 = vpop.f32.mrb[0].mxu0
        %v1724 = vadd.f32 %v1283, %v1723
        %v1725 = vpop.f32.mrb[0].mxu0
        %v1726 = vadd.f32 %v1279, %v1725
        %v1727 = vpop.f32.mrb[0].mxu0
        %v1728 = vadd.f32 %v1283, %v1727
        %1729 = vmatprep.mubr.bf16.mxu0 %v1209
        %1730 = vmatmul.mubr.bf16.gmra.mrb[0].mxu0 %v1208
        %v1731 = vpop.f32.mrb[0].mxu0
        %v1732 = vadd.f32 %v1279, %v1731
        %v1733 = vpop.f32.mrb[0].mxu0
        %v1734 = vadd.f32 %v1283, %v1733
        %v1735 = vpop.f32.mrb[0].mxu0
        %v1736 = vadd.f32 %v1279, %v1735
        %v1737 = vpop.f32.mrb[0].mxu0
        %v1738 = vadd.f32 %v1283, %v1737
        %1739 = vdwg.mxu0
        %1740 = vmatprep.subr.bf16.mxu0 0
        %1741 = vmatpush1.bf16.msra.mxu0 %v1453
        %1742 = vmatprep.subr.bf16.mxu0 0
        %1743 = vmatpush1.bf16.msra.mxu0 %v1456
        %1744 = vmatprep.subr.bf16.mxu0 0
        %1745 = vmatpush1.bf16.msra.mxu0 %v1459
        %1746 = vmatprep.subr.bf16.mxu0 0
        %1747 = vmatpush1.bf16.msra.mxu0 %v1462
        %1748 = vmatprep.subr.bf16.mxu0 0
        %1749 = vmatpush1.bf16.msra.mxu0 %v1465
        %1750 = vmatprep.subr.bf16.mxu0 0
        %1751 = vmatpush1.bf16.msra.mxu0 %v1468
        %1752 = vmatprep.subr.bf16.mxu0 0
        %1753 = vmatpush1.bf16.msra.mxu0 %v1471
        %1754 = vmatprep.subr.bf16.mxu0 0
        %1755 = vmatpush1.bf16.msra.mxu0 %v1474
        %1756 = vmatprep.subr.bf16.mxu0 0
        %1757 = vmatpush1.bf16.msra.mxu0 %v1477
        %1758 = vmatprep.subr.bf16.mxu0 0
        %1759 = vmatpush1.bf16.msra.mxu0 %v1480
        %1760 = vmatprep.subr.bf16.mxu0 0
        %1761 = vmatpush1.bf16.msra.mxu0 %v1483
        %1762 = vmatprep.subr.bf16.mxu0 0
        %1763 = vmatpush1.bf16.msra.mxu0 %v1486
        %1764 = vmatprep.subr.bf16.mxu0 0
        %1765 = vmatpush1.bf16.msra.mxu0 %v1489
        %1766 = vmatprep.subr.bf16.mxu0 0
        %1767 = vmatpush1.bf16.msra.mxu0 %v1492
        %1768 = vmatprep.subr.bf16.mxu0 0
        %1769 = vmatpush1.bf16.msra.mxu0 %v1495
        %1770 = vmatprep.subr.bf16.mxu0 0
        %1771 = vmatpush1.bf16.msra.mxu0 %v1498
        %1772 = vmatprep.mubr.bf16.mxu0 %v1179
        %1773 = vmatmul.mubr.bf16.gmra.mrb[0].mxu0 %v1178
        %v1774 = vpop.f32.mrb[0].mxu0
        %v1775 = vadd.f32 %v1287, %v1774
        %v1776 = vpop.f32.mrb[0].mxu0
        %v1777 = vpop.f32.mrb[0].mxu0
        %v1778 = vadd.f32 %v1287, %v1777
        %v1779 = vpop.f32.mrb[0].mxu0
        %1780 = vmatprep.mubr.bf16.mxu0 %v1181
        %1781 = vmatmul.mubr.bf16.gmra.mrb[0].mxu0 %v1180
        %v1782 = vpop.f32.mrb[0].mxu0
        %v1783 = vadd.f32 %v1287, %v1782
        %v1784 = vpop.f32.mrb[0].mxu0
        %v1785 = vpop.f32.mrb[0].mxu0
        %v1786 = vadd.f32 %v1287, %v1785
        %v1787 = vpop.f32.mrb[0].mxu0
        %1788 = vmatprep.mubr.bf16.mxu0 %v1183
        %1789 = vmatmul.mubr.bf16.gmra.mrb[0].mxu0 %v1182
        %v1790 = vpop.f32.mrb[0].mxu0
        %v1791 = vadd.f32 %v1287, %v1790
        %v1792 = vpop.f32.mrb[0].mxu0
        %v1793 = vpop.f32.mrb[0].mxu0
        %v1794 = vadd.f32 %v1287, %v1793
        %v1795 = vpop.f32.mrb[0].mxu0
        %1796 = vmatprep.mubr.bf16.mxu0 %v1185
        %1797 = vmatmul.mubr.bf16.gmra.mrb[0].mxu0 %v1184
        %v1798 = vpop.f32.mrb[0].mxu0
        %v1799 = vadd.f32 %v1287, %v1798
        %v1800 = vpop.f32.mrb[0].mxu0
        %v1801 = vpop.f32.mrb[0].mxu0
        %v1802 = vadd.f32 %v1287, %v1801
        %v1803 = vpop.f32.mrb[0].mxu0
        %1804 = vmatprep.mubr.bf16.mxu0 %v1187
        %1805 = vmatmul.mubr.bf16.gmra.mrb[0].mxu0 %v1186
        %v1806 = vpop.f32.mrb[0].mxu0
        %v1807 = vadd.f32 %v1287, %v1806
        %v1808 = vpop.f32.mrb[0].mxu0
        %v1809 = vpop.f32.mrb[0].mxu0
        %v1810 = vadd.f32 %v1287, %v1809
        %v1811 = vpop.f32.mrb[0].mxu0
        %1812 = vmatprep.mubr.bf16.mxu0 %v1189
        %1813 = vmatmul.mubr.bf16.gmra.mrb[0].mxu0 %v1188
        %v1814 = vpop.f32.mrb[0].mxu0
        %v1815 = vadd.f32 %v1287, %v1814
        %v1816 = vpop.f32.mrb[0].mxu0
        %v1817 = vpop.f32.mrb[0].mxu0
        %v1818 = vadd.f32 %v1287, %v1817
        %v1819 = vpop.f32.mrb[0].mxu0
        %1820 = vmatprep.mubr.bf16.mxu0 %v1191
        %1821 = vmatmul.mubr.bf16.gmra.mrb[0].mxu0 %v1190
        %v1822 = vpop.f32.mrb[0].mxu0
        %v1823 = vadd.f32 %v1287, %v1822
        %v1824 = vpop.f32.mrb[0].mxu0
        %v1825 = vpop.f32.mrb[0].mxu0
        %v1826 = vadd.f32 %v1287, %v1825
        %v1827 = vpop.f32.mrb[0].mxu0
        %1828 = vmatprep.mubr.bf16.mxu0 %v1193
        %1829 = vmatmul.mubr.bf16.gmra.mrb[0].mxu0 %v1192
        %v1830 = vpop.f32.mrb[0].mxu0
        %v1831 = vadd.f32 %v1287, %v1830
        %v1832 = vpop.f32.mrb[0].mxu0
        %v1833 = vpop.f32.mrb[0].mxu0
        %v1834 = vadd.f32 %v1287, %v1833
        %v1835 = vpop.f32.mrb[0].mxu0
        %1836 = vmatprep.mubr.bf16.mxu0 %v1195
        %1837 = vmatmul.mubr.bf16.gmra.mrb[0].mxu0 %v1194
        %v1838 = vpop.f32.mrb[0].mxu0
        %v1839 = vadd.f32 %v1287, %v1838
        %v1840 = vpop.f32.mrb[0].mxu0
        %v1841 = vpop.f32.mrb[0].mxu0
        %v1842 = vadd.f32 %v1287, %v1841
        %v1843 = vpop.f32.mrb[0].mxu0
        %1844 = vmatprep.mubr.bf16.mxu0 %v1197
        %1845 = vmatmul.mubr.bf16.gmra.mrb[0].mxu0 %v1196
        %v1846 = vpop.f32.mrb[0].mxu0
        %v1847 = vadd.f32 %v1287, %v1846
        %v1848 = vpop.f32.mrb[0].mxu0
        %v1849 = vpop.f32.mrb[0].mxu0
        %v1850 = vadd.f32 %v1287, %v1849
        %v1851 = vpop.f32.mrb[0].mxu0
        %1852 = vmatprep.mubr.bf16.mxu0 %v1199
        %1853 = vmatmul.mubr.bf16.gmra.mrb[0].mxu0 %v1198
        %v1854 = vpop.f32.mrb[0].mxu0
        %v1855 = vadd.f32 %v1287, %v1854
        %v1856 = vpop.f32.mrb[0].mxu0
        %v1857 = vpop.f32.mrb[0].mxu0
        %v1858 = vadd.f32 %v1287, %v1857
        %v1859 = vpop.f32.mrb[0].mxu0
        %1860 = vmatprep.mubr.bf16.mxu0 %v1201
        %1861 = vmatmul.mubr.bf16.gmra.mrb[0].mxu0 %v1200
        %v1862 = vpop.f32.mrb[0].mxu0
        %v1863 = vadd.f32 %v1287, %v1862
        %v1864 = vpop.f32.mrb[0].mxu0
        %v1865 = vpop.f32.mrb[0].mxu0
        %v1866 = vadd.f32 %v1287, %v1865
        %v1867 = vpop.f32.mrb[0].mxu0
        %1868 = vmatprep.mubr.bf16.mxu0 %v1203
        %1869 = vmatmul.mubr.bf16.gmra.mrb[0].mxu0 %v1202
        %v1870 = vpop.f32.mrb[0].mxu0
        %v1871 = vadd.f32 %v1287, %v1870
        %v1872 = vpop.f32.mrb[0].mxu0
        %v1873 = vpop.f32.mrb[0].mxu0
        %v1874 = vadd.f32 %v1287, %v1873
        %v1875 = vpop.f32.mrb[0].mxu0
        %1876 = vmatprep.mubr.bf16.mxu0 %v1205
        %1877 = vmatmul.mubr.bf16.gmra.mrb[0].mxu0 %v1204
        %v1878 = vpop.f32.mrb[0].mxu0
        %v1879 = vadd.f32 %v1287, %v1878
        %v1880 = vpop.f32.mrb[0].mxu0
        %v1881 = vpop.f32.mrb[0].mxu0
        %v1882 = vadd.f32 %v1287, %v1881
        %v1883 = vpop.f32.mrb[0].mxu0
        %1884 = vmatprep.mubr.bf16.mxu0 %v1207
        %1885 = vmatmul.mubr.bf16.gmra.mrb[0].mxu0 %v1206
        %v1886 = vpop.f32.mrb[0].mxu0
        %v1887 = vadd.f32 %v1287, %v1886
        %v1888 = vpop.f32.mrb[0].mxu0
        %v1889 = vpop.f32.mrb[0].mxu0
        %v1890 = vadd.f32 %v1287, %v1889
        %v1891 = vpop.f32.mrb[0].mxu0
        %1892 = vmatprep.mubr.bf16.mxu0 %v1209
        %1893 = vmatmul.mubr.bf16.gmra.mrb[0].mxu0 %v1208
        %v1894 = vpop.f32.mrb[0].mxu0
        %v1895 = vadd.f32 %v1287, %v1894
        %v1896 = vpop.f32.mrb[0].mxu0
        %v1897 = vpop.f32.mrb[0].mxu0
        %v1898 = vadd.f32 %v1287, %v1897
        %v1899 = vpop.f32.mrb[0].mxu0
        %1900 = vdwg.mxu0
        %v1901 = vxor.u32 %v1582, 2147483648
        %v1902 = vxor.u32 %v1586, 2147483648
        %v1903 = vxor.u32 %v1592, 2147483648
        %v1904 = vxor.u32 %v1596, 2147483648
        %v1905 = vxor.u32 %v1602, 2147483648
        %v1906 = vxor.u32 %v1606, 2147483648
        %v1907 = vxor.u32 %v1612, 2147483648
        %v1908 = vxor.u32 %v1616, 2147483648
        %v1909 = vxor.u32 %v1622, 2147483648
        %v1910 = vxor.u32 %v1626, 2147483648
        %v1911 = vxor.u32 %v1632, 2147483648
        %v1912 = vxor.u32 %v1636, 2147483648
        %v1913 = vxor.u32 %v1642, 2147483648
        %v1914 = vxor.u32 %v1646, 2147483648
        %v1915 = vxor.u32 %v1652, 2147483648
        %v1916 = vxor.u32 %v1656, 2147483648
        %v1917 = vxor.u32 %v1662, 2147483648
        %v1918 = vxor.u32 %v1666, 2147483648
        %v1919 = vxor.u32 %v1672, 2147483648
        %v1920 = vxor.u32 %v1676, 2147483648
        %v1921 = vxor.u32 %v1682, 2147483648
        %v1922 = vxor.u32 %v1686, 2147483648
        %v1923 = vxor.u32 %v1692, 2147483648
        %v1924 = vxor.u32 %v1696, 2147483648
        %v1925 = vxor.u32 %v1702, 2147483648
        %v1926 = vxor.u32 %v1706, 2147483648
        %v1927 = vxor.u32 %v1712, 2147483648
        %v1928 = vxor.u32 %v1716, 2147483648
        %v1929 = vxor.u32 %v1722, 2147483648
        %v1930 = vxor.u32 %v1726, 2147483648
        %v1931 = vxor.u32 %v1732, 2147483648
        %v1932 = vxor.u32 %v1736, 2147483648
        %v1933 = vmul.f32 %v1901, 1.442695
        %v1934 = vpow.pop %v1933
        %v1935 = vmul.f32 %v1902, 1.442695
        %v1936 = vpow.pop %v1935
        %v1937 = vmul.f32 %v1903, 1.442695
        %v1938 = vpow.pop %v1937
        %v1939 = vmul.f32 %v1904, 1.442695
        %v1940 = vpow.pop %v1939
        %v1941 = vmul.f32 %v1905, 1.442695
        %v1942 = vpow.pop %v1941
        %v1943 = vmul.f32 %v1906, 1.442695
        %v1944 = vpow.pop %v1943
        %v1945 = vmul.f32 %v1907, 1.442695
        %v1946 = vpow.pop %v1945
        %v1947 = vmul.f32 %v1908, 1.442695
        %v1948 = vpow.pop %v1947
        %v1949 = vmul.f32 %v1909, 1.442695
        %v1950 = vpow.pop %v1949
        %v1951 = vmul.f32 %v1910, 1.442695
        %v1952 = vpow.pop %v1951
        %v1953 = vmul.f32 %v1911, 1.442695
        %v1954 = vpow.pop %v1953
        %v1955 = vmul.f32 %v1912, 1.442695
        %v1956 = vpow.pop %v1955
        %v1957 = vmul.f32 %v1913, 1.442695
        %v1958 = vpow.pop %v1957
        %v1959 = vmul.f32 %v1914, 1.442695
        %v1960 = vpow.pop %v1959
        %v1961 = vmul.f32 %v1915, 1.442695
        %v1962 = vpow.pop %v1961
        %v1963 = vmul.f32 %v1916, 1.442695
        %v1964 = vpow.pop %v1963
        %v1965 = vmul.f32 %v1917, 1.442695
        %v1966 = vpow.pop %v1965
        %v1967 = vmul.f32 %v1918, 1.442695
        %v1968 = vpow.pop %v1967
        %v1969 = vmul.f32 %v1919, 1.442695
        %v1970 = vpow.pop %v1969
        %v1971 = vmul.f32 %v1920, 1.442695
        %v1972 = vpow.pop %v1971
        %v1973 = vmul.f32 %v1921, 1.442695
        %v1974 = vpow.pop %v1973
        %v1975 = vmul.f32 %v1922, 1.442695
        %v1976 = vpow.pop %v1975
        %v1977 = vmul.f32 %v1923, 1.442695
        %v1978 = vpow.pop %v1977
        %v1979 = vmul.f32 %v1924, 1.442695
        %v1980 = vpow.pop %v1979
        %v1981 = vmul.f32 %v1925, 1.442695
        %v1982 = vpow.pop %v1981
        %v1983 = vmul.f32 %v1926, 1.442695
        %v1984 = vpow.pop %v1983
        %v1985 = vmul.f32 %v1927, 1.442695
        %v1986 = vpow.pop %v1985
        %v1987 = vmul.f32 %v1928, 1.442695
        %v1988 = vpow.pop %v1987
        %v1989 = vmul.f32 %v1929, 1.442695
        %v1990 = vpow.pop %v1989
        %v1991 = vmul.f32 %v1930, 1.442695
        %v1992 = vpow.pop %v1991
        %v1993 = vmul.f32 %v1931, 1.442695
        %v1994 = vpow.pop %v1993
        %v1995 = vmul.f32 %v1932, 1.442695
        %v1996 = vpow.pop %v1995
        %v1997 = vadd.f32 %v1934, 1.0
        %v1998 = vadd.f32 %v1936, 1.0
        %v1999 = vadd.f32 %v1938, 1.0
        %v2000 = vadd.f32 %v1940, 1.0
        %v2001 = vadd.f32 %v1942, 1.0
        %v2002 = vadd.f32 %v1944, 1.0
        %v2003 = vadd.f32 %v1946, 1.0
        %v2004 = vadd.f32 %v1948, 1.0
        %v2005 = vadd.f32 %v1950, 1.0
        %v2006 = vadd.f32 %v1952, 1.0
        %v2007 = vadd.f32 %v1954, 1.0
        %v2008 = vadd.f32 %v1956, 1.0
        %v2009 = vadd.f32 %v1958, 1.0
        %v2010 = vadd.f32 %v1960, 1.0
        %v2011 = vadd.f32 %v1962, 1.0
        %v2012 = vadd.f32 %v1964, 1.0
        %v2013 = vadd.f32 %v1966, 1.0
        %v2014 = vadd.f32 %v1968, 1.0
        %v2015 = vadd.f32 %v1970, 1.0
        %v2016 = vadd.f32 %v1972, 1.0
        %v2017 = vadd.f32 %v1974, 1.0
        %v2018 = vadd.f32 %v1976, 1.0
        %v2019 = vadd.f32 %v1978, 1.0
        %v2020 = vadd.f32 %v1980, 1.0
        %v2021 = vadd.f32 %v1982, 1.0
        %v2022 = vadd.f32 %v1984, 1.0
        %v2023 = vadd.f32 %v1986, 1.0
        %v2024 = vadd.f32 %v1988, 1.0
        %v2025 = vadd.f32 %v1990, 1.0
        %v2026 = vadd.f32 %v1992, 1.0
        %v2027 = vadd.f32 %v1994, 1.0
        %v2028 = vadd.f32 %v1996, 1.0
        %v2029 = vrcp.pop %v1997
        %v2030 = vmul.f32 1.0, %v2029
        %v2031 = vrcp.pop %v1998
        %v2032 = vmul.f32 1.0, %v2031
        %v2033 = vrcp.pop %v1999
        %v2034 = vmul.f32 1.0, %v2033
        %v2035 = vrcp.pop %v2000
        %v2036 = vmul.f32 1.0, %v2035
        %v2037 = vrcp.pop %v2001
        %v2038 = vmul.f32 1.0, %v2037
        %v2039 = vrcp.pop %v2002
        %v2040 = vmul.f32 1.0, %v2039
        %v2041 = vrcp.pop %v2003
        %v2042 = vmul.f32 1.0, %v2041
        %v2043 = vrcp.pop %v2004
        %v2044 = vmul.f32 1.0, %v2043
        %v2045 = vrcp.pop %v2005
        %v2046 = vmul.f32 1.0, %v2045
        %v2047 = vrcp.pop %v2006
        %v2048 = vmul.f32 1.0, %v2047
        %v2049 = vrcp.pop %v2007
        %v2050 = vmul.f32 1.0, %v2049
        %v2051 = vrcp.pop %v2008
        %v2052 = vmul.f32 1.0, %v2051
        %v2053 = vrcp.pop %v2009
        %v2054 = vmul.f32 1.0, %v2053
        %v2055 = vrcp.pop %v2010
        %v2056 = vmul.f32 1.0, %v2055
        %v2057 = vrcp.pop %v2011
        %v2058 = vmul.f32 1.0, %v2057
        %v2059 = vrcp.pop %v2012
        %v2060 = vmul.f32 1.0, %v2059
        %v2061 = vrcp.pop %v2013
        %v2062 = vmul.f32 1.0, %v2061
        %v2063 = vrcp.pop %v2014
        %v2064 = vmul.f32 1.0, %v2063
        %v2065 = vrcp.pop %v2015
        %v2066 = vmul.f32 1.0, %v2065
        %v2067 = vrcp.pop %v2016
        %v2068 = vmul.f32 1.0, %v2067
        %v2069 = vrcp.pop %v2017
        %v2070 = vmul.f32 1.0, %v2069
        %v2071 = vrcp.pop %v2018
        %v2072 = vmul.f32 1.0, %v2071
        %v2073 = vrcp.pop %v2019
        %v2074 = vmul.f32 1.0, %v2073
        %v2075 = vrcp.pop %v2020
        %v2076 = vmul.f32 1.0, %v2075
        %v2077 = vrcp.pop %v2021
        %v2078 = vmul.f32 1.0, %v2077
        %v2079 = vrcp.pop %v2022
        %v2080 = vmul.f32 1.0, %v2079
        %v2081 = vrcp.pop %v2023
        %v2082 = vmul.f32 1.0, %v2081
        %v2083 = vrcp.pop %v2024
        %v2084 = vmul.f32 1.0, %v2083
        %v2085 = vrcp.pop %v2025
        %v2086 = vmul.f32 1.0, %v2085
        %v2087 = vrcp.pop %v2026
        %v2088 = vmul.f32 1.0, %v2087
        %v2089 = vrcp.pop %v2027
        %v2090 = vmul.f32 1.0, %v2089
        %v2091 = vrcp.pop %v2028
        %v2092 = vmul.f32 1.0, %v2091
        %v2093 = vxor.u32 %v1584, 2147483648
        %v2094 = vxor.u32 %v1588, 2147483648
        %v2095 = vxor.u32 %v1594, 2147483648
        %v2096 = vxor.u32 %v1598, 2147483648
        %v2097 = vxor.u32 %v1604, 2147483648
        %v2098 = vxor.u32 %v1608, 2147483648
        %v2099 = vxor.u32 %v1614, 2147483648
        %v2100 = vxor.u32 %v1618, 2147483648
        %v2101 = vxor.u32 %v1624, 2147483648
        %v2102 = vxor.u32 %v1628, 2147483648
        %v2103 = vxor.u32 %v1634, 2147483648
        %v2104 = vxor.u32 %v1638, 2147483648
        %v2105 = vxor.u32 %v1644, 2147483648
        %v2106 = vxor.u32 %v1648, 2147483648
        %v2107 = vxor.u32 %v1654, 2147483648
        %v2108 = vxor.u32 %v1658, 2147483648
        %v2109 = vxor.u32 %v1664, 2147483648
        %v2110 = vxor.u32 %v1668, 2147483648
        %v2111 = vxor.u32 %v1674, 2147483648
        %v2112 = vxor.u32 %v1678, 2147483648
        %v2113 = vxor.u32 %v1684, 2147483648
        %v2114 = vxor.u32 %v1688, 2147483648
        %v2115 = vxor.u32 %v1694, 2147483648
        %v2116 = vxor.u32 %v1698, 2147483648
        %v2117 = vxor.u32 %v1704, 2147483648
        %v2118 = vxor.u32 %v1708, 2147483648
        %v2119 = vxor.u32 %v1714, 2147483648
        %v2120 = vxor.u32 %v1718, 2147483648
        %v2121 = vxor.u32 %v1724, 2147483648
        %v2122 = vxor.u32 %v1728, 2147483648
        %v2123 = vxor.u32 %v1734, 2147483648
        %v2124 = vxor.u32 %v1738, 2147483648
        %v2125 = vmul.f32 %v2093, 1.442695
        %v2126 = vpow.pop %v2125
        %v2127 = vmul.f32 %v2094, 1.442695
        %v2128 = vpow.pop %v2127
        %v2129 = vmul.f32 %v2095, 1.442695
        %v2130 = vpow.pop %v2129
        %v2131 = vmul.f32 %v2096, 1.442695
        %v2132 = vpow.pop %v2131
        %v2133 = vmul.f32 %v2097, 1.442695
        %v2134 = vpow.pop %v2133
        %v2135 = vmul.f32 %v2098, 1.442695
        %v2136 = vpow.pop %v2135
        %v2137 = vmul.f32 %v2099, 1.442695
        %v2138 = vpow.pop %v2137
        %v2139 = vmul.f32 %v2100, 1.442695
        %v2140 = vpow.pop %v2139
        %v2141 = vmul.f32 %v2101, 1.442695
        %v2142 = vpow.pop %v2141
        %v2143 = vmul.f32 %v2102, 1.442695
        %v2144 = vpow.pop %v2143
        %v2145 = vmul.f32 %v2103, 1.442695
        %v2146 = vpow.pop %v2145
        %v2147 = vmul.f32 %v2104, 1.442695
        %v2148 = vpow.pop %v2147
        %v2149 = vmul.f32 %v2105, 1.442695
        %v2150 = vpow.pop %v2149
        %v2151 = vmul.f32 %v2106, 1.442695
        %v2152 = vpow.pop %v2151
        %v2153 = vmul.f32 %v2107, 1.442695
        %v2154 = vpow.pop %v2153
        %v2155 = vmul.f32 %v2108, 1.442695
        %v2156 = vpow.pop %v2155
        %v2157 = vmul.f32 %v2109, 1.442695
        %v2158 = vpow.pop %v2157
        %v2159 = vmul.f32 %v2110, 1.442695
        %v2160 = vpow.pop %v2159
        %v2161 = vmul.f32 %v2111, 1.442695
        %v2162 = vpow.pop %v2161
        %v2163 = vmul.f32 %v2112, 1.442695
        %v2164 = vpow.pop %v2163
        %v2165 = vmul.f32 %v2113, 1.442695
        %v2166 = vpow.pop %v2165
        %v2167 = vmul.f32 %v2114, 1.442695
        %v2168 = vpow.pop %v2167
        %v2169 = vmul.f32 %v2115, 1.442695
        %v2170 = vpow.pop %v2169
        %v2171 = vmul.f32 %v2116, 1.442695
        %v2172 = vpow.pop %v2171
        %v2173 = vmul.f32 %v2117, 1.442695
        %v2174 = vpow.pop %v2173
        %v2175 = vmul.f32 %v2118, 1.442695
        %v2176 = vpow.pop %v2175
        %v2177 = vmul.f32 %v2119, 1.442695
        %v2178 = vpow.pop %v2177
        %v2179 = vmul.f32 %v2120, 1.442695
        %v2180 = vpow.pop %v2179
        %v2181 = vmul.f32 %v2121, 1.442695
        %v2182 = vpow.pop %v2181
        %v2183 = vmul.f32 %v2122, 1.442695
        %v2184 = vpow.pop %v2183
        %v2185 = vmul.f32 %v2123, 1.442695
        %v2186 = vpow.pop %v2185
        %v2187 = vmul.f32 %v2124, 1.442695
        %v2188 = vpow.pop %v2187
        %v2189 = vadd.f32 %v2126, 1.0
        %v2190 = vadd.f32 %v2128, 1.0
        %v2191 = vadd.f32 %v2130, 1.0
        %v2192 = vadd.f32 %v2132, 1.0
        %v2193 = vadd.f32 %v2134, 1.0
        %v2194 = vadd.f32 %v2136, 1.0
        %v2195 = vadd.f32 %v2138, 1.0
        %v2196 = vadd.f32 %v2140, 1.0
        %v2197 = vadd.f32 %v2142, 1.0
        %v2198 = vadd.f32 %v2144, 1.0
        %v2199 = vadd.f32 %v2146, 1.0
        %v2200 = vadd.f32 %v2148, 1.0
        %v2201 = vadd.f32 %v2150, 1.0
        %v2202 = vadd.f32 %v2152, 1.0
        %v2203 = vadd.f32 %v2154, 1.0
        %v2204 = vadd.f32 %v2156, 1.0
        %v2205 = vadd.f32 %v2158, 1.0
        %v2206 = vadd.f32 %v2160, 1.0
        %v2207 = vadd.f32 %v2162, 1.0
        %v2208 = vadd.f32 %v2164, 1.0
        %v2209 = vadd.f32 %v2166, 1.0
        %v2210 = vadd.f32 %v2168, 1.0
        %v2211 = vadd.f32 %v2170, 1.0
        %v2212 = vadd.f32 %v2172, 1.0
        %v2213 = vadd.f32 %v2174, 1.0
        %v2214 = vadd.f32 %v2176, 1.0
        %v2215 = vadd.f32 %v2178, 1.0
        %v2216 = vadd.f32 %v2180, 1.0
        %v2217 = vadd.f32 %v2182, 1.0
        %v2218 = vadd.f32 %v2184, 1.0
        %v2219 = vadd.f32 %v2186, 1.0
        %v2220 = vadd.f32 %v2188, 1.0
        %v2221 = vrcp.pop %v2189
        %v2222 = vmul.f32 1.0, %v2221
        %v2223 = vrcp.pop %v2190
        %v2224 = vmul.f32 1.0, %v2223
        %v2225 = vrcp.pop %v2191
        %v2226 = vmul.f32 1.0, %v2225
        %v2227 = vrcp.pop %v2192
        %v2228 = vmul.f32 1.0, %v2227
        %v2229 = vrcp.pop %v2193
        %v2230 = vmul.f32 1.0, %v2229
        %v2231 = vrcp.pop %v2194
        %v2232 = vmul.f32 1.0, %v2231
        %v2233 = vrcp.pop %v2195
        %v2234 = vmul.f32 1.0, %v2233
        %v2235 = vrcp.pop %v2196
        %v2236 = vmul.f32 1.0, %v2235
        %v2237 = vrcp.pop %v2197
        %v2238 = vmul.f32 1.0, %v2237
        %v2239 = vrcp.pop %v2198
        %v2240 = vmul.f32 1.0, %v2239
        %v2241 = vrcp.pop %v2199
        %v2242 = vmul.f32 1.0, %v2241
        %v2243 = vrcp.pop %v2200
        %v2244 = vmul.f32 1.0, %v2243
        %v2245 = vrcp.pop %v2201
        %v2246 = vmul.f32 1.0, %v2245
        %v2247 = vrcp.pop %v2202
        %v2248 = vmul.f32 1.0, %v2247
        %v2249 = vrcp.pop %v2203
        %v2250 = vmul.f32 1.0, %v2249
        %v2251 = vrcp.pop %v2204
        %v2252 = vmul.f32 1.0, %v2251
        %v2253 = vrcp.pop %v2205
        %v2254 = vmul.f32 1.0, %v2253
        %v2255 = vrcp.pop %v2206
        %v2256 = vmul.f32 1.0, %v2255
        %v2257 = vrcp.pop %v2207
        %v2258 = vmul.f32 1.0, %v2257
        %v2259 = vrcp.pop %v2208
        %v2260 = vmul.f32 1.0, %v2259
        %v2261 = vrcp.pop %v2209
        %v2262 = vmul.f32 1.0, %v2261
        %v2263 = vrcp.pop %v2210
        %v2264 = vmul.f32 1.0, %v2263
        %v2265 = vrcp.pop %v2211
        %v2266 = vmul.f32 1.0, %v2265
        %v2267 = vrcp.pop %v2212
        %v2268 = vmul.f32 1.0, %v2267
        %v2269 = vrcp.pop %v2213
        %v2270 = vmul.f32 1.0, %v2269
        %v2271 = vrcp.pop %v2214
        %v2272 = vmul.f32 1.0, %v2271
        %v2273 = vrcp.pop %v2215
        %v2274 = vmul.f32 1.0, %v2273
        %v2275 = vrcp.pop %v2216
        %v2276 = vmul.f32 1.0, %v2275
        %v2277 = vrcp.pop %v2217
        %v2278 = vmul.f32 1.0, %v2277
        %v2279 = vrcp.pop %v2218
        %v2280 = vmul.f32 1.0, %v2279
        %v2281 = vrcp.pop %v2219
        %v2282 = vmul.f32 1.0, %v2281
        %v2283 = vrcp.pop %v2220
        %v2284 = vmul.f32 1.0, %v2283
        %v2285 = vmul.f32 %v2222, %v665
        %v2286 = vmul.f32 %v2224, %v666
        %v2287 = vmul.f32 %v2226, %v667
        %v2288 = vmul.f32 %v2228, %v668
        %v2289 = vmul.f32 %v2230, %v669
        %v2290 = vmul.f32 %v2232, %v670
        %v2291 = vmul.f32 %v2234, %v671
        %v2292 = vmul.f32 %v2236, %v672
        %v2293 = vmul.f32 %v2238, %v673
        %v2294 = vmul.f32 %v2240, %v674
        %v2295 = vmul.f32 %v2242, %v675
        %v2296 = vmul.f32 %v2244, %v676
        %v2297 = vmul.f32 %v2246, %v677
        %v2298 = vmul.f32 %v2248, %v678
        %v2299 = vmul.f32 %v2250, %v679
        %v2300 = vmul.f32 %v2252, %v680
        %v2301 = vmul.f32 %v2254, %v681
        %v2302 = vmul.f32 %v2256, %v682
        %v2303 = vmul.f32 %v2258, %v683
        %v2304 = vmul.f32 %v2260, %v684
        %v2305 = vmul.f32 %v2262, %v685
        %v2306 = vmul.f32 %v2264, %v686
        %v2307 = vmul.f32 %v2266, %v687
        %v2308 = vmul.f32 %v2268, %v688
        %v2309 = vmul.f32 %v2270, %v689
        %v2310 = vmul.f32 %v2272, %v690
        %v2311 = vmul.f32 %v2274, %v691
        %v2312 = vmul.f32 %v2276, %v692
        %v2313 = vmul.f32 %v2278, %v693
        %v2314 = vmul.f32 %v2280, %v694
        %v2315 = vmul.f32 %v2282, %v695
        %v2316 = vmul.f32 %v2284, %v696
        %v2317 = vpack.c.bf16 %v2286, %v2285
        %v2318 = vpack.c.bf16 %v2288, %v2287
        %v2319 = vpack.c.bf16 %v2290, %v2289
        %v2320 = vpack.c.bf16 %v2292, %v2291
        %v2321 = vpack.c.bf16 %v2294, %v2293
        %v2322 = vpack.c.bf16 %v2296, %v2295
        %v2323 = vpack.c.bf16 %v2298, %v2297
        %v2324 = vpack.c.bf16 %v2300, %v2299
        %v2325 = vpack.c.bf16 %v2302, %v2301
        %v2326 = vpack.c.bf16 %v2304, %v2303
        %v2327 = vpack.c.bf16 %v2306, %v2305
        %v2328 = vpack.c.bf16 %v2308, %v2307
        %v2329 = vpack.c.bf16 %v2310, %v2309
        %v2330 = vpack.c.bf16 %v2312, %v2311
        %v2331 = vpack.c.bf16 %v2314, %v2313
        %v2332 = vpack.c.bf16 %v2316, %v2315
        %2333 = vmatprep.subr.bf16.mxu0 0
        %2334 = vmatpush1.bf16.msra.mxu0 %v2317
        %2335 = vmatprep.subr.bf16.mxu0 0
        %2336 = vmatpush1.bf16.msra.mxu0 %v2318
        %2337 = vmatprep.subr.bf16.mxu0 0
        %2338 = vmatpush1.bf16.msra.mxu0 %v2319
        %2339 = vmatprep.subr.bf16.mxu0 0
        %2340 = vmatpush1.bf16.msra.mxu0 %v2320
        %2341 = vmatprep.subr.bf16.mxu0 0
        %2342 = vmatpush1.bf16.msra.mxu0 %v2321
        %2343 = vmatprep.subr.bf16.mxu0 0
        %2344 = vmatpush1.bf16.msra.mxu0 %v2322
        %2345 = vmatprep.subr.bf16.mxu0 0
        %2346 = vmatpush1.bf16.msra.mxu0 %v2323
        %2347 = vmatprep.subr.bf16.mxu0 0
        %2348 = vmatpush1.bf16.msra.mxu0 %v2324
        %2349 = vmatprep.subr.bf16.mxu0 0
        %2350 = vmatpush1.bf16.msra.mxu0 %v2325
        %2351 = vmatprep.subr.bf16.mxu0 0
        %2352 = vmatpush1.bf16.msra.mxu0 %v2326
        %2353 = vmatprep.subr.bf16.mxu0 0
        %2354 = vmatpush1.bf16.msra.mxu0 %v2327
        %2355 = vmatprep.subr.bf16.mxu0 0
        %2356 = vmatpush1.bf16.msra.mxu0 %v2328
        %2357 = vmatprep.subr.bf16.mxu0 0
        %2358 = vmatpush1.bf16.msra.mxu0 %v2329
        %2359 = vmatprep.subr.bf16.mxu0 0
        %2360 = vmatpush1.bf16.msra.mxu0 %v2330
        %2361 = vmatprep.subr.bf16.mxu0 0
        %2362 = vmatpush1.bf16.msra.mxu0 %v2331
        %2363 = vmatprep.subr.bf16.mxu0 0
        %2364 = vmatpush1.bf16.msra.mxu0 %v2332
        %2365 = vmatprep.mubr.bf16.mxu0 %v858
        %2366 = vmatmul.mubr.bf16.gmra.mrb[0].mxu0 %v857
        %v2367 = vpop.f32.mrb[0].mxu0
        %v2368 = vadd.f32 0.0, %v2367
        %v2369 = vpop.f32.mrb[0].mxu0
        %v2370 = vpop.f32.mrb[0].mxu0
        %v2371 = vadd.f32 0.0, %v2370
        %v2372 = vpop.f32.mrb[0].mxu0
        %2373 = vmatprep.mubr.bf16.mxu0 %v860
        %2374 = vmatmul.mubr.bf16.gmra.mrb[0].mxu0 %v859
        %v2375 = vpop.f32.mrb[0].mxu0
        %v2376 = vadd.f32 0.0, %v2375
        %v2377 = vpop.f32.mrb[0].mxu0
        %v2378 = vpop.f32.mrb[0].mxu0
        %v2379 = vadd.f32 0.0, %v2378
        %v2380 = vpop.f32.mrb[0].mxu0
        %2381 = vmatprep.mubr.bf16.mxu0 %v862
        %2382 = vmatmul.mubr.bf16.gmra.mrb[0].mxu0 %v861
        %v2383 = vpop.f32.mrb[0].mxu0
        %v2384 = vadd.f32 0.0, %v2383
        %v2385 = vpop.f32.mrb[0].mxu0
        %v2386 = vpop.f32.mrb[0].mxu0
        %v2387 = vadd.f32 0.0, %v2386
        %v2388 = vpop.f32.mrb[0].mxu0
        %2389 = vmatprep.mubr.bf16.mxu0 %v864
        %2390 = vmatmul.mubr.bf16.gmra.mrb[0].mxu0 %v863
        %v2391 = vpop.f32.mrb[0].mxu0
        %v2392 = vadd.f32 0.0, %v2391
        %v2393 = vpop.f32.mrb[0].mxu0
        %v2394 = vpop.f32.mrb[0].mxu0
        %v2395 = vadd.f32 0.0, %v2394
        %v2396 = vpop.f32.mrb[0].mxu0
        %2397 = vmatprep.mubr.bf16.mxu0 %v866
        %2398 = vmatmul.mubr.bf16.gmra.mrb[0].mxu0 %v865
        %v2399 = vpop.f32.mrb[0].mxu0
        %v2400 = vadd.f32 0.0, %v2399
        %v2401 = vpop.f32.mrb[0].mxu0
        %v2402 = vpop.f32.mrb[0].mxu0
        %v2403 = vadd.f32 0.0, %v2402
        %v2404 = vpop.f32.mrb[0].mxu0
        %2405 = vmatprep.mubr.bf16.mxu0 %v868
        %2406 = vmatmul.mubr.bf16.gmra.mrb[0].mxu0 %v867
        %v2407 = vpop.f32.mrb[0].mxu0
        %v2408 = vadd.f32 0.0, %v2407
        %v2409 = vpop.f32.mrb[0].mxu0
        %v2410 = vpop.f32.mrb[0].mxu0
        %v2411 = vadd.f32 0.0, %v2410
        %v2412 = vpop.f32.mrb[0].mxu0
        %2413 = vmatprep.mubr.bf16.mxu0 %v870
        %2414 = vmatmul.mubr.bf16.gmra.mrb[0].mxu0 %v869
        %v2415 = vpop.f32.mrb[0].mxu0
        %v2416 = vadd.f32 0.0, %v2415
        %v2417 = vpop.f32.mrb[0].mxu0
        %v2418 = vpop.f32.mrb[0].mxu0
        %v2419 = vadd.f32 0.0, %v2418
        %v2420 = vpop.f32.mrb[0].mxu0
        %2421 = vmatprep.mubr.bf16.mxu0 %v872
        %2422 = vmatmul.mubr.bf16.gmra.mrb[0].mxu0 %v871
        %v2423 = vpop.f32.mrb[0].mxu0
        %v2424 = vadd.f32 0.0, %v2423
        %v2425 = vpop.f32.mrb[0].mxu0
        %v2426 = vpop.f32.mrb[0].mxu0
        %v2427 = vadd.f32 0.0, %v2426
        %v2428 = vpop.f32.mrb[0].mxu0
        %2429 = vmatprep.mubr.bf16.mxu0 %v874
        %2430 = vmatmul.mubr.bf16.gmra.mrb[0].mxu0 %v873
        %v2431 = vpop.f32.mrb[0].mxu0
        %v2432 = vadd.f32 0.0, %v2431
        %v2433 = vpop.f32.mrb[0].mxu0
        %v2434 = vpop.f32.mrb[0].mxu0
        %v2435 = vadd.f32 0.0, %v2434
        %v2436 = vpop.f32.mrb[0].mxu0
        %2437 = vmatprep.mubr.bf16.mxu0 %v876
        %2438 = vmatmul.mubr.bf16.gmra.mrb[0].mxu0 %v875
        %v2439 = vpop.f32.mrb[0].mxu0
        %v2440 = vadd.f32 0.0, %v2439
        %v2441 = vpop.f32.mrb[0].mxu0
        %v2442 = vpop.f32.mrb[0].mxu0
        %v2443 = vadd.f32 0.0, %v2442
        %v2444 = vpop.f32.mrb[0].mxu0
        %2445 = vmatprep.mubr.bf16.mxu0 %v878
        %2446 = vmatmul.mubr.bf16.gmra.mrb[0].mxu0 %v877
        %v2447 = vpop.f32.mrb[0].mxu0
        %v2448 = vadd.f32 0.0, %v2447
        %v2449 = vpop.f32.mrb[0].mxu0
        %v2450 = vpop.f32.mrb[0].mxu0
        %v2451 = vadd.f32 0.0, %v2450
        %v2452 = vpop.f32.mrb[0].mxu0
        %2453 = vmatprep.mubr.bf16.mxu0 %v880
        %2454 = vmatmul.mubr.bf16.gmra.mrb[0].mxu0 %v879
        %v2455 = vpop.f32.mrb[0].mxu0
        %v2456 = vadd.f32 0.0, %v2455
        %v2457 = vpop.f32.mrb[0].mxu0
        %v2458 = vpop.f32.mrb[0].mxu0
        %v2459 = vadd.f32 0.0, %v2458
        %v2460 = vpop.f32.mrb[0].mxu0
        %2461 = vmatprep.mubr.bf16.mxu0 %v882
        %2462 = vmatmul.mubr.bf16.gmra.mrb[0].mxu0 %v881
        %v2463 = vpop.f32.mrb[0].mxu0
        %v2464 = vadd.f32 0.0, %v2463
        %v2465 = vpop.f32.mrb[0].mxu0
        %v2466 = vpop.f32.mrb[0].mxu0
        %v2467 = vadd.f32 0.0, %v2466
        %v2468 = vpop.f32.mrb[0].mxu0
        %2469 = vmatprep.mubr.bf16.mxu0 %v884
        %2470 = vmatmul.mubr.bf16.gmra.mrb[0].mxu0 %v883
        %v2471 = vpop.f32.mrb[0].mxu0
        %v2472 = vadd.f32 0.0, %v2471
        %v2473 = vpop.f32.mrb[0].mxu0
        %v2474 = vpop.f32.mrb[0].mxu0
        %v2475 = vadd.f32 0.0, %v2474
        %v2476 = vpop.f32.mrb[0].mxu0
        %2477 = vmatprep.mubr.bf16.mxu0 %v886
        %2478 = vmatmul.mubr.bf16.gmra.mrb[0].mxu0 %v885
        %v2479 = vpop.f32.mrb[0].mxu0
        %v2480 = vadd.f32 0.0, %v2479
        %v2481 = vpop.f32.mrb[0].mxu0
        %v2482 = vpop.f32.mrb[0].mxu0
        %v2483 = vadd.f32 0.0, %v2482
        %v2484 = vpop.f32.mrb[0].mxu0
        %2485 = vmatprep.mubr.bf16.mxu0 %v888
        %2486 = vmatmul.mubr.bf16.gmra.mrb[0].mxu0 %v887
        %v2487 = vpop.f32.mrb[0].mxu0
        %v2488 = vadd.f32 0.0, %v2487
        %v2489 = vpop.f32.mrb[0].mxu0
        %v2490 = vpop.f32.mrb[0].mxu0
        %v2491 = vadd.f32 0.0, %v2490
        %v2492 = vpop.f32.mrb[0].mxu0
        %2493 = vdwg.mxu0
        %v2494 = vadd.f32 %v2285, %v2368
        %v2495 = vadd.f32 %v2286, %v2371
        %v2496 = vadd.f32 %v2287, %v2376
        %v2497 = vadd.f32 %v2288, %v2379
        %v2498 = vadd.f32 %v2289, %v2384
        %v2499 = vadd.f32 %v2290, %v2387
        %v2500 = vadd.f32 %v2291, %v2392
        %v2501 = vadd.f32 %v2292, %v2395
        %v2502 = vadd.f32 %v2293, %v2400
        %v2503 = vadd.f32 %v2294, %v2403
        %v2504 = vadd.f32 %v2295, %v2408
        %v2505 = vadd.f32 %v2296, %v2411
        %v2506 = vadd.f32 %v2297, %v2416
        %v2507 = vadd.f32 %v2298, %v2419
        %v2508 = vadd.f32 %v2299, %v2424
        %v2509 = vadd.f32 %v2300, %v2427
        %v2510 = vadd.f32 %v2301, %v2432
        %v2511 = vadd.f32 %v2302, %v2435
        %v2512 = vadd.f32 %v2303, %v2440
        %v2513 = vadd.f32 %v2304, %v2443
        %v2514 = vadd.f32 %v2305, %v2448
        %v2515 = vadd.f32 %v2306, %v2451
        %v2516 = vadd.f32 %v2307, %v2456
        %v2517 = vadd.f32 %v2308, %v2459
        %v2518 = vadd.f32 %v2309, %v2464
        %v2519 = vadd.f32 %v2310, %v2467
        %v2520 = vadd.f32 %v2311, %v2472
        %v2521 = vadd.f32 %v2312, %v2475
        %v2522 = vadd.f32 %v2313, %v2480
        %v2523 = vadd.f32 %v2314, %v2483
        %v2524 = vadd.f32 %v2315, %v2488
        %v2525 = vadd.f32 %v2316, %v2491
        %v2526 = vpack.c.bf16 %v2495, %v2494
        %v2527 = vpack.c.bf16 %v2497, %v2496
        %v2528 = vpack.c.bf16 %v2499, %v2498
        %v2529 = vpack.c.bf16 %v2501, %v2500
        %v2530 = vpack.c.bf16 %v2503, %v2502
        %v2531 = vpack.c.bf16 %v2505, %v2504
        %v2532 = vpack.c.bf16 %v2507, %v2506
        %v2533 = vpack.c.bf16 %v2509, %v2508
        %v2534 = vpack.c.bf16 %v2511, %v2510
        %v2535 = vpack.c.bf16 %v2513, %v2512
        %v2536 = vpack.c.bf16 %v2515, %v2514
        %v2537 = vpack.c.bf16 %v2517, %v2516
        %v2538 = vpack.c.bf16 %v2519, %v2518
        %v2539 = vpack.c.bf16 %v2521, %v2520
        %v2540 = vpack.c.bf16 %v2523, %v2522
        %v2541 = vpack.c.bf16 %v2525, %v2524
        %v2542 = vld [vmem:[%s341] sm:$0xf]
        %v2543 = vld [vmem:[%s341 + $0x4] sm:$0xf]
        %v2544 = vld [vmem:[%s341 + $0x8] sm:$0xf]
        %v2545 = vld [vmem:[%s341 + $0xc] sm:$0xf]
        %v2546 = vld [vmem:[%s341 + $0x10] sm:$0xf]
        %v2547 = vld [vmem:[%s341 + $0x14] sm:$0xf]
        %v2548 = vld [vmem:[%s341 + $0x18] sm:$0xf]
        %v2549 = vld [vmem:[%s341 + $0x1c] sm:$0xf]
        %v2550 = vld [vmem:[%s341 + $0x20] sm:$0xf]
        %v2551 = vld [vmem:[%s341 + $0x24] sm:$0xf]
        %v2552 = vld [vmem:[%s341 + $0x28] sm:$0xf]
        %v2553 = vld [vmem:[%s341 + $0x2c] sm:$0xf]
        %v2554 = vld [vmem:[%s341 + $0x30] sm:$0xf]
        %v2555 = vld [vmem:[%s341 + $0x34] sm:$0xf]
        %v2556 = vld [vmem:[%s341 + $0x38] sm:$0xf]
        %v2557 = vld [vmem:[%s341 + $0x3c] sm:$0xf]
        %v2574 = vunpack.c.l.b16 %v2542
        %v2575 = vunpack.c.l.b16 %v2543
        %v2576 = vunpack.c.l.b16 %v2544
        %v2577 = vunpack.c.l.b16 %v2545
        %v2578 = vunpack.c.l.b16 %v2546
        %v2579 = vunpack.c.l.b16 %v2547
        %v2580 = vunpack.c.l.b16 %v2548
        %v2581 = vunpack.c.l.b16 %v2549
        %v2582 = vunpack.c.l.b16 %v2550
        %v2583 = vunpack.c.l.b16 %v2551
        %v2584 = vunpack.c.l.b16 %v2552
        %v2585 = vunpack.c.l.b16 %v2553
        %v2586 = vunpack.c.l.b16 %v2554
        %v2587 = vunpack.c.l.b16 %v2555
        %v2588 = vunpack.c.l.b16 %v2556
        %v2589 = vunpack.c.l.b16 %v2557
        %v2590 = vpack.c.b16 %v2575, %v2574
        %v2591 = vpack.c.b16 %v2577, %v2576
        %v2592 = vpack.c.b16 %v2579, %v2578
        %v2593 = vpack.c.b16 %v2581, %v2580
        %v2594 = vpack.c.b16 %v2583, %v2582
        %v2595 = vpack.c.b16 %v2585, %v2584
        %v2596 = vpack.c.b16 %v2587, %v2586
        %v2597 = vpack.c.b16 %v2589, %v2588
        %2606 = vmatprep.subr.bf16.mxu0 0
        %2607 = vmatpush1.bf16.msra.mxu0 %v2590
        %2608 = vmatprep.subr.bf16.mxu0 0
        %2609 = vmatpush1.bf16.msra.mxu0 %v2591
        %2610 = vmatprep.subr.bf16.mxu0 0
        %2611 = vmatpush1.bf16.msra.mxu0 %v2592
        %2612 = vmatprep.subr.bf16.mxu0 0
        %2613 = vmatpush1.bf16.msra.mxu0 %v2593
        %2614 = vmatprep.subr.bf16.mxu0 0
        %2615 = vmatpush1.bf16.msra.mxu0 %v2594
        %2616 = vmatprep.subr.bf16.mxu0 0
        %2617 = vmatpush1.bf16.msra.mxu0 %v2595
        %2618 = vmatprep.subr.bf16.mxu0 0
        %2619 = vmatpush1.bf16.msra.mxu0 %v2596
        %2620 = vmatprep.subr.bf16.mxu0 0
        %2621 = vmatpush1.bf16.msra.mxu0 %v2597
        %2622 = vmatprep.subr.bf16.mxu0 0
        %2623 = vmatpush1.bf16.msra.mxu0 0
        %2624 = vmatprep.subr.bf16.mxu0 0
        %2625 = vmatpush1.bf16.msra.mxu0 0
        %2626 = vmatprep.subr.bf16.mxu0 0
        %2627 = vmatpush1.bf16.msra.mxu0 0
        %2628 = vmatprep.subr.bf16.mxu0 0
        %2629 = vmatpush1.bf16.msra.mxu0 0
        %2630 = vmatprep.subr.bf16.mxu0 0
        %2631 = vmatpush1.bf16.msra.mxu0 0
        %2632 = vmatprep.subr.bf16.mxu0 0
        %2633 = vmatpush1.bf16.msra.mxu0 0
        %2634 = vmatprep.subr.bf16.mxu0 0
        %2635 = vmatpush1.bf16.msra.mxu0 0
        %2636 = vmatprep.subr.bf16.mxu0 0
        %2637 = vmatpush1.bf16.msra.mxu0 0
        %2638 = vmatprep.mubr.bf16.mxu0 0
        %2639 = vmatmul.mubr.bf16.gmra.mrb[0].mxu0 %v2526
        %v2640 = vpop.f32.mrb[0].mxu0
        %v2641 = vadd.f32 0.0, %v2640
        %v2642 = vpop.f32.mrb[0].mxu0
        %v2643 = vpop.f32.mrb[0].mxu0
        %v2644 = vadd.f32 0.0, %v2643
        %v2645 = vpop.f32.mrb[0].mxu0
        %2646 = vmatprep.mubr.bf16.mxu0 0
        %2647 = vmatmul.mubr.bf16.gmra.mrb[0].mxu0 %v2527
        %v2648 = vpop.f32.mrb[0].mxu0
        %v2649 = vadd.f32 0.0, %v2648
        %v2650 = vpop.f32.mrb[0].mxu0
        %v2651 = vpop.f32.mrb[0].mxu0
        %v2652 = vadd.f32 0.0, %v2651
        %v2653 = vpop.f32.mrb[0].mxu0
        %2654 = vmatprep.mubr.bf16.mxu0 0
        %2655 = vmatmul.mubr.bf16.gmra.mrb[0].mxu0 %v2528
        %v2656 = vpop.f32.mrb[0].mxu0
        %v2657 = vadd.f32 0.0, %v2656
        %v2658 = vpop.f32.mrb[0].mxu0
        %v2659 = vpop.f32.mrb[0].mxu0
        %v2660 = vadd.f32 0.0, %v2659
        %v2661 = vpop.f32.mrb[0].mxu0
        %2662 = vmatprep.mubr.bf16.mxu0 0
        %2663 = vmatmul.mubr.bf16.gmra.mrb[0].mxu0 %v2529
        %v2664 = vpop.f32.mrb[0].mxu0
        %v2665 = vadd.f32 0.0, %v2664
        %v2666 = vpop.f32.mrb[0].mxu0
        %v2667 = vpop.f32.mrb[0].mxu0
        %v2668 = vadd.f32 0.0, %v2667
        %v2669 = vpop.f32.mrb[0].mxu0
        %2670 = vmatprep.mubr.bf16.mxu0 0
        %2671 = vmatmul.mubr.bf16.gmra.mrb[0].mxu0 %v2530
        %v2672 = vpop.f32.mrb[0].mxu0
        %v2673 = vadd.f32 0.0, %v2672
        %v2674 = vpop.f32.mrb[0].mxu0
        %v2675 = vpop.f32.mrb[0].mxu0
        %v2676 = vadd.f32 0.0, %v2675
        %v2677 = vpop.f32.mrb[0].mxu0
        %2678 = vmatprep.mubr.bf16.mxu0 0
        %2679 = vmatmul.mubr.bf16.gmra.mrb[0].mxu0 %v2531
        %v2680 = vpop.f32.mrb[0].mxu0
        %v2681 = vadd.f32 0.0, %v2680
        %v2682 = vpop.f32.mrb[0].mxu0
        %v2683 = vpop.f32.mrb[0].mxu0
        %v2684 = vadd.f32 0.0, %v2683
        %v2685 = vpop.f32.mrb[0].mxu0
        %2686 = vmatprep.mubr.bf16.mxu0 0
        %2687 = vmatmul.mubr.bf16.gmra.mrb[0].mxu0 %v2532
        %v2688 = vpop.f32.mrb[0].mxu0
        %v2689 = vadd.f32 0.0, %v2688
        %v2690 = vpop.f32.mrb[0].mxu0
        %v2691 = vpop.f32.mrb[0].mxu0
        %v2692 = vadd.f32 0.0, %v2691
        %v2693 = vpop.f32.mrb[0].mxu0
        %2694 = vmatprep.mubr.bf16.mxu0 0
        %2695 = vmatmul.mubr.bf16.gmra.mrb[0].mxu0 %v2533
        %v2696 = vpop.f32.mrb[0].mxu0
        %v2697 = vadd.f32 0.0, %v2696
        %v2698 = vpop.f32.mrb[0].mxu0
        %v2699 = vpop.f32.mrb[0].mxu0
        %v2700 = vadd.f32 0.0, %v2699
        %v2701 = vpop.f32.mrb[0].mxu0
        %2702 = vmatprep.mubr.bf16.mxu0 0
        %2703 = vmatmul.mubr.bf16.gmra.mrb[0].mxu0 %v2534
        %v2704 = vpop.f32.mrb[0].mxu0
        %v2705 = vadd.f32 0.0, %v2704
        %v2706 = vpop.f32.mrb[0].mxu0
        %v2707 = vpop.f32.mrb[0].mxu0
        %v2708 = vadd.f32 0.0, %v2707
        %v2709 = vpop.f32.mrb[0].mxu0
        %2710 = vmatprep.mubr.bf16.mxu0 0
        %2711 = vmatmul.mubr.bf16.gmra.mrb[0].mxu0 %v2535
        %v2712 = vpop.f32.mrb[0].mxu0
        %v2713 = vadd.f32 0.0, %v2712
        %v2714 = vpop.f32.mrb[0].mxu0
        %v2715 = vpop.f32.mrb[0].mxu0
        %v2716 = vadd.f32 0.0, %v2715
        %v2717 = vpop.f32.mrb[0].mxu0
        %2718 = vmatprep.mubr.bf16.mxu0 0
        %2719 = vmatmul.mubr.bf16.gmra.mrb[0].mxu0 %v2536
        %v2720 = vpop.f32.mrb[0].mxu0
        %v2721 = vadd.f32 0.0, %v2720
        %v2722 = vpop.f32.mrb[0].mxu0
        %v2723 = vpop.f32.mrb[0].mxu0
        %v2724 = vadd.f32 0.0, %v2723
        %v2725 = vpop.f32.mrb[0].mxu0
        %2726 = vmatprep.mubr.bf16.mxu0 0
        %2727 = vmatmul.mubr.bf16.gmra.mrb[0].mxu0 %v2537
        %v2728 = vpop.f32.mrb[0].mxu0
        %v2729 = vadd.f32 0.0, %v2728
        %v2730 = vpop.f32.mrb[0].mxu0
        %v2731 = vpop.f32.mrb[0].mxu0
        %v2732 = vadd.f32 0.0, %v2731
        %v2733 = vpop.f32.mrb[0].mxu0
        %2734 = vmatprep.mubr.bf16.mxu0 0
        %2735 = vmatmul.mubr.bf16.gmra.mrb[0].mxu0 %v2538
        %v2736 = vpop.f32.mrb[0].mxu0
        %v2737 = vadd.f32 0.0, %v2736
        %v2738 = vpop.f32.mrb[0].mxu0
        %v2739 = vpop.f32.mrb[0].mxu0
        %v2740 = vadd.f32 0.0, %v2739
        %v2741 = vpop.f32.mrb[0].mxu0
        %2742 = vmatprep.mubr.bf16.mxu0 0
        %2743 = vmatmul.mubr.bf16.gmra.mrb[0].mxu0 %v2539
        %v2744 = vpop.f32.mrb[0].mxu0
        %v2745 = vadd.f32 0.0, %v2744
        %v2746 = vpop.f32.mrb[0].mxu0
        %v2747 = vpop.f32.mrb[0].mxu0
        %v2748 = vadd.f32 0.0, %v2747
        %v2749 = vpop.f32.mrb[0].mxu0
        %2750 = vmatprep.mubr.bf16.mxu0 0
        %2751 = vmatmul.mubr.bf16.gmra.mrb[0].mxu0 %v2540
        %v2752 = vpop.f32.mrb[0].mxu0
        %v2753 = vadd.f32 0.0, %v2752
        %v2754 = vpop.f32.mrb[0].mxu0
        %v2755 = vpop.f32.mrb[0].mxu0
        %v2756 = vadd.f32 0.0, %v2755
        %v2757 = vpop.f32.mrb[0].mxu0
        %2758 = vmatprep.mubr.bf16.mxu0 0
        %2759 = vmatmul.mubr.bf16.gmra.mrb[0].mxu0 %v2541
        %v2760 = vpop.f32.mrb[0].mxu0
        %v2761 = vadd.f32 0.0, %v2760
        %v2762 = vpop.f32.mrb[0].mxu0
        %v2763 = vpop.f32.mrb[0].mxu0
        %v2764 = vadd.f32 0.0, %v2763
        %v2765 = vpop.f32.mrb[0].mxu0
        %2766 = vdwg.mxu0
        %v2767 = vadd.f32 %v1775, %v2641
        %v2768 = vadd.f32 %v1778, %v2644
        %v2769 = vadd.f32 %v1783, %v2649
        %v2770 = vadd.f32 %v1786, %v2652
        %v2771 = vadd.f32 %v1791, %v2657
        %v2772 = vadd.f32 %v1794, %v2660
        %v2773 = vadd.f32 %v1799, %v2665
        %v2774 = vadd.f32 %v1802, %v2668
        %v2775 = vadd.f32 %v1807, %v2673
        %v2776 = vadd.f32 %v1810, %v2676
        %v2777 = vadd.f32 %v1815, %v2681
        %v2778 = vadd.f32 %v1818, %v2684
        %v2779 = vadd.f32 %v1823, %v2689
        %v2780 = vadd.f32 %v1826, %v2692
        %v2781 = vadd.f32 %v1831, %v2697
        %v2782 = vadd.f32 %v1834, %v2700
        %v2783 = vadd.f32 %v1839, %v2705
        %v2784 = vadd.f32 %v1842, %v2708
        %v2785 = vadd.f32 %v1847, %v2713
        %v2786 = vadd.f32 %v1850, %v2716
        %v2787 = vadd.f32 %v1855, %v2721
        %v2788 = vadd.f32 %v1858, %v2724
        %v2789 = vadd.f32 %v1863, %v2729
        %v2790 = vadd.f32 %v1866, %v2732
        %v2791 = vadd.f32 %v1871, %v2737
        %v2792 = vadd.f32 %v1874, %v2740
        %v2793 = vadd.f32 %v1879, %v2745
        %v2794 = vadd.f32 %v1882, %v2748
        %v2795 = vadd.f32 %v1887, %v2753
        %v2796 = vadd.f32 %v1890, %v2756
        %v2797 = vadd.f32 %v1895, %v2761
        %v2798 = vadd.f32 %v1898, %v2764
        %v2799 = vtanh.pop %v2767
        %v2800 = vtanh.pop %v2768
        %v2801 = vtanh.pop %v2769
        %v2802 = vtanh.pop %v2770
        %v2803 = vtanh.pop %v2771
        %v2804 = vtanh.pop %v2772
        %v2805 = vtanh.pop %v2773
        %v2806 = vtanh.pop %v2774
        %v2807 = vtanh.pop %v2775
        %v2808 = vtanh.pop %v2776
        %v2809 = vtanh.pop %v2777
        %v2810 = vtanh.pop %v2778
        %v2811 = vtanh.pop %v2779
        %v2812 = vtanh.pop %v2780
        %v2813 = vtanh.pop %v2781
        %v2814 = vtanh.pop %v2782
        %v2815 = vtanh.pop %v2783
        %v2816 = vtanh.pop %v2784
        %v2817 = vtanh.pop %v2785
        %v2818 = vtanh.pop %v2786
        %v2819 = vtanh.pop %v2787
        %v2820 = vtanh.pop %v2788
        %v2821 = vtanh.pop %v2789
        %v2822 = vtanh.pop %v2790
        %v2823 = vtanh.pop %v2791
        %v2824 = vtanh.pop %v2792
        %v2825 = vtanh.pop %v2793
        %v2826 = vtanh.pop %v2794
        %v2827 = vtanh.pop %v2795
        %v2828 = vtanh.pop %v2796
        %v2829 = vtanh.pop %v2797
        %v2830 = vtanh.pop %v2798
        %v2831 = vmul.f32 %v2030, %v665
        %v2832 = vmul.f32 %v2032, %v666
        %v2833 = vmul.f32 %v2034, %v667
        %v2834 = vmul.f32 %v2036, %v668
        %v2835 = vmul.f32 %v2038, %v669
        %v2836 = vmul.f32 %v2040, %v670
        %v2837 = vmul.f32 %v2042, %v671
        %v2838 = vmul.f32 %v2044, %v672
        %v2839 = vmul.f32 %v2046, %v673
        %v2840 = vmul.f32 %v2048, %v674
        %v2841 = vmul.f32 %v2050, %v675
        %v2842 = vmul.f32 %v2052, %v676
        %v2843 = vmul.f32 %v2054, %v677
        %v2844 = vmul.f32 %v2056, %v678
        %v2845 = vmul.f32 %v2058, %v679
        %v2846 = vmul.f32 %v2060, %v680
        %v2847 = vmul.f32 %v2062, %v681
        %v2848 = vmul.f32 %v2064, %v682
        %v2849 = vmul.f32 %v2066, %v683
        %v2850 = vmul.f32 %v2068, %v684
        %v2851 = vmul.f32 %v2070, %v685
        %v2852 = vmul.f32 %v2072, %v686
        %v2853 = vmul.f32 %v2074, %v687
        %v2854 = vmul.f32 %v2076, %v688
        %v2855 = vmul.f32 %v2078, %v689
        %v2856 = vmul.f32 %v2080, %v690
        %v2857 = vmul.f32 %v2082, %v691
        %v2858 = vmul.f32 %v2084, %v692
        %v2859 = vmul.f32 %v2086, %v693
        %v2860 = vmul.f32 %v2088, %v694
        %v2861 = vmul.f32 %v2090, %v695
        %v2862 = vmul.f32 %v2092, %v696
        %v2863 = vsub.f32 1.0, %v2030
        %v2864 = vsub.f32 1.0, %v2032
        %v2865 = vsub.f32 1.0, %v2034
        %v2866 = vsub.f32 1.0, %v2036
        %v2867 = vsub.f32 1.0, %v2038
        %v2868 = vsub.f32 1.0, %v2040
        %v2869 = vsub.f32 1.0, %v2042
        %v2870 = vsub.f32 1.0, %v2044
        %v2871 = vsub.f32 1.0, %v2046
        %v2872 = vsub.f32 1.0, %v2048
        %v2873 = vsub.f32 1.0, %v2050
        %v2874 = vsub.f32 1.0, %v2052
        %v2875 = vsub.f32 1.0, %v2054
        %v2876 = vsub.f32 1.0, %v2056
        %v2877 = vsub.f32 1.0, %v2058
        %v2878 = vsub.f32 1.0, %v2060
        %v2879 = vsub.f32 1.0, %v2062
        %v2880 = vsub.f32 1.0, %v2064
        %v2881 = vsub.f32 1.0, %v2066
        %v2882 = vsub.f32 1.0, %v2068
        %v2883 = vsub.f32 1.0, %v2070
        %v2884 = vsub.f32 1.0, %v2072
        %v2885 = vsub.f32 1.0, %v2074
        %v2886 = vsub.f32 1.0, %v2076
        %v2887 = vsub.f32 1.0, %v2078
        %v2888 = vsub.f32 1.0, %v2080
        %v2889 = vsub.f32 1.0, %v2082
        %v2890 = vsub.f32 1.0, %v2084
        %v2891 = vsub.f32 1.0, %v2086
        %v2892 = vsub.f32 1.0, %v2088
        %v2893 = vsub.f32 1.0, %v2090
        %v2894 = vsub.f32 1.0, %v2092
        %v2895 = vmul.f32 %v2863, %v2799
        %v2896 = vmul.f32 %v2864, %v2800
        %v2897 = vmul.f32 %v2865, %v2801
        %v2898 = vmul.f32 %v2866, %v2802
        %v2899 = vmul.f32 %v2867, %v2803
        %v2900 = vmul.f32 %v2868, %v2804
        %v2901 = vmul.f32 %v2869, %v2805
        %v2902 = vmul.f32 %v2870, %v2806
        %v2903 = vmul.f32 %v2871, %v2807
        %v2904 = vmul.f32 %v2872, %v2808
        %v2905 = vmul.f32 %v2873, %v2809
        %v2906 = vmul.f32 %v2874, %v2810
        %v2907 = vmul.f32 %v2875, %v2811
        %v2908 = vmul.f32 %v2876, %v2812
        %v2909 = vmul.f32 %v2877, %v2813
        %v2910 = vmul.f32 %v2878, %v2814
        %v2911 = vmul.f32 %v2879, %v2815
        %v2912 = vmul.f32 %v2880, %v2816
        %v2913 = vmul.f32 %v2881, %v2817
        %v2914 = vmul.f32 %v2882, %v2818
        %v2915 = vmul.f32 %v2883, %v2819
        %v2916 = vmul.f32 %v2884, %v2820
        %v2917 = vmul.f32 %v2885, %v2821
        %v2918 = vmul.f32 %v2886, %v2822
        %v2919 = vmul.f32 %v2887, %v2823
        %v2920 = vmul.f32 %v2888, %v2824
        %v2921 = vmul.f32 %v2889, %v2825
        %v2922 = vmul.f32 %v2890, %v2826
        %v2923 = vmul.f32 %v2891, %v2827
        %v2924 = vmul.f32 %v2892, %v2828
        %v2925 = vmul.f32 %v2893, %v2829
        %v2926 = vmul.f32 %v2894, %v2830
        %v2927 = vadd.f32 %v2831, %v2895
        %v2928 = vadd.f32 %v2832, %v2896
        %v2929 = vadd.f32 %v2833, %v2897
        %v2930 = vadd.f32 %v2834, %v2898
        %v2931 = vadd.f32 %v2835, %v2899
        %v2932 = vadd.f32 %v2836, %v2900
        %v2933 = vadd.f32 %v2837, %v2901
        %v2934 = vadd.f32 %v2838, %v2902
        %v2935 = vadd.f32 %v2839, %v2903
        %v2936 = vadd.f32 %v2840, %v2904
        %v2937 = vadd.f32 %v2841, %v2905
        %v2938 = vadd.f32 %v2842, %v2906
        %v2939 = vadd.f32 %v2843, %v2907
        %v2940 = vadd.f32 %v2844, %v2908
        %v2941 = vadd.f32 %v2845, %v2909
        %v2942 = vadd.f32 %v2846, %v2910
        %v2943 = vadd.f32 %v2847, %v2911
        %v2944 = vadd.f32 %v2848, %v2912
        %v2945 = vadd.f32 %v2849, %v2913
        %v2946 = vadd.f32 %v2850, %v2914
        %v2947 = vadd.f32 %v2851, %v2915
        %v2948 = vadd.f32 %v2852, %v2916
        %v2949 = vadd.f32 %v2853, %v2917
        %v2950 = vadd.f32 %v2854, %v2918
        %v2951 = vadd.f32 %v2855, %v2919
        %v2952 = vadd.f32 %v2856, %v2920
        %v2953 = vadd.f32 %v2857, %v2921
        %v2954 = vadd.f32 %v2858, %v2922
        %v2955 = vadd.f32 %v2859, %v2923
        %v2956 = vadd.f32 %v2860, %v2924
        %v2957 = vadd.f32 %v2861, %v2925
        %v2958 = vadd.f32 %v2862, %v2926
        %2959 = vst [vmem:[%s383] sm:$0xff] %v2927
        %2960 = vst [vmem:[%s383 + $0x8] sm:$0xff] %v2928
        %2961 = vst [vmem:[%s383 + $0x10] sm:$0xff] %v2929
        %2962 = vst [vmem:[%s383 + $0x18] sm:$0xff] %v2930
        %2963 = vst [vmem:[%s383 + $0x20] sm:$0xff] %v2931
        %2964 = vst [vmem:[%s383 + $0x28] sm:$0xff] %v2932
        %2965 = vst [vmem:[%s383 + $0x30] sm:$0xff] %v2933
        %2966 = vst [vmem:[%s383 + $0x38] sm:$0xff] %v2934
        %2967 = vst [vmem:[%s383 + $0x40] sm:$0xff] %v2935
        %2968 = vst [vmem:[%s383 + $0x48] sm:$0xff] %v2936
        %2969 = vst [vmem:[%s383 + $0x50] sm:$0xff] %v2937
        %2970 = vst [vmem:[%s383 + $0x58] sm:$0xff] %v2938
        %2971 = vst [vmem:[%s383 + $0x60] sm:$0xff] %v2939
        %2972 = vst [vmem:[%s383 + $0x68] sm:$0xff] %v2940
        %2973 = vst [vmem:[%s383 + $0x70] sm:$0xff] %v2941
        %2974 = vst [vmem:[%s383 + $0x78] sm:$0xff] %v2942
        %2975 = vst [vmem:[%s383 + $0x80] sm:$0xff] %v2943
        %2976 = vst [vmem:[%s383 + $0x88] sm:$0xff] %v2944
        %2977 = vst [vmem:[%s383 + $0x90] sm:$0xff] %v2945
        %2978 = vst [vmem:[%s383 + $0x98] sm:$0xff] %v2946
        %2979 = vst [vmem:[%s383 + $0xa0] sm:$0xff] %v2947
        %2980 = vst [vmem:[%s383 + $0xa8] sm:$0xff] %v2948
        %2981 = vst [vmem:[%s383 + $0xb0] sm:$0xff] %v2949
        %2982 = vst [vmem:[%s383 + $0xb8] sm:$0xff] %v2950
        %2983 = vst [vmem:[%s383 + $0xc0] sm:$0xff] %v2951
        %2984 = vst [vmem:[%s383 + $0xc8] sm:$0xff] %v2952
        %2985 = vst [vmem:[%s383 + $0xd0] sm:$0xff] %v2953
        %2986 = vst [vmem:[%s383 + $0xd8] sm:$0xff] %v2954
        %2987 = vst [vmem:[%s383 + $0xe0] sm:$0xff] %v2955
        %2988 = vst [vmem:[%s383 + $0xe8] sm:$0xff] %v2956
        %2989 = vst [vmem:[%s383 + $0xf0] sm:$0xff] %v2957
        %2990 = vst [vmem:[%s383 + $0xf8] sm:$0xff] %v2958
        %v2991 = vpack.c.bf16 %v2928, %v2927
        %v2992 = vpack.c.bf16 %v2930, %v2929
        %v2993 = vpack.c.bf16 %v2932, %v2931
        %v2994 = vpack.c.bf16 %v2934, %v2933
        %v2995 = vpack.c.bf16 %v2936, %v2935
        %v2996 = vpack.c.bf16 %v2938, %v2937
        %v2997 = vpack.c.bf16 %v2940, %v2939
        %v2998 = vpack.c.bf16 %v2942, %v2941
        %v2999 = vpack.c.bf16 %v2944, %v2943
        %v3000 = vpack.c.bf16 %v2946, %v2945
        %v3001 = vpack.c.bf16 %v2948, %v2947
        %v3002 = vpack.c.bf16 %v2950, %v2949
        %v3003 = vpack.c.bf16 %v2952, %v2951
        %v3004 = vpack.c.bf16 %v2954, %v2953
        %v3005 = vpack.c.bf16 %v2956, %v2955
        %v3006 = vpack.c.bf16 %v2958, %v2957
        %3007 = vst [vmem:[#allocation2] sm:$0xff] %v2991
        %3008 = vst [vmem:[#allocation2 + $0x10] sm:$0xff] %v2992
        %3009 = vst [vmem:[#allocation2 + $0x20] sm:$0xff] %v2993
        %3010 = vst [vmem:[#allocation2 + $0x30] sm:$0xff] %v2994
        %3011 = vst [vmem:[#allocation2 + $0x40] sm:$0xff] %v2995
        %3012 = vst [vmem:[#allocation2 + $0x50] sm:$0xff] %v2996
        %3013 = vst [vmem:[#allocation2 + $0x60] sm:$0xff] %v2997
        %3014 = vst [vmem:[#allocation2 + $0x70] sm:$0xff] %v2998
        %3015 = vst [vmem:[#allocation2 + $0x80] sm:$0xff] %v2999
        %3016 = vst [vmem:[#allocation2 + $0x90] sm:$0xff] %v3000
        %3017 = vst [vmem:[#allocation2 + $0xa0] sm:$0xff] %v3001
        %3018 = vst [vmem:[#allocation2 + $0xb0] sm:$0xff] %v3002
        %3019 = vst [vmem:[#allocation2 + $0xc0] sm:$0xff] %v3003
        %3020 = vst [vmem:[#allocation2 + $0xd0] sm:$0xff] %v3004
        %3021 = vst [vmem:[#allocation2 + $0xe0] sm:$0xff] %v3005
        %3022 = vst [vmem:[#allocation2 + $0xf0] sm:$0xff] %v3006
        %s3023 = sand.u32 %s176, 1
        %s3024 = scalar_lea.sflag [#allocation5], %s3023
        %s3025 = sand.u32 %s176, 1
        %s3026 = smul.addr %s3025, 256
        %s3027 = scalar_lea.vmem [#allocation11], %s3026
        // Predicated region
        $region69: #{tpu_custom_call.1} parent=43 // pred_check
          %p3028 = pneg %p186
        $region70: #{tpu_custom_call.1} parent=43 // pred_check_branch
          %3030 = sbr.rel (%p3028) target = $region72
        $region71: #{tpu_custom_call.1} parent=43 // pred_region
          %s3032 = ssub.s32 4096, 4096
          %3033 = vsyncadd %s3024, %s3032
          %s3034 = smul.addr %s22, 32
          %s3035 = smul.addr %s3034, 128
          %s3036 = scalar_lea.hbm %s6, %s3035
          %s3037 = sshll.u32 %s3027, 4
          %s3038 = int_to_ptr.vmem [resolvable:$true] %s3037
          %3043 = dma.vmem_to_hbm [thread:$0]  %s3038, 4096, %s3036, %s3024, 128, 128, 8
        $region72: #{tpu_custom_call.1} parent=43 // pred_fallthru
          _
      $region44: #{tpu_custom_call.1} parent=5 // pred_fallthru
        _
      %p3044 = scmp.le.s32.totalorder 2, %s17
      // Predicated region
      $region73: #{tpu_custom_call.1} parent=5 // pred_check
        %p3045 = pneg %p3044
      $region74: #{tpu_custom_call.1} parent=5 // pred_check_branch
        %3047 = sbr.rel (%p3045) target = $region76
      $region75: #{tpu_custom_call.1} parent=5 // pred_region
        %s3048 = ssub.s32 %s17, 2
        // Predicated region
        $region77: #{tpu_custom_call.1} parent=75 // pred_check
          %p3049 = pneg %p192
        $region78: #{tpu_custom_call.1} parent=75 // pred_check_branch
          %3051 = sbr.rel (%p3049) target = $region80
        $region79: #{tpu_custom_call.1} parent=75 // pred_region
          %s3052 = sand.u32 %s177, 1
          %s3053 = scalar_lea.sflag [#allocation5], %s3052
          %s3054 = sand.u32 %s177, 1
          %s3055 = smul.addr %s3054, 256
          %s3056 = scalar_lea.vmem [#allocation11], %s3055
          %3057 = dma.done %s3053, 4096
        $region80: #{tpu_custom_call.1} parent=75 // pred_fallthru
          _
      $region76: #{tpu_custom_call.1} parent=5 // pred_fallthru
        _
    $region6: #{tpu_custom_call.1} parent=1 // loop_footer
      %s21 = sadd.s32 1, %s17
    $region7: #{tpu_custom_call.1} parent=1 // loop_footer_branch
      %16 = sbr.rel target = $region3
    $region8: #{tpu_custom_call.1} parent=1 // loop_exit
      _
    %3058 = vsyncpa [#allocation4], 1
    %s3059 = scalar_lea.sflag [#allocation4], 1
    %3060 = vsyncpa %s3059, 1
    %3061 = vsyncpa [#allocation7], 1
    %3062 = vsyncpa [#allocation5], 1
    %s3063 = scalar_lea.sflag [#allocation5], 1
    %3064 = vsyncpa %s3063, 1

</llo_original>
